<compile_context>
chip_gen: v7x
topology: tpu7x:2x2x1
jax: 0.10.0
libtpu: 0.0.40
codegen_flags: <defaults>
</compile_context>

<pallas_src>
import functools

import jax
import jax.numpy as jnp
from jax.experimental import pallas as pl
from jax.experimental.pallas import tpu as pltpu


# ------------------------------ kernel ---------------------------------------


def _resblock_kernel(xp_ref, w1_ref, s1_ref, b1_ref, w2_ref, s2_ref, b2_ref,
                     *rest, has_down):
    """Fully fused ResidualBlock2D forward for one batch element.

    xp_ref : (1, H+2, W+2, Cin)  bf16   zero-padded NHWC input
    w1_ref : (9, Cin, Cout)      bf16   conv1 taps, tap index k = 3*kh + kw
    w2_ref : (9, Cout, Cout)     bf16   conv2 taps
    s*/b*  : (1, Cout)           f32    folded BatchNorm scale / bias
    [wd_ref: (Cin, Cout) bf16, bd_ref: (1, Cout) f32]  optional 1x1 projection
    o_ref  : (1, H, W, Cout)     f32    block output
    h1_ref : (H+2, W+2, Cout)    f32    VMEM scratch (conv1 output + zero halo)
    """
    if has_down:
        wd_ref, bd_ref, o_ref, h1_ref = rest
    else:
        o_ref, h1_ref = rest

    _, hp, wp, cin = xp_ref.shape
    h, w = hp - 2, wp - 2
    cout = o_ref.shape[-1]

    xp = xp_ref[0]                                      # (H+2, W+2, Cin) bf16

    # ---- conv1: 9 shifted MXU dots (f32 accumulation) + folded BN1 + ReLU ----
    acc = jnp.zeros((h * w, cout), jnp.float32)
    for di in range(3):
        for dj in range(3):
            patch = xp[di:di + h, dj:dj + w, :].reshape(h * w, cin)
            acc = acc + jnp.dot(patch, w1_ref[3 * di + dj],
                                preferred_element_type=jnp.float32)
    h1 = jnp.maximum(acc * s1_ref[...] + b1_ref[...], 0.0)

    # Keep h1 resident in VMEM with a zero halo (conv2's padding=1 is then free).
    h1_ref[...] = jnp.zeros_like(h1_ref)
    h1_ref[1:1 + h, 1:1 + w, :] = h1.reshape(h, w, cout)

    # ---- conv2: 9 shifted MXU dots over the haloed scratch + folded BN2 ----
    acc = jnp.zeros((h * w, cout), jnp.float32)
    for di in range(3):
        for dj in range(3):
            patch = h1_ref[di:di + h, dj:dj + w, :].reshape(h * w, cout)
            acc = acc + jnp.dot(patch.astype(jnp.bfloat16), w2_ref[3 * di + dj],
                                preferred_element_type=jnp.float32)
    y = acc * s2_ref[...] + b2_ref[...]

    # ---- residual (identity or fused 1x1 projection) + final ReLU ----
    xin = xp[1:1 + h, 1:1 + w, :].reshape(h * w, cin)
    if has_down:
        res = jnp.dot(xin, wd_ref[...], preferred_element_type=jnp.float32) + bd_ref[...]
    else:
        res = xin.astype(jnp.float32)
    o_ref[...] = jnp.maximum(y + res, 0.0).reshape(1, h, w, cout)


# ------------------------------ wrapper --------------------------------------


def _fold_bn(conv_b, gamma, beta, mean, var, eps):
    """Fold conv bias + eval-mode BatchNorm into a per-channel (scale, bias)."""
    scale = gamma / jnp.sqrt(var + eps)
    bias = (conv_b - mean) * scale + beta
    return (scale.reshape(1, -1).astype(jnp.float32),
            bias.reshape(1, -1).astype(jnp.float32))


@functools.partial(jax.jit, static_argnames=("eps",))
def residual_block_2d(x, params, eps=1e-5):
    """x: (N, Cin, H, W) float32 (NCHW, like PyTorch).  Returns (N, Cout, H, W) f32."""
    n, cin, h, w = x.shape
    cout = params["conv1_w"].shape[0]
    hp, wp = h + 2, w + 2
    has_down = "down_w" in params

    # Layout plumbing (drops out entirely if the surrounding model stays NHWC).
    x_nhwc = jnp.transpose(x, (0, 2, 3, 1))
    x_pad = jnp.pad(x_nhwc, ((0, 0), (1, 1), (1, 1), (0, 0))).astype(jnp.bfloat16)

    # (Cout, Cin, 3, 3) -> (9, Cin, Cout); tap index k = 3*kh + kw matches the kernel loop.
    w1 = jnp.transpose(params["conv1_w"], (2, 3, 1, 0)).reshape(9, cin, cout).astype(jnp.bfloat16)
    w2 = jnp.transpose(params["conv2_w"], (2, 3, 1, 0)).reshape(9, cout, cout).astype(jnp.bfloat16)
    s1, b1 = _fold_bn(params["conv1_b"], params["bn1_gamma"], params["bn1_beta"],
                      params["bn1_mean"], params["bn1_var"], eps)
    s2, b2 = _fold_bn(params["conv2_b"], params["bn2_gamma"], params["bn2_beta"],
                      params["bn2_mean"], params["bn2_var"], eps)

    args = [x_pad, w1, s1, b1, w2, s2, b2]
    in_specs = [
        pl.BlockSpec((1, hp, wp, cin), lambda b: (b, 0, 0, 0)),   # per-image haloed input
        pl.BlockSpec((9, cin, cout), lambda b: (0, 0, 0)),        # grid-invariant weights
        pl.BlockSpec((1, cout), lambda b: (0, 0)),
        pl.BlockSpec((1, cout), lambda b: (0, 0)),
        pl.BlockSpec((9, cout, cout), lambda b: (0, 0, 0)),
        pl.BlockSpec((1, cout), lambda b: (0, 0)),
        pl.BlockSpec((1, cout), lambda b: (0, 0)),
    ]
    if has_down:
        wd = params["down_w"][:, :, 0, 0].T.astype(jnp.bfloat16)   # (Cin, Cout)
        bd = params["down_b"].reshape(1, cout).astype(jnp.float32)
        args += [wd, bd]
        in_specs += [
            pl.BlockSpec((cin, cout), lambda b: (0, 0)),
            pl.BlockSpec((1, cout), lambda b: (0, 0)),
        ]

    # VMEM budget: double-buffered per-image I/O blocks + weights + scratch +
    # headroom for the f32 accumulators.  Capped at 64 MiB so it is valid on v7x.
    est = (2 * hp * wp * cin * 2          # x_pad block (bf16, 2 buffers)
           + 2 * h * w * cout * 4         # output block (f32, 2 buffers)
           + 2 * 9 * cin * cout * 2       # conv1 weights
           + 2 * 9 * cout * cout * 2      # conv2 weights
           + 2 * cin * cout * 2           # 1x1 projection weights
           + hp * wp * cout * 4           # h1 scratch
           + 6 * h * w * cout * 4)        # in-kernel f32 intermediates
    vmem_limit = int(min(64 * 1024 * 1024, max(32 * 1024 * 1024, 2 * est)))

    out_nhwc = pl.pallas_call(
        functools.partial(_resblock_kernel, has_down=has_down),
        out_shape=jax.ShapeDtypeStruct((n, h, w, cout), jnp.float32),
        grid=(n,),
        in_specs=in_specs,
        out_specs=pl.BlockSpec((1, h, w, cout), lambda b: (b, 0, 0, 0)),
        scratch_shapes=[pltpu.VMEM((hp, wp, cout), jnp.float32)],
        compiler_params=pltpu.CompilerParams(
            dimension_semantics=("parallel",),
            vmem_limit_bytes=vmem_limit),
    )(*args)

    return jnp.transpose(out_nhwc, (0, 3, 1, 2))                   # back to NCHW


# ----------------------------- reference -------------------------------------


def _reference(x, params, eps=1e-5):
    def bn(y, g, b, m, v):
        return ((y - m[None, :, None, None]) / jnp.sqrt(v[None, :, None, None] + eps)
                * g[None, :, None, None] + b[None, :, None, None])

    def conv(y, wt, b, pad):
        out = jax.lax.conv_general_dilated(
            y, wt, window_strides=(1, 1), padding=((pad, pad), (pad, pad)),
            dimension_numbers=("NCHW", "OIHW", "NCHW"))
        return out + b[None, :, None, None]

    h = jax.nn.relu(bn(conv(x, params["conv1_w"], params["conv1_b"], 1),
                       params["bn1_gamma"], params["bn1_beta"],
                       params["bn1_mean"], params["bn1_var"]))
    h = bn(conv(h, params["conv2_w"], params["conv2_b"], 1),
           params["bn2_gamma"], params["bn2_beta"],
           params["bn2_mean"], params["bn2_var"])
    res = conv(x, params["down_w"], params["down_b"], 0) if "down_w" in params else x
    return jax.nn.relu(h + res)


def _make_params(key, cin, cout, with_down):
    ks = jax.random.split(key, 16)
    p = {
        "conv1_w": 0.2 * jax.random.normal(ks[0], (cout, cin, 3, 3), jnp.float32),
        "conv1_b": 0.1 * jax.random.normal(ks[1], (cout,), jnp.float32),
        "bn1_gamma": 1.0 + 0.1 * jax.random.normal(ks[2], (cout,), jnp.float32),
        "bn1_beta": 0.1 * jax.random.normal(ks[3], (cout,), jnp.float32),
        "bn1_mean": 0.1 * jax.random.normal(ks[4], (cout,), jnp.float32),
        "bn1_var": jax.random.uniform(ks[5], (cout,), jnp.float32, 0.5, 1.5),
        "conv2_w": 0.2 * jax.random.normal(ks[6], (cout, cout, 3, 3), jnp.float32),
        "conv2_b": 0.1 * jax.random.normal(ks[7], (cout,), jnp.float32),
        "bn2_gamma": 1.0 + 0.1 * jax.random.normal(ks[8], (cout,), jnp.float32),
        "bn2_beta": 0.1 * jax.random.normal(ks[9], (cout,), jnp.float32),
        "bn2_mean": 0.1 * jax.random.normal(ks[10], (cout,), jnp.float32),
        "bn2_var": jax.random.uniform(ks[11], (cout,), jnp.float32, 0.5, 1.5),
    }
    if with_down:
        p["down_w"] = 0.2 * jax.random.normal(ks[12], (cout, cin, 1, 1), jnp.float32)
        p["down_b"] = 0.1 * jax.random.normal(ks[13], (cout,), jnp.float32)
    return p


def _check(name, out, ref):
    # bf16 matmul operands vs. an f32 reference: allow a few % of the peak value.
    err = float(jnp.max(jnp.abs(out - ref)))
    peak = float(jnp.max(jnp.abs(ref)))
    assert err < 0.05 * peak + 0.05, f"{name}: max|err|={err} vs peak|ref|={peak}"


if __name__ == "__main__":
    key = jax.random.PRNGKey(0)
    kx, kp1, kp2 = jax.random.split(key, 3)

    # Case 1: in_channels != out_channels -> fused 1x1 downsample projection residual.
    n, cin, cout, hh, ww = 2, 4, 8, 16, 16
    x = jax.random.normal(kx, (n, cin, hh, ww), jnp.float32)
    params = _make_params(kp1, cin, cout, with_down=True)
    out = jax.block_until_ready(residual_block_2d(x, params))
    assert out.shape == (n, cout, hh, ww), out.shape
    _check("downsample", out, _reference(x, params))

    # Case 2: in_channels == out_channels -> identity residual.
    x2 = jax.random.normal(kx, (n, cout, hh, ww), jnp.float32)
    params2 = _make_params(kp2, cout, cout, with_down=False)
    out2 = jax.block_until_ready(residual_block_2d(x2, params2))
    assert out2.shape == (n, cout, hh, ww), out2.shape
    _check("identity", out2, _reference(x2, params2))

    print("KERNEL_OK")
</pallas_src>

<mosaic_0001>
module attributes {stable_mosaic.version = 11 : i64} {
  func.func @_resblock_kernel(%arg0: i32, %arg1: memref<1x18x18x4xbf16, #tpu.memory_space<vmem>>, %arg2: memref<9x4x8xbf16, #tpu.memory_space<vmem>>, %arg3: memref<1x8xf32, #tpu.memory_space<vmem>>, %arg4: memref<1x8xf32, #tpu.memory_space<vmem>>, %arg5: memref<9x8x8xbf16, #tpu.memory_space<vmem>>, %arg6: memref<1x8xf32, #tpu.memory_space<vmem>>, %arg7: memref<1x8xf32, #tpu.memory_space<vmem>>, %arg8: memref<4x8xbf16, #tpu.memory_space<vmem>>, %arg9: memref<1x8xf32, #tpu.memory_space<vmem>>, %arg10: memref<1x16x16x8xf32, #tpu.memory_space<vmem>>, %arg11: memref<18x18x8xf32, #tpu.memory_space<vmem>>) attributes {dimension_semantics = [#tpu.dimension_semantics<parallel>], iteration_bounds = array<i64: 2>, scalar_prefetch = 0 : i64, scratch_operands = 1 : i64, tpu.core_type = #tpu.core_type<tc>, window_params = [{transform_indices = @transform_0, window_bounds = array<i64: 1, 18, 18, 4>}, {pipeline_mode = #tpu.pipeline_mode<synchronous>, transform_indices = @transform_1, window_bounds = array<i64: 9, 4, 8>}, {pipeline_mode = #tpu.pipeline_mode<synchronous>, transform_indices = @transform_2, window_bounds = array<i64: 1, 8>}, {pipeline_mode = #tpu.pipeline_mode<synchronous>, transform_indices = @transform_3, window_bounds = array<i64: 1, 8>}, {pipeline_mode = #tpu.pipeline_mode<synchronous>, transform_indices = @transform_4, window_bounds = array<i64: 9, 8, 8>}, {pipeline_mode = #tpu.pipeline_mode<synchronous>, transform_indices = @transform_5, window_bounds = array<i64: 1, 8>}, {pipeline_mode = #tpu.pipeline_mode<synchronous>, transform_indices = @transform_6, window_bounds = array<i64: 1, 8>}, {pipeline_mode = #tpu.pipeline_mode<synchronous>, transform_indices = @transform_7, window_bounds = array<i64: 4, 8>}, {pipeline_mode = #tpu.pipeline_mode<synchronous>, transform_indices = @transform_8, window_bounds = array<i64: 1, 8>}, {transform_indices = @transform_9, window_bounds = array<i64: 1, 16, 16, 8>}]} {
    %c0 = arith.constant 0 : index
    %c0_0 = arith.constant 0 : index
    %c0_1 = arith.constant 0 : index
    %c0_2 = arith.constant 0 : index
    %0 = vector.load %arg1[%c0, %c0_0, %c0_1, %c0_2] : memref<1x18x18x4xbf16, #tpu.memory_space<vmem>>, vector<1x18x18x4xbf16>
    %1 = vector.shape_cast %0 : vector<1x18x18x4xbf16> to vector<18x18x4xbf16>
    %cst = arith.constant 0.000000e+00 : f32
    %2 = vector.broadcast %cst : f32 to vector<256x8xf32>
    %3 = vector.extract_strided_slice %1 {offsets = [0, 0, 0], sizes = [16, 16, 4], strides = [1, 1, 1]} : vector<18x18x4xbf16> to vector<16x16x4xbf16>
    %4 = vector.shape_cast %3 : vector<16x16x4xbf16> to vector<256x4xbf16>
    %c0_3 = arith.constant 0 : index
    %c0_4 = arith.constant 0 : index
    %c0_5 = arith.constant 0 : index
    %5 = vector.load %arg2[%c0_3, %c0_4, %c0_5] : memref<9x4x8xbf16, #tpu.memory_space<vmem>>, vector<1x4x8xbf16>
    %6 = vector.shape_cast %5 : vector<1x4x8xbf16> to vector<4x8xbf16>
    %cst_6 = arith.constant dense<0.000000e+00> : vector<256x8xf32>
    %7 = tpu.matmul %4, %6, %cst_6 {dimension_numbers = #tpu.dot_dimension_numbers<[1], [0], [0], [1], [0, 0, 1, 1], [], []>} : vector<256x4xbf16>, vector<4x8xbf16>, vector<256x8xf32> -> vector<256x8xf32>
    %8 = arith.addf %2, %7 : vector<256x8xf32>
    %9 = vector.extract_strided_slice %1 {offsets = [0, 1, 0], sizes = [16, 16, 4], strides = [1, 1, 1]} : vector<18x18x4xbf16> to vector<16x16x4xbf16>
    %10 = vector.shape_cast %9 : vector<16x16x4xbf16> to vector<256x4xbf16>
    %c1 = arith.constant 1 : index
    %c0_7 = arith.constant 0 : index
    %c0_8 = arith.constant 0 : index
    %11 = vector.load %arg2[%c1, %c0_7, %c0_8] : memref<9x4x8xbf16, #tpu.memory_space<vmem>>, vector<1x4x8xbf16>
    %12 = vector.shape_cast %11 : vector<1x4x8xbf16> to vector<4x8xbf16>
    %cst_9 = arith.constant dense<0.000000e+00> : vector<256x8xf32>
    %13 = tpu.matmul %10, %12, %cst_9 {dimension_numbers = #tpu.dot_dimension_numbers<[1], [0], [0], [1], [0, 0, 1, 1], [], []>} : vector<256x4xbf16>, vector<4x8xbf16>, vector<256x8xf32> -> vector<256x8xf32>
    %14 = arith.addf %8, %13 : vector<256x8xf32>
    %15 = vector.extract_strided_slice %1 {offsets = [0, 2, 0], sizes = [16, 16, 4], strides = [1, 1, 1]} : vector<18x18x4xbf16> to vector<16x16x4xbf16>
    %16 = vector.shape_cast %15 : vector<16x16x4xbf16> to vector<256x4xbf16>
    %c2 = arith.constant 2 : index
    %c0_10 = arith.constant 0 : index
    %c0_11 = arith.constant 0 : index
    %17 = vector.load %arg2[%c2, %c0_10, %c0_11] : memref<9x4x8xbf16, #tpu.memory_space<vmem>>, vector<1x4x8xbf16>
    %18 = vector.shape_cast %17 : vector<1x4x8xbf16> to vector<4x8xbf16>
    %cst_12 = arith.constant dense<0.000000e+00> : vector<256x8xf32>
    %19 = tpu.matmul %16, %18, %cst_12 {dimension_numbers = #tpu.dot_dimension_numbers<[1], [0], [0], [1], [0, 0, 1, 1], [], []>} : vector<256x4xbf16>, vector<4x8xbf16>, vector<256x8xf32> -> vector<256x8xf32>
    %20 = arith.addf %14, %19 : vector<256x8xf32>
    %21 = vector.extract_strided_slice %1 {offsets = [1, 0, 0], sizes = [16, 16, 4], strides = [1, 1, 1]} : vector<18x18x4xbf16> to vector<16x16x4xbf16>
    %22 = vector.shape_cast %21 : vector<16x16x4xbf16> to vector<256x4xbf16>
    %c3 = arith.constant 3 : index
    %c0_13 = arith.constant 0 : index
    %c0_14 = arith.constant 0 : index
    %23 = vector.load %arg2[%c3, %c0_13, %c0_14] : memref<9x4x8xbf16, #tpu.memory_space<vmem>>, vector<1x4x8xbf16>
    %24 = vector.shape_cast %23 : vector<1x4x8xbf16> to vector<4x8xbf16>
    %cst_15 = arith.constant dense<0.000000e+00> : vector<256x8xf32>
    %25 = tpu.matmul %22, %24, %cst_15 {dimension_numbers = #tpu.dot_dimension_numbers<[1], [0], [0], [1], [0, 0, 1, 1], [], []>} : vector<256x4xbf16>, vector<4x8xbf16>, vector<256x8xf32> -> vector<256x8xf32>
    %26 = arith.addf %20, %25 : vector<256x8xf32>
    %27 = vector.extract_strided_slice %1 {offsets = [1, 1, 0], sizes = [16, 16, 4], strides = [1, 1, 1]} : vector<18x18x4xbf16> to vector<16x16x4xbf16>
    %28 = vector.shape_cast %27 : vector<16x16x4xbf16> to vector<256x4xbf16>
    %c4 = arith.constant 4 : index
    %c0_16 = arith.constant 0 : index
    %c0_17 = arith.constant 0 : index
    %29 = vector.load %arg2[%c4, %c0_16, %c0_17] : memref<9x4x8xbf16, #tpu.memory_space<vmem>>, vector<1x4x8xbf16>
    %30 = vector.shape_cast %29 : vector<1x4x8xbf16> to vector<4x8xbf16>
    %cst_18 = arith.constant dense<0.000000e+00> : vector<256x8xf32>
    %31 = tpu.matmul %28, %30, %cst_18 {dimension_numbers = #tpu.dot_dimension_numbers<[1], [0], [0], [1], [0, 0, 1, 1], [], []>} : vector<256x4xbf16>, vector<4x8xbf16>, vector<256x8xf32> -> vector<256x8xf32>
    %32 = arith.addf %26, %31 : vector<256x8xf32>
    %33 = vector.extract_strided_slice %1 {offsets = [1, 2, 0], sizes = [16, 16, 4], strides = [1, 1, 1]} : vector<18x18x4xbf16> to vector<16x16x4xbf16>
    %34 = vector.shape_cast %33 : vector<16x16x4xbf16> to vector<256x4xbf16>
    %c5 = arith.constant 5 : index
    %c0_19 = arith.constant 0 : index
    %c0_20 = arith.constant 0 : index
    %35 = vector.load %arg2[%c5, %c0_19, %c0_20] : memref<9x4x8xbf16, #tpu.memory_space<vmem>>, vector<1x4x8xbf16>
    %36 = vector.shape_cast %35 : vector<1x4x8xbf16> to vector<4x8xbf16>
    %cst_21 = arith.constant dense<0.000000e+00> : vector<256x8xf32>
    %37 = tpu.matmul %34, %36, %cst_21 {dimension_numbers = #tpu.dot_dimension_numbers<[1], [0], [0], [1], [0, 0, 1, 1], [], []>} : vector<256x4xbf16>, vector<4x8xbf16>, vector<256x8xf32> -> vector<256x8xf32>
    %38 = arith.addf %32, %37 : vector<256x8xf32>
    %39 = vector.extract_strided_slice %1 {offsets = [2, 0, 0], sizes = [16, 16, 4], strides = [1, 1, 1]} : vector<18x18x4xbf16> to vector<16x16x4xbf16>
    %40 = vector.shape_cast %39 : vector<16x16x4xbf16> to vector<256x4xbf16>
    %c6 = arith.constant 6 : index
    %c0_22 = arith.constant 0 : index
    %c0_23 = arith.constant 0 : index
    %41 = vector.load %arg2[%c6, %c0_22, %c0_23] : memref<9x4x8xbf16, #tpu.memory_space<vmem>>, vector<1x4x8xbf16>
    %42 = vector.shape_cast %41 : vector<1x4x8xbf16> to vector<4x8xbf16>
    %cst_24 = arith.constant dense<0.000000e+00> : vector<256x8xf32>
    %43 = tpu.matmul %40, %42, %cst_24 {dimension_numbers = #tpu.dot_dimension_numbers<[1], [0], [0], [1], [0, 0, 1, 1], [], []>} : vector<256x4xbf16>, vector<4x8xbf16>, vector<256x8xf32> -> vector<256x8xf32>
    %44 = arith.addf %38, %43 : vector<256x8xf32>
    %45 = vector.extract_strided_slice %1 {offsets = [2, 1, 0], sizes = [16, 16, 4], strides = [1, 1, 1]} : vector<18x18x4xbf16> to vector<16x16x4xbf16>
    %46 = vector.shape_cast %45 : vector<16x16x4xbf16> to vector<256x4xbf16>
    %c7 = arith.constant 7 : index
    %c0_25 = arith.constant 0 : index
    %c0_26 = arith.constant 0 : index
    %47 = vector.load %arg2[%c7, %c0_25, %c0_26] : memref<9x4x8xbf16, #tpu.memory_space<vmem>>, vector<1x4x8xbf16>
    %48 = vector.shape_cast %47 : vector<1x4x8xbf16> to vector<4x8xbf16>
    %cst_27 = arith.constant dense<0.000000e+00> : vector<256x8xf32>
    %49 = tpu.matmul %46, %48, %cst_27 {dimension_numbers = #tpu.dot_dimension_numbers<[1], [0], [0], [1], [0, 0, 1, 1], [], []>} : vector<256x4xbf16>, vector<4x8xbf16>, vector<256x8xf32> -> vector<256x8xf32>
    %50 = arith.addf %44, %49 : vector<256x8xf32>
    %51 = vector.extract_strided_slice %1 {offsets = [2, 2, 0], sizes = [16, 16, 4], strides = [1, 1, 1]} : vector<18x18x4xbf16> to vector<16x16x4xbf16>
    %52 = vector.shape_cast %51 : vector<16x16x4xbf16> to vector<256x4xbf16>
    %c8 = arith.constant 8 : index
    %c0_28 = arith.constant 0 : index
    %c0_29 = arith.constant 0 : index
    %53 = vector.load %arg2[%c8, %c0_28, %c0_29] : memref<9x4x8xbf16, #tpu.memory_space<vmem>>, vector<1x4x8xbf16>
    %54 = vector.shape_cast %53 : vector<1x4x8xbf16> to vector<4x8xbf16>
    %cst_30 = arith.constant dense<0.000000e+00> : vector<256x8xf32>
    %55 = tpu.matmul %52, %54, %cst_30 {dimension_numbers = #tpu.dot_dimension_numbers<[1], [0], [0], [1], [0, 0, 1, 1], [], []>} : vector<256x4xbf16>, vector<4x8xbf16>, vector<256x8xf32> -> vector<256x8xf32>
    %56 = arith.addf %50, %55 : vector<256x8xf32>
    %c0_31 = arith.constant 0 : index
    %c0_32 = arith.constant 0 : index
    %57 = vector.load %arg3[%c0_31, %c0_32] : memref<1x8xf32, #tpu.memory_space<vmem>>, vector<1x8xf32>
    %58 = vector.broadcast %57 : vector<1x8xf32> to vector<256x8xf32>
    %59 = arith.mulf %56, %58 : vector<256x8xf32>
    %c0_33 = arith.constant 0 : index
    %c0_34 = arith.constant 0 : index
    %60 = vector.load %arg4[%c0_33, %c0_34] : memref<1x8xf32, #tpu.memory_space<vmem>>, vector<1x8xf32>
    %61 = vector.broadcast %60 : vector<1x8xf32> to vector<256x8xf32>
    %62 = arith.addf %59, %61 : vector<256x8xf32>
    %cst_35 = arith.constant 0.000000e+00 : f32
    %63 = vector.broadcast %cst_35 : f32 to vector<256x8xf32>
    %64 = arith.maximumf %62, %63 : vector<256x8xf32>
    %cst_36 = arith.constant 0.000000e+00 : f32
    %65 = vector.broadcast %cst_36 : f32 to vector<18x18x8xf32>
    %c0_37 = arith.constant 0 : index
    %c0_38 = arith.constant 0 : index
    %c0_39 = arith.constant 0 : index
    %66 = vector.load %arg11[%c0_37, %c0_38, %c0_39] : memref<18x18x8xf32, #tpu.memory_space<vmem>>, vector<18x18x8xf32>
    tpu.vector_store %arg11[%c0_37, %c0_38, %c0_39], %65 {strides = array<i32>} : memref<18x18x8xf32, #tpu.memory_space<vmem>>, vector<18x18x8xf32>,
    %67 = vector.shape_cast %64 : vector<256x8xf32> to vector<16x16x8xf32>
    %c1_40 = arith.constant 1 : index
    %c1_41 = arith.constant 1 : index
    %c0_42 = arith.constant 0 : index
    %68 = vector.load %arg11[%c1_40, %c1_41, %c0_42] : memref<18x18x8xf32, #tpu.memory_space<vmem>>, vector<16x16x8xf32>
    tpu.vector_store %arg11[%c1_40, %c1_41, %c0_42], %67 {strides = array<i32>} : memref<18x18x8xf32, #tpu.memory_space<vmem>>, vector<16x16x8xf32>,
    %cst_43 = arith.constant 0.000000e+00 : f32
    %69 = vector.broadcast %cst_43 : f32 to vector<256x8xf32>
    %c0_44 = arith.constant 0 : index
    %c0_45 = arith.constant 0 : index
    %c0_46 = arith.constant 0 : index
    %70 = vector.load %arg11[%c0_44, %c0_45, %c0_46] : memref<18x18x8xf32, #tpu.memory_space<vmem>>, vector<16x16x8xf32>
    %71 = vector.shape_cast %70 : vector<16x16x8xf32> to vector<256x8xf32>
    %72 = arith.truncf %71 : vector<256x8xf32> to vector<256x8xbf16>
    %c0_47 = arith.constant 0 : index
    %c0_48 = arith.constant 0 : index
    %c0_49 = arith.constant 0 : index
    %73 = vector.load %arg5[%c0_47, %c0_48, %c0_49] : memref<9x8x8xbf16, #tpu.memory_space<vmem>>, vector<1x8x8xbf16>
    %74 = vector.shape_cast %73 : vector<1x8x8xbf16> to vector<8x8xbf16>
    %cst_50 = arith.constant dense<0.000000e+00> : vector<256x8xf32>
    %75 = tpu.matmul %72, %74, %cst_50 {dimension_numbers = #tpu.dot_dimension_numbers<[1], [0], [0], [1], [0, 0, 1, 1], [], []>} : vector<256x8xbf16>, vector<8x8xbf16>, vector<256x8xf32> -> vector<256x8xf32>
    %76 = arith.addf %69, %75 : vector<256x8xf32>
    %c0_51 = arith.constant 0 : index
    %c1_52 = arith.constant 1 : index
    %c0_53 = arith.constant 0 : index
    %77 = vector.load %arg11[%c0_51, %c1_52, %c0_53] : memref<18x18x8xf32, #tpu.memory_space<vmem>>, vector<16x16x8xf32>
    %78 = vector.shape_cast %77 : vector<16x16x8xf32> to vector<256x8xf32>
    %79 = arith.truncf %78 : vector<256x8xf32> to vector<256x8xbf16>
    %c1_54 = arith.constant 1 : index
    %c0_55 = arith.constant 0 : index
    %c0_56 = arith.constant 0 : index
    %80 = vector.load %arg5[%c1_54, %c0_55, %c0_56] : memref<9x8x8xbf16, #tpu.memory_space<vmem>>, vector<1x8x8xbf16>
    %81 = vector.shape_cast %80 : vector<1x8x8xbf16> to vector<8x8xbf16>
    %cst_57 = arith.constant dense<0.000000e+00> : vector<256x8xf32>
    %82 = tpu.matmul %79, %81, %cst_57 {dimension_numbers = #tpu.dot_dimension_numbers<[1], [0], [0], [1], [0, 0, 1, 1], [], []>} : vector<256x8xbf16>, vector<8x8xbf16>, vector<256x8xf32> -> vector<256x8xf32>
    %83 = arith.addf %76, %82 : vector<256x8xf32>
    %c0_58 = arith.constant 0 : index
    %c2_59 = arith.constant 2 : index
    %c0_60 = arith.constant 0 : index
    %84 = vector.load %arg11[%c0_58, %c2_59, %c0_60] : memref<18x18x8xf32, #tpu.memory_space<vmem>>, vector<16x16x8xf32>
    %85 = vector.shape_cast %84 : vector<16x16x8xf32> to vector<256x8xf32>
    %86 = arith.truncf %85 : vector<256x8xf32> to vector<256x8xbf16>
    %c2_61 = arith.constant 2 : index
    %c0_62 = arith.constant 0 : index
    %c0_63 = arith.constant 0 : index
    %87 = vector.load %arg5[%c2_61, %c0_62, %c0_63] : memref<9x8x8xbf16, #tpu.memory_space<vmem>>, vector<1x8x8xbf16>
    %88 = vector.shape_cast %87 : vector<1x8x8xbf16> to vector<8x8xbf16>
    %cst_64 = arith.constant dense<0.000000e+00> : vector<256x8xf32>
    %89 = tpu.matmul %86, %88, %cst_64 {dimension_numbers = #tpu.dot_dimension_numbers<[1], [0], [0], [1], [0, 0, 1, 1], [], []>} : vector<256x8xbf16>, vector<8x8xbf16>, vector<256x8xf32> -> vector<256x8xf32>
    %90 = arith.addf %83, %89 : vector<256x8xf32>
    %c1_65 = arith.constant 1 : index
    %c0_66 = arith.constant 0 : index
    %c0_67 = arith.constant 0 : index
    %91 = vector.load %arg11[%c1_65, %c0_66, %c0_67] : memref<18x18x8xf32, #tpu.memory_space<vmem>>, vector<16x16x8xf32>
    %92 = vector.shape_cast %91 : vector<16x16x8xf32> to vector<256x8xf32>
    %93 = arith.truncf %92 : vector<256x8xf32> to vector<256x8xbf16>
    %c3_68 = arith.constant 3 : index
    %c0_69 = arith.constant 0 : index
    %c0_70 = arith.constant 0 : index
    %94 = vector.load %arg5[%c3_68, %c0_69, %c0_70] : memref<9x8x8xbf16, #tpu.memory_space<vmem>>, vector<1x8x8xbf16>
    %95 = vector.shape_cast %94 : vector<1x8x8xbf16> to vector<8x8xbf16>
    %cst_71 = arith.constant dense<0.000000e+00> : vector<256x8xf32>
    %96 = tpu.matmul %93, %95, %cst_71 {dimension_numbers = #tpu.dot_dimension_numbers<[1], [0], [0], [1], [0, 0, 1, 1], [], []>} : vector<256x8xbf16>, vector<8x8xbf16>, vector<256x8xf32> -> vector<256x8xf32>
    %97 = arith.addf %90, %96 : vector<256x8xf32>
    %c1_72 = arith.constant 1 : index
    %c1_73 = arith.constant 1 : index
    %c0_74 = arith.constant 0 : index
    %98 = vector.load %arg11[%c1_72, %c1_73, %c0_74] : memref<18x18x8xf32, #tpu.memory_space<vmem>>, vector<16x16x8xf32>
    %99 = vector.shape_cast %98 : vector<16x16x8xf32> to vector<256x8xf32>
    %100 = arith.truncf %99 : vector<256x8xf32> to vector<256x8xbf16>
    %c4_75 = arith.constant 4 : index
    %c0_76 = arith.constant 0 : index
    %c0_77 = arith.constant 0 : index
    %101 = vector.load %arg5[%c4_75, %c0_76, %c0_77] : memref<9x8x8xbf16, #tpu.memory_space<vmem>>, vector<1x8x8xbf16>
    %102 = vector.shape_cast %101 : vector<1x8x8xbf16> to vector<8x8xbf16>
    %cst_78 = arith.constant dense<0.000000e+00> : vector<256x8xf32>
    %103 = tpu.matmul %100, %102, %cst_78 {dimension_numbers = #tpu.dot_dimension_numbers<[1], [0], [0], [1], [0, 0, 1, 1], [], []>} : vector<256x8xbf16>, vector<8x8xbf16>, vector<256x8xf32> -> vector<256x8xf32>
    %104 = arith.addf %97, %103 : vector<256x8xf32>
    %c1_79 = arith.constant 1 : index
    %c2_80 = arith.constant 2 : index
    %c0_81 = arith.constant 0 : index
    %105 = vector.load %arg11[%c1_79, %c2_80, %c0_81] : memref<18x18x8xf32, #tpu.memory_space<vmem>>, vector<16x16x8xf32>
    %106 = vector.shape_cast %105 : vector<16x16x8xf32> to vector<256x8xf32>
    %107 = arith.truncf %106 : vector<256x8xf32> to vector<256x8xbf16>
    %c5_82 = arith.constant 5 : index
    %c0_83 = arith.constant 0 : index
    %c0_84 = arith.constant 0 : index
    %108 = vector.load %arg5[%c5_82, %c0_83, %c0_84] : memref<9x8x8xbf16, #tpu.memory_space<vmem>>, vector<1x8x8xbf16>
    %109 = vector.shape_cast %108 : vector<1x8x8xbf16> to vector<8x8xbf16>
    %cst_85 = arith.constant dense<0.000000e+00> : vector<256x8xf32>
    %110 = tpu.matmul %107, %109, %cst_85 {dimension_numbers = #tpu.dot_dimension_numbers<[1], [0], [0], [1], [0, 0, 1, 1], [], []>} : vector<256x8xbf16>, vector<8x8xbf16>, vector<256x8xf32> -> vector<256x8xf32>
    %111 = arith.addf %104, %110 : vector<256x8xf32>
    %c2_86 = arith.constant 2 : index
    %c0_87 = arith.constant 0 : index
    %c0_88 = arith.constant 0 : index
    %112 = vector.load %arg11[%c2_86, %c0_87, %c0_88] : memref<18x18x8xf32, #tpu.memory_space<vmem>>, vector<16x16x8xf32>
    %113 = vector.shape_cast %112 : vector<16x16x8xf32> to vector<256x8xf32>
    %114 = arith.truncf %113 : vector<256x8xf32> to vector<256x8xbf16>
    %c6_89 = arith.constant 6 : index
    %c0_90 = arith.constant 0 : index
    %c0_91 = arith.constant 0 : index
    %115 = vector.load %arg5[%c6_89, %c0_90, %c0_91] : memref<9x8x8xbf16, #tpu.memory_space<vmem>>, vector<1x8x8xbf16>
    %116 = vector.shape_cast %115 : vector<1x8x8xbf16> to vector<8x8xbf16>
    %cst_92 = arith.constant dense<0.000000e+00> : vector<256x8xf32>
    %117 = tpu.matmul %114, %116, %cst_92 {dimension_numbers = #tpu.dot_dimension_numbers<[1], [0], [0], [1], [0, 0, 1, 1], [], []>} : vector<256x8xbf16>, vector<8x8xbf16>, vector<256x8xf32> -> vector<256x8xf32>
    %118 = arith.addf %111, %117 : vector<256x8xf32>
    %c2_93 = arith.constant 2 : index
    %c1_94 = arith.constant 1 : index
    %c0_95 = arith.constant 0 : index
    %119 = vector.load %arg11[%c2_93, %c1_94, %c0_95] : memref<18x18x8xf32, #tpu.memory_space<vmem>>, vector<16x16x8xf32>
    %120 = vector.shape_cast %119 : vector<16x16x8xf32> to vector<256x8xf32>
    %121 = arith.truncf %120 : vector<256x8xf32> to vector<256x8xbf16>
    %c7_96 = arith.constant 7 : index
    %c0_97 = arith.constant 0 : index
    %c0_98 = arith.constant 0 : index
    %122 = vector.load %arg5[%c7_96, %c0_97, %c0_98] : memref<9x8x8xbf16, #tpu.memory_space<vmem>>, vector<1x8x8xbf16>
    %123 = vector.shape_cast %122 : vector<1x8x8xbf16> to vector<8x8xbf16>
    %cst_99 = arith.constant dense<0.000000e+00> : vector<256x8xf32>
    %124 = tpu.matmul %121, %123, %cst_99 {dimension_numbers = #tpu.dot_dimension_numbers<[1], [0], [0], [1], [0, 0, 1, 1], [], []>} : vector<256x8xbf16>, vector<8x8xbf16>, vector<256x8xf32> -> vector<256x8xf32>
    %125 = arith.addf %118, %124 : vector<256x8xf32>
    %c2_100 = arith.constant 2 : index
    %c2_101 = arith.constant 2 : index
    %c0_102 = arith.constant 0 : index
    %126 = vector.load %arg11[%c2_100, %c2_101, %c0_102] : memref<18x18x8xf32, #tpu.memory_space<vmem>>, vector<16x16x8xf32>
    %127 = vector.shape_cast %126 : vector<16x16x8xf32> to vector<256x8xf32>
    %128 = arith.truncf %127 : vector<256x8xf32> to vector<256x8xbf16>
    %c8_103 = arith.constant 8 : index
    %c0_104 = arith.constant 0 : index
    %c0_105 = arith.constant 0 : index
    %129 = vector.load %arg5[%c8_103, %c0_104, %c0_105] : memref<9x8x8xbf16, #tpu.memory_space<vmem>>, vector<1x8x8xbf16>
    %130 = vector.shape_cast %129 : vector<1x8x8xbf16> to vector<8x8xbf16>
    %cst_106 = arith.constant dense<0.000000e+00> : vector<256x8xf32>
    %131 = tpu.matmul %128, %130, %cst_106 {dimension_numbers = #tpu.dot_dimension_numbers<[1], [0], [0], [1], [0, 0, 1, 1], [], []>} : vector<256x8xbf16>, vector<8x8xbf16>, vector<256x8xf32> -> vector<256x8xf32>
    %132 = arith.addf %125, %131 : vector<256x8xf32>
    %c0_107 = arith.constant 0 : index
    %c0_108 = arith.constant 0 : index
    %133 = vector.load %arg6[%c0_107, %c0_108] : memref<1x8xf32, #tpu.memory_space<vmem>>, vector<1x8xf32>
    %134 = vector.broadcast %133 : vector<1x8xf32> to vector<256x8xf32>
    %135 = arith.mulf %132, %134 : vector<256x8xf32>
    %c0_109 = arith.constant 0 : index
    %c0_110 = arith.constant 0 : index
    %136 = vector.load %arg7[%c0_109, %c0_110] : memref<1x8xf32, #tpu.memory_space<vmem>>, vector<1x8xf32>
    %137 = vector.broadcast %136 : vector<1x8xf32> to vector<256x8xf32>
    %138 = arith.addf %135, %137 : vector<256x8xf32>
    %139 = vector.extract_strided_slice %1 {offsets = [1, 1, 0], sizes = [16, 16, 4], strides = [1, 1, 1]} : vector<18x18x4xbf16> to vector<16x16x4xbf16>
    %140 = vector.shape_cast %139 : vector<16x16x4xbf16> to vector<256x4xbf16>
    %c0_111 = arith.constant 0 : index
    %c0_112 = arith.constant 0 : index
    %141 = vector.load %arg8[%c0_111, %c0_112] : memref<4x8xbf16, #tpu.memory_space<vmem>>, vector<4x8xbf16>
    %cst_113 = arith.constant dense<0.000000e+00> : vector<256x8xf32>
    %142 = tpu.matmul %140, %141, %cst_113 {dimension_numbers = #tpu.dot_dimension_numbers<[1], [0], [0], [1], [0, 0, 1, 1], [], []>} : vector<256x4xbf16>, vector<4x8xbf16>, vector<256x8xf32> -> vector<256x8xf32>
    %c0_114 = arith.constant 0 : index
    %c0_115 = arith.constant 0 : index
    %143 = vector.load %arg9[%c0_114, %c0_115] : memref<1x8xf32, #tpu.memory_space<vmem>>, vector<1x8xf32>
    %144 = vector.broadcast %143 : vector<1x8xf32> to vector<256x8xf32>
    %145 = arith.addf %142, %144 : vector<256x8xf32>
    %146 = arith.addf %138, %145 : vector<256x8xf32>
    %cst_116 = arith.constant 0.000000e+00 : f32
    %147 = vector.broadcast %cst_116 : f32 to vector<256x8xf32>
    %148 = arith.maximumf %146, %147 : vector<256x8xf32>
    %149 = vector.shape_cast %148 : vector<256x8xf32> to vector<1x16x16x8xf32>
    %c0_117 = arith.constant 0 : index
    %c0_118 = arith.constant 0 : index
    %c0_119 = arith.constant 0 : index
    %c0_120 = arith.constant 0 : index
    %150 = vector.load %arg10[%c0_117, %c0_118, %c0_119, %c0_120] : memref<1x16x16x8xf32, #tpu.memory_space<vmem>>, vector<1x16x16x8xf32>
    tpu.vector_store %arg10[%c0_117, %c0_118, %c0_119, %c0_120], %149 {strides = array<i32>} : memref<1x16x16x8xf32, #tpu.memory_space<vmem>>, vector<1x16x16x8xf32>,
    return
  }
  func.func @transform_0(%arg0: i32) -> (i32, i32, i32, i32) {
    %c0_i32 = arith.constant 0 : i32
    %c0_i32_0 = arith.constant 0 : i32
    %c0_i32_1 = arith.constant 0 : i32
    %c0_i32_2 = arith.constant 0 : i32
    return %arg0, %c0_i32, %c0_i32_0, %c0_i32_1 : i32, i32, i32, i32
  }
  func.func @transform_1(%arg0: i32) -> (i32, i32, i32) {
    %c0_i32 = arith.constant 0 : i32
    %c0_i32_0 = arith.constant 0 : i32
    %c0_i32_1 = arith.constant 0 : i32
    %c0_i32_2 = arith.constant 0 : i32
    return %c0_i32, %c0_i32_0, %c0_i32_1 : i32, i32, i32
  }
  func.func @transform_2(%arg0: i32) -> (i32, i32) {
    %c0_i32 = arith.constant 0 : i32
    %c0_i32_0 = arith.constant 0 : i32
    %c0_i32_1 = arith.constant 0 : i32
    return %c0_i32, %c0_i32_0 : i32, i32
  }
  func.func @transform_3(%arg0: i32) -> (i32, i32) {
    %c0_i32 = arith.constant 0 : i32
    %c0_i32_0 = arith.constant 0 : i32
    %c0_i32_1 = arith.constant 0 : i32
    return %c0_i32, %c0_i32_0 : i32, i32
  }
  func.func @transform_4(%arg0: i32) -> (i32, i32, i32) {
    %c0_i32 = arith.constant 0 : i32
    %c0_i32_0 = arith.constant 0 : i32
    %c0_i32_1 = arith.constant 0 : i32
    %c0_i32_2 = arith.constant 0 : i32
    return %c0_i32, %c0_i32_0, %c0_i32_1 : i32, i32, i32
  }
  func.func @transform_5(%arg0: i32) -> (i32, i32) {
    %c0_i32 = arith.constant 0 : i32
    %c0_i32_0 = arith.constant 0 : i32
    %c0_i32_1 = arith.constant 0 : i32
    return %c0_i32, %c0_i32_0 : i32, i32
  }
  func.func @transform_6(%arg0: i32) -> (i32, i32) {
    %c0_i32 = arith.constant 0 : i32
    %c0_i32_0 = arith.constant 0 : i32
    %c0_i32_1 = arith.constant 0 : i32
    return %c0_i32, %c0_i32_0 : i32, i32
  }
  func.func @transform_7(%arg0: i32) -> (i32, i32) {
    %c0_i32 = arith.constant 0 : i32
    %c0_i32_0 = arith.constant 0 : i32
    %c0_i32_1 = arith.constant 0 : i32
    return %c0_i32, %c0_i32_0 : i32, i32
  }
  func.func @transform_8(%arg0: i32) -> (i32, i32) {
    %c0_i32 = arith.constant 0 : i32
    %c0_i32_0 = arith.constant 0 : i32
    %c0_i32_1 = arith.constant 0 : i32
    return %c0_i32, %c0_i32_0 : i32, i32
  }
  func.func @transform_9(%arg0: i32) -> (i32, i32, i32, i32) {
    %c0_i32 = arith.constant 0 : i32
    %c0_i32_0 = arith.constant 0 : i32
    %c0_i32_1 = arith.constant 0 : i32
    %c0_i32_2 = arith.constant 0 : i32
    return %arg0, %c0_i32, %c0_i32_0, %c0_i32_1 : i32, i32, i32, i32
  }
}

</mosaic_0001>

<llo_original>
// kernel: residual_block_2d.1
$region0: #{residual_block_2d.1}
  #allocation0 [shape = 'u32[]', space=smem, size = 0x4, offset = 0x4, fixed_abs, tag = 'smem constant byte address 0x4 - core index']
  #allocation1 [shape = 'u32[144,128]{1,0:T(1,128)}', space=vmem, size = 0x12000, scoped, tag = 'internal scratch']
  #allocation2 [shape = 'f32[18,18,8]{2,1,0:T(8,128)}', space=vmem, size = 0x36000, scoped, tag = 'scratch operand']
  %s0 = inlined_call_operand.vmem [shape: bf16[2,18,18,4], index: 0, kind: input, shape index: {}]
  %s1 = inlined_call_operand.vmem [shape: bf16[9,4,8], index: 1, kind: input, shape index: {}]
  %s2 = inlined_call_operand.vmem [shape: f32[1,8], index: 2, kind: input, shape index: {}]
  %s3 = inlined_call_operand.vmem [shape: f32[1,8], index: 3, kind: input, shape index: {}]
  %s4 = inlined_call_operand.vmem [shape: bf16[9,8,8], index: 4, kind: input, shape index: {}]
  %s5 = inlined_call_operand.vmem [shape: f32[1,8], index: 5, kind: input, shape index: {}]
  %s6 = inlined_call_operand.vmem [shape: f32[1,8], index: 6, kind: input, shape index: {}]
  %s7 = inlined_call_operand.vmem [shape: bf16[4,8], index: 7, kind: input, shape index: {}]
  %s8 = inlined_call_operand.vmem [shape: f32[1,8], index: 8, kind: input, shape index: {}]
  %s9 = inlined_call_operand.vmem [shape: f32[2,16,16,8], index: 9, kind: output, shape index: {}]
  %s10 = sld [smem:[#allocation0]]
  $region69: #{residual_block_2d.1} parent=0
    _
  %s12 = ssub.s32 1, %s10
  %s13 = scalar_select 0, %s12, %s10
  loop: start=0, step=1, limit=4
  $region2: #{residual_block_2d.1} parent=0 // loop_pre_header
    _
  $region3: #{residual_block_2d.1} parent=0 // loop_header
    %s15 = sphi 0, %s19
    %p16 = scmp.ge.s32.totalorder %s15, 4
    %s25 = sphi 0, %s27
    %s28 = sphi 0, %s25
    %s29 = sphi 0, %s28
    %s45 = sphi 0, %s29
    %s49 = sphi 0, %s49
    %s51 = sphi 0, %s49
    %s52 = sphi 0, %s51
    %s66 = sphi 0, %s52
    %s70 = sphi 0, %s70
    %s72 = sphi 0, %s70
    %s73 = sphi 0, %s72
    %s87 = sphi 0, %s73
    %s91 = sphi 0, %s91
    %s93 = sphi 0, %s91
    %s94 = sphi 0, %s93
    %s108 = sphi 0, %s94
    %s112 = sphi 0, %s112
    %s114 = sphi 0, %s112
    %s115 = sphi 0, %s114
    %s129 = sphi 0, %s115
    %s133 = sphi 0, %s133
    %s135 = sphi 0, %s133
    %s136 = sphi 0, %s135
    %s150 = sphi 0, %s136
    %s154 = sphi 0, %s154
    %s156 = sphi 0, %s154
    %s157 = sphi 0, %s156
    %s171 = sphi 0, %s157
    %s175 = sphi 0, %s175
    %s177 = sphi 0, %s175
    %s178 = sphi 0, %s177
    %s192 = sphi 0, %s178
    %s196 = sphi 0, %s196
    %s198 = sphi 0, %s196
    %s199 = sphi 0, %s198
    %s213 = sphi 0, %s199
    %s219 = sphi 0, %s221
    %s222 = sphi 0, %s219
    %s223 = sphi 0, %s222
    %s239 = sphi 0, %s223
  $region4: #{residual_block_2d.1} parent=0 // loop_header_branch
    %18 = sbr.rel (%p16) target = $region8
  $region5: #{residual_block_2d.1} parent=0 // loop_body
    %s20 = ssub.s32 %s15, 1
    %s21 = ssub.s32 %s15, 2
    %s22 = sadd.s32 %s15, 1
    %s23 = ssub.s32 %s15, %s22
    %p24 = scmp.eq.s32.totalorder %s23, 0
    %s26 = sadd.s32 %s25, 1
    %s27 = scalar_select %p24, %s25, %s26
    %p30 = pneg %p24
    %p31 = scmp.eq.s32.totalorder %s15, 1
    %p32 = por %p30, %p31
    %p33 = scmp.ne.s32.totalorder %s25, %s28
    %p34 = scmp.eq.s32.totalorder %s15, 0
    %p35 = por %p33, %p34
    %p36 = scmp.ne.s32.totalorder %s25, %s28
    %p37 = scmp.eq.s32.totalorder %s20, 1
    %p38 = por %p36, %p37
    %p39 = scmp.ne.s32.totalorder %s28, %s29
    %p40 = scmp.eq.s32.totalorder %s20, 0
    %p41 = por %p39, %p40
    %p42 = scmp.ne.s32.totalorder %s28, %s29
    %p43 = scmp.eq.s32.totalorder %s21, 1
    %p44 = por %p42, %p43
    %p46 = scmp.ne.s32.totalorder %s29, %s45
    %p47 = scmp.eq.s32.totalorder %s21, 0
    %p48 = por %p46, %p47
    %s50 = sadd.s32 %s49, 1
    %p53 = scmp.eq.s32.totalorder %s15, 1
    %p54 = scmp.ne.s32.totalorder %s49, %s51
    %p55 = scmp.eq.s32.totalorder %s15, 0
    %p56 = por %p54, %p55
    %p57 = scmp.ne.s32.totalorder %s49, %s51
    %p58 = scmp.eq.s32.totalorder %s20, 1
    %p59 = por %p57, %p58
    %p60 = scmp.ne.s32.totalorder %s51, %s52
    %p61 = scmp.eq.s32.totalorder %s20, 0
    %p62 = por %p60, %p61
    %p63 = scmp.ne.s32.totalorder %s51, %s52
    %p64 = scmp.eq.s32.totalorder %s21, 1
    %p65 = por %p63, %p64
    %p67 = scmp.ne.s32.totalorder %s52, %s66
    %p68 = scmp.eq.s32.totalorder %s21, 0
    %p69 = por %p67, %p68
    %s71 = sadd.s32 %s70, 1
    %p74 = scmp.eq.s32.totalorder %s15, 1
    %p75 = scmp.ne.s32.totalorder %s70, %s72
    %p76 = scmp.eq.s32.totalorder %s15, 0
    %p77 = por %p75, %p76
    %p78 = scmp.ne.s32.totalorder %s70, %s72
    %p79 = scmp.eq.s32.totalorder %s20, 1
    %p80 = por %p78, %p79
    %p81 = scmp.ne.s32.totalorder %s72, %s73
    %p82 = scmp.eq.s32.totalorder %s20, 0
    %p83 = por %p81, %p82
    %p84 = scmp.ne.s32.totalorder %s72, %s73
    %p85 = scmp.eq.s32.totalorder %s21, 1
    %p86 = por %p84, %p85
    %p88 = scmp.ne.s32.totalorder %s73, %s87
    %p89 = scmp.eq.s32.totalorder %s21, 0
    %p90 = por %p88, %p89
    %s92 = sadd.s32 %s91, 1
    %p95 = scmp.eq.s32.totalorder %s15, 1
    %p96 = scmp.ne.s32.totalorder %s91, %s93
    %p97 = scmp.eq.s32.totalorder %s15, 0
    %p98 = por %p96, %p97
    %p99 = scmp.ne.s32.totalorder %s91, %s93
    %p100 = scmp.eq.s32.totalorder %s20, 1
    %p101 = por %p99, %p100
    %p102 = scmp.ne.s32.totalorder %s93, %s94
    %p103 = scmp.eq.s32.totalorder %s20, 0
    %p104 = por %p102, %p103
    %p105 = scmp.ne.s32.totalorder %s93, %s94
    %p106 = scmp.eq.s32.totalorder %s21, 1
    %p107 = por %p105, %p106
    %p109 = scmp.ne.s32.totalorder %s94, %s108
    %p110 = scmp.eq.s32.totalorder %s21, 0
    %p111 = por %p109, %p110
    %s113 = sadd.s32 %s112, 1
    %p116 = scmp.eq.s32.totalorder %s15, 1
    %p117 = scmp.ne.s32.totalorder %s112, %s114
    %p118 = scmp.eq.s32.totalorder %s15, 0
    %p119 = por %p117, %p118
    %p120 = scmp.ne.s32.totalorder %s112, %s114
    %p121 = scmp.eq.s32.totalorder %s20, 1
    %p122 = por %p120, %p121
    %p123 = scmp.ne.s32.totalorder %s114, %s115
    %p124 = scmp.eq.s32.totalorder %s20, 0
    %p125 = por %p123, %p124
    %p126 = scmp.ne.s32.totalorder %s114, %s115
    %p127 = scmp.eq.s32.totalorder %s21, 1
    %p128 = por %p126, %p127
    %p130 = scmp.ne.s32.totalorder %s115, %s129
    %p131 = scmp.eq.s32.totalorder %s21, 0
    %p132 = por %p130, %p131
    %s134 = sadd.s32 %s133, 1
    %p137 = scmp.eq.s32.totalorder %s15, 1
    %p138 = scmp.ne.s32.totalorder %s133, %s135
    %p139 = scmp.eq.s32.totalorder %s15, 0
    %p140 = por %p138, %p139
    %p141 = scmp.ne.s32.totalorder %s133, %s135
    %p142 = scmp.eq.s32.totalorder %s20, 1
    %p143 = por %p141, %p142
    %p144 = scmp.ne.s32.totalorder %s135, %s136
    %p145 = scmp.eq.s32.totalorder %s20, 0
    %p146 = por %p144, %p145
    %p147 = scmp.ne.s32.totalorder %s135, %s136
    %p148 = scmp.eq.s32.totalorder %s21, 1
    %p149 = por %p147, %p148
    %p151 = scmp.ne.s32.totalorder %s136, %s150
    %p152 = scmp.eq.s32.totalorder %s21, 0
    %p153 = por %p151, %p152
    %s155 = sadd.s32 %s154, 1
    %p158 = scmp.eq.s32.totalorder %s15, 1
    %p159 = scmp.ne.s32.totalorder %s154, %s156
    %p160 = scmp.eq.s32.totalorder %s15, 0
    %p161 = por %p159, %p160
    %p162 = scmp.ne.s32.totalorder %s154, %s156
    %p163 = scmp.eq.s32.totalorder %s20, 1
    %p164 = por %p162, %p163
    %p165 = scmp.ne.s32.totalorder %s156, %s157
    %p166 = scmp.eq.s32.totalorder %s20, 0
    %p167 = por %p165, %p166
    %p168 = scmp.ne.s32.totalorder %s156, %s157
    %p169 = scmp.eq.s32.totalorder %s21, 1
    %p170 = por %p168, %p169
    %p172 = scmp.ne.s32.totalorder %s157, %s171
    %p173 = scmp.eq.s32.totalorder %s21, 0
    %p174 = por %p172, %p173
    %s176 = sadd.s32 %s175, 1
    %p179 = scmp.eq.s32.totalorder %s15, 1
    %p180 = scmp.ne.s32.totalorder %s175, %s177
    %p181 = scmp.eq.s32.totalorder %s15, 0
    %p182 = por %p180, %p181
    %p183 = scmp.ne.s32.totalorder %s175, %s177
    %p184 = scmp.eq.s32.totalorder %s20, 1
    %p185 = por %p183, %p184
    %p186 = scmp.ne.s32.totalorder %s177, %s178
    %p187 = scmp.eq.s32.totalorder %s20, 0
    %p188 = por %p186, %p187
    %p189 = scmp.ne.s32.totalorder %s177, %s178
    %p190 = scmp.eq.s32.totalorder %s21, 1
    %p191 = por %p189, %p190
    %p193 = scmp.ne.s32.totalorder %s178, %s192
    %p194 = scmp.eq.s32.totalorder %s21, 0
    %p195 = por %p193, %p194
    %s197 = sadd.s32 %s196, 1
    %p200 = scmp.eq.s32.totalorder %s15, 1
    %p201 = scmp.ne.s32.totalorder %s196, %s198
    %p202 = scmp.eq.s32.totalorder %s15, 0
    %p203 = por %p201, %p202
    %p204 = scmp.ne.s32.totalorder %s196, %s198
    %p205 = scmp.eq.s32.totalorder %s20, 1
    %p206 = por %p204, %p205
    %p207 = scmp.ne.s32.totalorder %s198, %s199
    %p208 = scmp.eq.s32.totalorder %s20, 0
    %p209 = por %p207, %p208
    %p210 = scmp.ne.s32.totalorder %s198, %s199
    %p211 = scmp.eq.s32.totalorder %s21, 1
    %p212 = por %p210, %p211
    %p214 = scmp.ne.s32.totalorder %s199, %s213
    %p215 = scmp.eq.s32.totalorder %s21, 0
    %p216 = por %p214, %p215
    %s217 = ssub.s32 %s15, %s22
    %p218 = scmp.eq.s32.totalorder %s217, 0
    %s220 = sadd.s32 %s219, 1
    %s221 = scalar_select %p218, %s219, %s220
    %p224 = pneg %p218
    %p225 = scmp.eq.s32.totalorder %s15, 1
    %p226 = por %p224, %p225
    %p227 = scmp.ne.s32.totalorder %s219, %s222
    %p228 = scmp.eq.s32.totalorder %s15, 0
    %p229 = por %p227, %p228
    %p230 = scmp.ne.s32.totalorder %s219, %s222
    %p231 = scmp.eq.s32.totalorder %s20, 1
    %p232 = por %p230, %p231
    %p233 = scmp.ne.s32.totalorder %s222, %s223
    %p234 = scmp.eq.s32.totalorder %s20, 0
    %p235 = por %p233, %p234
    %p236 = scmp.ne.s32.totalorder %s222, %s223
    %p237 = scmp.eq.s32.totalorder %s21, 1
    %p238 = por %p236, %p237
    %p240 = scmp.ne.s32.totalorder %s223, %s239
    %p241 = scmp.eq.s32.totalorder %s21, 0
    %p242 = por %p240, %p241
    %p243 = scmp.le.s32.totalorder 1, %s15
    %p244 = scmp.lt.s32.totalorder %s15, 3
    %p245 = pnand %p243, %p244
    %p246 = pneg %p245
    // Predicated region
    $region9: #{residual_block_2d.1} parent=5 // pred_check
      _
    $region10: #{residual_block_2d.1} parent=5 // pred_check_branch
      %248 = sbr.rel (%p245) target = $region12
    $region11: #{residual_block_2d.1} parent=5 // pred_region
      %s249 = ssub.s32 %s15, 1
      // Predicated region
      $region13: #{residual_block_2d.1} parent=11 // pred_check
        %p250 = pneg %p62
      $region14: #{residual_block_2d.1} parent=11 // pred_check_branch
        %252 = sbr.rel (%p250) target = $region16
      $region15: #{residual_block_2d.1} parent=11 // pred_region
        _
      $region16: #{residual_block_2d.1} parent=11 // pred_fallthru
        _
      // Predicated region
      $region17: #{residual_block_2d.1} parent=11 // pred_check
        %p253 = pneg %p83
      $region18: #{residual_block_2d.1} parent=11 // pred_check_branch
        %255 = sbr.rel (%p253) target = $region20
      $region19: #{residual_block_2d.1} parent=11 // pred_region
        _
      $region20: #{residual_block_2d.1} parent=11 // pred_fallthru
        _
      // Predicated region
      $region21: #{residual_block_2d.1} parent=11 // pred_check
        %p256 = pneg %p104
      $region22: #{residual_block_2d.1} parent=11 // pred_check_branch
        %258 = sbr.rel (%p256) target = $region24
      $region23: #{residual_block_2d.1} parent=11 // pred_region
        _
      $region24: #{residual_block_2d.1} parent=11 // pred_fallthru
        _
      // Predicated region
      $region25: #{residual_block_2d.1} parent=11 // pred_check
        %p259 = pneg %p125
      $region26: #{residual_block_2d.1} parent=11 // pred_check_branch
        %261 = sbr.rel (%p259) target = $region28
      $region27: #{residual_block_2d.1} parent=11 // pred_region
        _
      $region28: #{residual_block_2d.1} parent=11 // pred_fallthru
        _
      // Predicated region
      $region29: #{residual_block_2d.1} parent=11 // pred_check
        %p262 = pneg %p146
      $region30: #{residual_block_2d.1} parent=11 // pred_check_branch
        %264 = sbr.rel (%p262) target = $region32
      $region31: #{residual_block_2d.1} parent=11 // pred_region
        _
      $region32: #{residual_block_2d.1} parent=11 // pred_fallthru
        _
      // Predicated region
      $region33: #{residual_block_2d.1} parent=11 // pred_check
        %p265 = pneg %p167
      $region34: #{residual_block_2d.1} parent=11 // pred_check_branch
        %267 = sbr.rel (%p265) target = $region36
      $region35: #{residual_block_2d.1} parent=11 // pred_region
        _
      $region36: #{residual_block_2d.1} parent=11 // pred_fallthru
        _
      // Predicated region
      $region37: #{residual_block_2d.1} parent=11 // pred_check
        %p268 = pneg %p188
      $region38: #{residual_block_2d.1} parent=11 // pred_check_branch
        %270 = sbr.rel (%p268) target = $region40
      $region39: #{residual_block_2d.1} parent=11 // pred_region
        _
      $region40: #{residual_block_2d.1} parent=11 // pred_fallthru
        _
      // Predicated region
      $region41: #{residual_block_2d.1} parent=11 // pred_check
        %p271 = pneg %p209
      $region42: #{residual_block_2d.1} parent=11 // pred_check_branch
        %273 = sbr.rel (%p271) target = $region44
      $region43: #{residual_block_2d.1} parent=11 // pred_region
        _
      $region44: #{residual_block_2d.1} parent=11 // pred_fallthru
        _
    $region12: #{residual_block_2d.1} parent=5 // pred_fallthru
      _
    %p274 = scmp.lt.s32.totalorder %s15, 2
    // Predicated region
    $region45: #{residual_block_2d.1} parent=5 // pred_check
      %p275 = pneg %p274
    $region46: #{residual_block_2d.1} parent=5 // pred_check_branch
      %277 = sbr.rel (%p275) target = $region48
    $region47: #{residual_block_2d.1} parent=5 // pred_region
      // Predicated region
      $region49: #{residual_block_2d.1} parent=47 // pred_check
        %p278 = pneg %p35
      $region50: #{residual_block_2d.1} parent=47 // pred_check_branch
        %280 = sbr.rel (%p278) target = $region52
      $region51: #{residual_block_2d.1} parent=47 // pred_region
        %p281 = scmp.lt.s32.totalorder %s15, 1
        %s282 = scalar_select %p281, %s15, 1
        %s283 = smul.addr %s282, 54
        %s284 = smul.addr %s283, 4
        %s285 = scalar_lea.vmem %s0, %s284
      $region52: #{residual_block_2d.1} parent=47 // pred_fallthru
        _
    $region48: #{residual_block_2d.1} parent=5 // pred_fallthru
      _
    %p286 = scmp.le.s32.totalorder 1, %s15
    %p287 = scmp.lt.s32.totalorder %s15, 3
    %p288 = pnand %p286, %p287
    %p289 = pneg %p288
    // Predicated region
    $region53: #{residual_block_2d.1} parent=5 // pred_check
      _
    $region54: #{residual_block_2d.1} parent=5 // pred_check_branch
      %291 = sbr.rel (%p288) target = $region56
    $region55: #{residual_block_2d.1} parent=5 // pred_region
      %s292 = ssub.s32 %s15, 1
      %p293 = scmp.lt.s32.totalorder %s20, 1
      %s294 = scalar_select %p293, %s20, 1
      %s295 = smul.addr %s294, 54
      %s296 = smul.addr %s295, 4
      %s297 = scalar_lea.vmem %s0, %s296
      %p298 = pneg %p41
      %p299 = pneg %p38
      %p300 = pneg %p62
      %p301 = pneg %p59
      %p302 = pneg %p83
      %p303 = pneg %p80
      %p304 = pneg %p104
      %p305 = pneg %p101
      %p306 = pneg %p125
      %p307 = pneg %p122
      %p308 = pneg %p146
      %p309 = pneg %p143
      %p310 = pneg %p167
      %p311 = pneg %p164
      %p312 = pneg %p188
      %p313 = pneg %p185
      %p314 = pneg %p209
      %p315 = pneg %p206
      %p316 = pneg %p235
      %p317 = pneg %p232
      %p318 = scmp.lt.s32.totalorder %s20, 1
      %s319 = scalar_select %p318, %s20, 1
      %s320 = smul.addr %s319, 32
      %s321 = smul.addr %s320, 8
      %s322 = scalar_lea.vmem %s9, %s321
      %p323 = scmp.lt.s32.totalorder %s20, 1
      %s324 = scalar_select %p323, %s20, 1
      %s325 = smul.addr %s324, 54
      %s326 = smul.addr %s325, 4
      %s327 = scalar_lea.vmem %s0, %s326
      %p328 = scmp.lt.s32.totalorder %s20, 1
      %s329 = scalar_select %p328, %s20, 1
      %s330 = smul.addr %s329, 32
      %s331 = smul.addr %s330, 8
      %s332 = scalar_lea.vmem %s9, %s331
      %v334 = vld [vmem:[%s327] sm:$0xf]
      %v335 = vld [vmem:[%s327 + $0x4] sm:$0xf]
      %v336 = vld [vmem:[%s327 + $0x8] sm:$0x1]
      %v337 = vld [vmem:[%s327 + $0xc] sm:$0xf]
      %v338 = vld [vmem:[%s327 + $0x10] sm:$0xf]
      %v339 = vld [vmem:[%s327 + $0x14] sm:$0x1]
      %v340 = vld [vmem:[%s327 + $0x18] sm:$0xf]
      %v341 = vld [vmem:[%s327 + $0x1c] sm:$0xf]
      %v342 = vld [vmem:[%s327 + $0x20] sm:$0x1]
      %v343 = vld [vmem:[%s327 + $0x24] sm:$0xf]
      %v344 = vld [vmem:[%s327 + $0x28] sm:$0xf]
      %v345 = vld [vmem:[%s327 + $0x2c] sm:$0x1]
      %v346 = vld [vmem:[%s327 + $0x30] sm:$0xf]
      %v347 = vld [vmem:[%s327 + $0x34] sm:$0xf]
      %v348 = vld [vmem:[%s327 + $0x38] sm:$0x1]
      %v349 = vld [vmem:[%s327 + $0x3c] sm:$0xf]
      %v350 = vld [vmem:[%s327 + $0x40] sm:$0xf]
      %v351 = vld [vmem:[%s327 + $0x44] sm:$0x1]
      %v352 = vld [vmem:[%s327 + $0x48] sm:$0xf]
      %v353 = vld [vmem:[%s327 + $0x4c] sm:$0xf]
      %v354 = vld [vmem:[%s327 + $0x50] sm:$0x1]
      %v355 = vld [vmem:[%s327 + $0x54] sm:$0xf]
      %v356 = vld [vmem:[%s327 + $0x58] sm:$0xf]
      %v357 = vld [vmem:[%s327 + $0x5c] sm:$0x1]
      %v358 = vld [vmem:[%s327 + $0x60] sm:$0xf]
      %v359 = vld [vmem:[%s327 + $0x64] sm:$0xf]
      %v360 = vld [vmem:[%s327 + $0x68] sm:$0x1]
      %v361 = vld [vmem:[%s327 + $0x6c] sm:$0xf]
      %v362 = vld [vmem:[%s327 + $0x70] sm:$0xf]
      %v363 = vld [vmem:[%s327 + $0x74] sm:$0x1]
      %v364 = vld [vmem:[%s327 + $0x78] sm:$0xf]
      %v365 = vld [vmem:[%s327 + $0x7c] sm:$0xf]
      %v366 = vld [vmem:[%s327 + $0x80] sm:$0x1]
      %v367 = vld [vmem:[%s327 + $0x84] sm:$0xf]
      %v368 = vld [vmem:[%s327 + $0x88] sm:$0xf]
      %v369 = vld [vmem:[%s327 + $0x8c] sm:$0x1]
      %v370 = vld [vmem:[%s327 + $0x90] sm:$0xf]
      %v371 = vld [vmem:[%s327 + $0x94] sm:$0xf]
      %v372 = vld [vmem:[%s327 + $0x98] sm:$0x1]
      %v373 = vld [vmem:[%s327 + $0x9c] sm:$0xf]
      %v374 = vld [vmem:[%s327 + $0xa0] sm:$0xf]
      %v375 = vld [vmem:[%s327 + $0xa4] sm:$0x1]
      %v376 = vld [vmem:[%s327 + $0xa8] sm:$0xf]
      %v377 = vld [vmem:[%s327 + $0xac] sm:$0xf]
      %v378 = vld [vmem:[%s327 + $0xb0] sm:$0x1]
      %v379 = vld [vmem:[%s327 + $0xb4] sm:$0xf]
      %v380 = vld [vmem:[%s327 + $0xb8] sm:$0xf]
      %v381 = vld [vmem:[%s327 + $0xbc] sm:$0x1]
      %v382 = vld [vmem:[%s327 + $0xc0] sm:$0xf]
      %v383 = vld [vmem:[%s327 + $0xc4] sm:$0xf]
      %v384 = vld [vmem:[%s327 + $0xc8] sm:$0x1]
      %v385 = vld [vmem:[%s327 + $0xcc] sm:$0xf]
      %v386 = vld [vmem:[%s327 + $0xd0] sm:$0xf]
      %v387 = vld [vmem:[%s327 + $0xd4] sm:$0x1]
      %v388 = vld [vmem:[%s1] sm:$0x3]
      %vm389 = vsmask.f32 3328
      %vm390 = vsmask.f32 7440
      %vm391 = vmor %vm389, %vm390
      %v393 = vshrl.u32 %v334, 16
      %v395 = vrot.slane %v393, 4
      %v396 = vshll.u32 %v334, 16
      %v398 = vrot.slane %v396, 5
      %v399 = vor.u32 %v395, %v398
      %v400 = vrot.slane %v399, 4
      %v402 = vshll.u32 %v335, 16
      %v404 = vrot.slane %v402, 5
      %v405 = vsel %vm391, %v400, %v404
      %v406 = vshrl.u32 %v335, 16
      %v408 = vrot.slane %v406, 4
      %v409 = vor.u32 %v408, %v404
      %v410 = vrot.slane %v409, 4
      %v412 = vshll.u32 %v336, 16
      %v414 = vrot.slane %v412, 5
      %v415 = vsel %vm391, %v410, %v414
      %v417 = vshrl.u32 %v337, 16
      %v419 = vrot.slane %v417, 4
      %v420 = vshll.u32 %v337, 16
      %v422 = vrot.slane %v420, 5
      %v423 = vor.u32 %v419, %v422
      %v424 = vrot.slane %v423, 4
      %v426 = vshll.u32 %v338, 16
      %v428 = vrot.slane %v426, 5
      %v429 = vsel %vm391, %v424, %v428
      %v430 = vshrl.u32 %v338, 16
      %v432 = vrot.slane %v430, 4
      %v433 = vor.u32 %v432, %v428
      %v434 = vrot.slane %v433, 4
      %v436 = vshll.u32 %v339, 16
      %v438 = vrot.slane %v436, 5
      %v439 = vsel %vm391, %v434, %v438
      %v441 = vshrl.u32 %v340, 16
      %v443 = vrot.slane %v441, 4
      %v444 = vshll.u32 %v340, 16
      %v446 = vrot.slane %v444, 5
      %v447 = vor.u32 %v443, %v446
      %v448 = vrot.slane %v447, 4
      %v450 = vshll.u32 %v341, 16
      %v452 = vrot.slane %v450, 5
      %v453 = vsel %vm391, %v448, %v452
      %v454 = vshrl.u32 %v341, 16
      %v456 = vrot.slane %v454, 4
      %v457 = vor.u32 %v456, %v452
      %v458 = vrot.slane %v457, 4
      %v460 = vshll.u32 %v342, 16
      %v462 = vrot.slane %v460, 5
      %v463 = vsel %vm391, %v458, %v462
      %v465 = vshrl.u32 %v343, 16
      %v467 = vrot.slane %v465, 4
      %v468 = vshll.u32 %v343, 16
      %v470 = vrot.slane %v468, 5
      %v471 = vor.u32 %v467, %v470
      %v472 = vrot.slane %v471, 4
      %v474 = vshll.u32 %v344, 16
      %v476 = vrot.slane %v474, 5
      %v477 = vsel %vm391, %v472, %v476
      %v478 = vshrl.u32 %v344, 16
      %v480 = vrot.slane %v478, 4
      %v481 = vor.u32 %v480, %v476
      %v482 = vrot.slane %v481, 4
      %v484 = vshll.u32 %v345, 16
      %v486 = vrot.slane %v484, 5
      %v487 = vsel %vm391, %v482, %v486
      %v489 = vshrl.u32 %v346, 16
      %v491 = vrot.slane %v489, 4
      %v492 = vshll.u32 %v346, 16
      %v494 = vrot.slane %v492, 5
      %v495 = vor.u32 %v491, %v494
      %v496 = vrot.slane %v495, 4
      %v498 = vshll.u32 %v347, 16
      %v500 = vrot.slane %v498, 5
      %v501 = vsel %vm391, %v496, %v500
      %v502 = vshrl.u32 %v347, 16
      %v504 = vrot.slane %v502, 4
      %v505 = vor.u32 %v504, %v500
      %v506 = vrot.slane %v505, 4
      %v508 = vshll.u32 %v348, 16
      %v510 = vrot.slane %v508, 5
      %v511 = vsel %vm391, %v506, %v510
      %v513 = vshrl.u32 %v349, 16
      %v515 = vrot.slane %v513, 4
      %v516 = vshll.u32 %v349, 16
      %v518 = vrot.slane %v516, 5
      %v519 = vor.u32 %v515, %v518
      %v520 = vrot.slane %v519, 4
      %v522 = vshll.u32 %v350, 16
      %v524 = vrot.slane %v522, 5
      %v525 = vsel %vm391, %v520, %v524
      %v526 = vshrl.u32 %v350, 16
      %v528 = vrot.slane %v526, 4
      %v529 = vor.u32 %v528, %v524
      %v530 = vrot.slane %v529, 4
      %v532 = vshll.u32 %v351, 16
      %v534 = vrot.slane %v532, 5
      %v535 = vsel %vm391, %v530, %v534
      %v537 = vshrl.u32 %v352, 16
      %v539 = vrot.slane %v537, 4
      %v540 = vshll.u32 %v352, 16
      %v542 = vrot.slane %v540, 5
      %v543 = vor.u32 %v539, %v542
      %v544 = vrot.slane %v543, 4
      %v546 = vshll.u32 %v353, 16
      %v548 = vrot.slane %v546, 5
      %v549 = vsel %vm391, %v544, %v548
      %v550 = vshrl.u32 %v353, 16
      %v552 = vrot.slane %v550, 4
      %v553 = vor.u32 %v552, %v548
      %v554 = vrot.slane %v553, 4
      %v556 = vshll.u32 %v354, 16
      %v558 = vrot.slane %v556, 5
      %v559 = vsel %vm391, %v554, %v558
      %v561 = vshrl.u32 %v355, 16
      %v563 = vrot.slane %v561, 4
      %v564 = vshll.u32 %v355, 16
      %v566 = vrot.slane %v564, 5
      %v567 = vor.u32 %v563, %v566
      %v568 = vrot.slane %v567, 4
      %v570 = vshll.u32 %v356, 16
      %v572 = vrot.slane %v570, 5
      %v573 = vsel %vm391, %v568, %v572
      %v574 = vshrl.u32 %v356, 16
      %v576 = vrot.slane %v574, 4
      %v577 = vor.u32 %v576, %v572
      %v578 = vrot.slane %v577, 4
      %v580 = vshll.u32 %v357, 16
      %v582 = vrot.slane %v580, 5
      %v583 = vsel %vm391, %v578, %v582
      %v585 = vshrl.u32 %v358, 16
      %v587 = vrot.slane %v585, 4
      %v588 = vshll.u32 %v358, 16
      %v590 = vrot.slane %v588, 5
      %v591 = vor.u32 %v587, %v590
      %v592 = vrot.slane %v591, 4
      %v594 = vshll.u32 %v359, 16
      %v596 = vrot.slane %v594, 5
      %v597 = vsel %vm391, %v592, %v596
      %v598 = vshrl.u32 %v359, 16
      %v600 = vrot.slane %v598, 4
      %v601 = vor.u32 %v600, %v596
      %v602 = vrot.slane %v601, 4
      %v604 = vshll.u32 %v360, 16
      %v606 = vrot.slane %v604, 5
      %v607 = vsel %vm391, %v602, %v606
      %v609 = vshrl.u32 %v361, 16
      %v611 = vrot.slane %v609, 4
      %v612 = vshll.u32 %v361, 16
      %v614 = vrot.slane %v612, 5
      %v615 = vor.u32 %v611, %v614
      %v616 = vrot.slane %v615, 4
      %v618 = vshll.u32 %v362, 16
      %v620 = vrot.slane %v618, 5
      %v621 = vsel %vm391, %v616, %v620
      %v622 = vshrl.u32 %v362, 16
      %v624 = vrot.slane %v622, 4
      %v625 = vor.u32 %v624, %v620
      %v626 = vrot.slane %v625, 4
      %v628 = vshll.u32 %v363, 16
      %v630 = vrot.slane %v628, 5
      %v631 = vsel %vm391, %v626, %v630
      %v633 = vshrl.u32 %v364, 16
      %v635 = vrot.slane %v633, 4
      %v636 = vshll.u32 %v364, 16
      %v638 = vrot.slane %v636, 5
      %v639 = vor.u32 %v635, %v638
      %v640 = vrot.slane %v639, 4
      %v642 = vshll.u32 %v365, 16
      %v644 = vrot.slane %v642, 5
      %v645 = vsel %vm391, %v640, %v644
      %v646 = vshrl.u32 %v365, 16
      %v648 = vrot.slane %v646, 4
      %v649 = vor.u32 %v648, %v644
      %v650 = vrot.slane %v649, 4
      %v652 = vshll.u32 %v366, 16
      %v654 = vrot.slane %v652, 5
      %v655 = vsel %vm391, %v650, %v654
      %v657 = vshrl.u32 %v367, 16
      %v659 = vrot.slane %v657, 4
      %v660 = vshll.u32 %v367, 16
      %v662 = vrot.slane %v660, 5
      %v663 = vor.u32 %v659, %v662
      %v664 = vrot.slane %v663, 4
      %v666 = vshll.u32 %v368, 16
      %v668 = vrot.slane %v666, 5
      %v669 = vsel %vm391, %v664, %v668
      %v670 = vshrl.u32 %v368, 16
      %v672 = vrot.slane %v670, 4
      %v673 = vor.u32 %v672, %v668
      %v674 = vrot.slane %v673, 4
      %v676 = vshll.u32 %v369, 16
      %v678 = vrot.slane %v676, 5
      %v679 = vsel %vm391, %v674, %v678
      %v681 = vshrl.u32 %v370, 16
      %v683 = vrot.slane %v681, 4
      %v684 = vshll.u32 %v370, 16
      %v686 = vrot.slane %v684, 5
      %v687 = vor.u32 %v683, %v686
      %v688 = vrot.slane %v687, 4
      %v690 = vshll.u32 %v371, 16
      %v692 = vrot.slane %v690, 5
      %v693 = vsel %vm391, %v688, %v692
      %v694 = vshrl.u32 %v371, 16
      %v696 = vrot.slane %v694, 4
      %v697 = vor.u32 %v696, %v692
      %v698 = vrot.slane %v697, 4
      %v700 = vshll.u32 %v372, 16
      %v702 = vrot.slane %v700, 5
      %v703 = vsel %vm391, %v698, %v702
      %v705 = vshrl.u32 %v373, 16
      %v707 = vrot.slane %v705, 4
      %v708 = vshll.u32 %v373, 16
      %v710 = vrot.slane %v708, 5
      %v711 = vor.u32 %v707, %v710
      %v712 = vrot.slane %v711, 4
      %v714 = vshll.u32 %v374, 16
      %v716 = vrot.slane %v714, 5
      %v717 = vsel %vm391, %v712, %v716
      %v718 = vshrl.u32 %v374, 16
      %v720 = vrot.slane %v718, 4
      %v721 = vor.u32 %v720, %v716
      %v722 = vrot.slane %v721, 4
      %v724 = vshll.u32 %v375, 16
      %v726 = vrot.slane %v724, 5
      %v727 = vsel %vm391, %v722, %v726
      %v729 = vshrl.u32 %v376, 16
      %v731 = vrot.slane %v729, 4
      %v732 = vshll.u32 %v376, 16
      %v734 = vrot.slane %v732, 5
      %v735 = vor.u32 %v731, %v734
      %v736 = vrot.slane %v735, 4
      %v738 = vshll.u32 %v377, 16
      %v740 = vrot.slane %v738, 5
      %v741 = vsel %vm391, %v736, %v740
      %v742 = vshrl.u32 %v377, 16
      %v744 = vrot.slane %v742, 4
      %v745 = vor.u32 %v744, %v740
      %v746 = vrot.slane %v745, 4
      %v748 = vshll.u32 %v378, 16
      %v750 = vrot.slane %v748, 5
      %v751 = vsel %vm391, %v746, %v750
      %v753 = vshrl.u32 %v379, 16
      %v755 = vrot.slane %v753, 4
      %v756 = vshll.u32 %v379, 16
      %v758 = vrot.slane %v756, 5
      %v759 = vor.u32 %v755, %v758
      %v760 = vrot.slane %v759, 4
      %v762 = vshll.u32 %v380, 16
      %v764 = vrot.slane %v762, 5
      %v765 = vsel %vm391, %v760, %v764
      %v766 = vshrl.u32 %v380, 16
      %v768 = vrot.slane %v766, 4
      %v769 = vor.u32 %v768, %v764
      %v770 = vrot.slane %v769, 4
      %v772 = vshll.u32 %v381, 16
      %v774 = vrot.slane %v772, 5
      %v775 = vsel %vm391, %v770, %v774
      %s776 = scalar_lea.vmem %s1, 2
      %v777 = vld [vmem:[%s776] sm:$0x3]
      %v778 = vunpack.c.l.b16 %v405
      %v779 = vunpack.c.l.b16 %v415
      %v780 = vunpack.c.l.b16 %v429
      %v781 = vunpack.c.l.b16 %v439
      %v782 = vunpack.c.l.b16 %v453
      %v783 = vunpack.c.l.b16 %v463
      %v784 = vunpack.c.l.b16 %v477
      %v785 = vunpack.c.l.b16 %v487
      %v786 = vunpack.c.l.b16 %v501
      %v787 = vunpack.c.l.b16 %v511
      %v788 = vunpack.c.l.b16 %v525
      %v789 = vunpack.c.l.b16 %v535
      %v790 = vunpack.c.l.b16 %v549
      %v791 = vunpack.c.l.b16 %v559
      %v792 = vunpack.c.l.b16 %v573
      %v793 = vunpack.c.l.b16 %v583
      %v794 = vunpack.c.l.b16 %v597
      %v795 = vunpack.c.l.b16 %v607
      %v796 = vunpack.c.l.b16 %v621
      %v797 = vunpack.c.l.b16 %v631
      %v798 = vunpack.c.l.b16 %v645
      %v799 = vunpack.c.l.b16 %v655
      %v800 = vunpack.c.l.b16 %v669
      %v801 = vunpack.c.l.b16 %v679
      %v802 = vunpack.c.l.b16 %v693
      %v803 = vunpack.c.l.b16 %v703
      %v804 = vunpack.c.l.b16 %v717
      %v805 = vunpack.c.l.b16 %v727
      %v806 = vunpack.c.l.b16 %v741
      %v807 = vunpack.c.l.b16 %v751
      %v808 = vunpack.c.l.b16 %v765
      %v809 = vunpack.c.l.b16 %v775
      %v810 = vpack.c.b16 %v779, %v778
      %v811 = vpack.c.b16 %v781, %v780
      %v812 = vpack.c.b16 %v783, %v782
      %v813 = vpack.c.b16 %v785, %v784
      %v814 = vpack.c.b16 %v787, %v786
      %v815 = vpack.c.b16 %v789, %v788
      %v816 = vpack.c.b16 %v791, %v790
      %v817 = vpack.c.b16 %v793, %v792
      %v818 = vpack.c.b16 %v795, %v794
      %v819 = vpack.c.b16 %v797, %v796
      %v820 = vpack.c.b16 %v799, %v798
      %v821 = vpack.c.b16 %v801, %v800
      %v822 = vpack.c.b16 %v803, %v802
      %v823 = vpack.c.b16 %v805, %v804
      %v824 = vpack.c.b16 %v807, %v806
      %v825 = vpack.c.b16 %v809, %v808
      %vm826 = vcmask 31744
      %v828 = vsel %vm826, %v810, 0
      %v831 = vsel %vm826, %v811, 0
      %v834 = vsel %vm826, %v812, 0
      %v837 = vsel %vm826, %v813, 0
      %v840 = vsel %vm826, %v814, 0
      %v843 = vsel %vm826, %v815, 0
      %v846 = vsel %vm826, %v816, 0
      %v849 = vsel %vm826, %v817, 0
      %v852 = vsel %vm826, %v818, 0
      %v855 = vsel %vm826, %v819, 0
      %v858 = vsel %vm826, %v820, 0
      %v861 = vsel %vm826, %v821, 0
      %v864 = vsel %vm826, %v822, 0
      %v867 = vsel %vm826, %v823, 0
      %v870 = vsel %vm826, %v824, 0
      %v873 = vsel %vm826, %v825, 0
      %vm875 = vcmask 1041408
      %v877 = vsel %vm875, %v777, 0
      %879 = vmatprep.subr.bf16.mxu0 0
      %880 = vmatpush1.bf16.msra.mxu0 %v877
      %881 = vmatprep.subr.bf16.mxu0 0
      %882 = vmatpush1.bf16.msra.mxu0 0
      %883 = vmatprep.subr.bf16.mxu0 0
      %884 = vmatpush1.bf16.msra.mxu0 0
      %885 = vmatprep.subr.bf16.mxu0 0
      %886 = vmatpush1.bf16.msra.mxu0 0
      %887 = vmatprep.subr.bf16.mxu0 0
      %888 = vmatpush1.bf16.msra.mxu0 0
      %889 = vmatprep.subr.bf16.mxu0 0
      %890 = vmatpush1.bf16.msra.mxu0 0
      %891 = vmatprep.subr.bf16.mxu0 0
      %892 = vmatpush1.bf16.msra.mxu0 0
      %893 = vmatprep.subr.bf16.mxu0 0
      %894 = vmatpush1.bf16.msra.mxu0 0
      %895 = vmatprep.subr.bf16.mxu0 0
      %896 = vmatpush1.bf16.msra.mxu0 0
      %897 = vmatprep.subr.bf16.mxu0 0
      %898 = vmatpush1.bf16.msra.mxu0 0
      %899 = vmatprep.subr.bf16.mxu0 0
      %900 = vmatpush1.bf16.msra.mxu0 0
      %901 = vmatprep.subr.bf16.mxu0 0
      %902 = vmatpush1.bf16.msra.mxu0 0
      %903 = vmatprep.subr.bf16.mxu0 0
      %904 = vmatpush1.bf16.msra.mxu0 0
      %905 = vmatprep.subr.bf16.mxu0 0
      %906 = vmatpush1.bf16.msra.mxu0 0
      %907 = vmatprep.subr.bf16.mxu0 0
      %908 = vmatpush1.bf16.msra.mxu0 0
      %909 = vmatprep.subr.bf16.mxu0 0
      %910 = vmatpush1.bf16.msra.mxu0 0
      %911 = vmatprep.mubr.bf16.mxu0 0
      %912 = vmatmul.mubr.bf16.gmra.mrb[0].mxu0 %v828
      %v913 = vpop.f32.mrb[0].mxu0
      %v914 = vadd.f32 0.0, %v913
      %v915 = vpop.f32.mrb[0].mxu0
      %v916 = vpop.f32.mrb[0].mxu0
      %v917 = vadd.f32 0.0, %v916
      %v918 = vpop.f32.mrb[0].mxu0
      %919 = vmatprep.mubr.bf16.mxu0 0
      %920 = vmatmul.mubr.bf16.gmra.mrb[0].mxu0 %v831
      %v921 = vpop.f32.mrb[0].mxu0
      %v922 = vadd.f32 0.0, %v921
      %v923 = vpop.f32.mrb[0].mxu0
      %v924 = vpop.f32.mrb[0].mxu0
      %v925 = vadd.f32 0.0, %v924
      %v926 = vpop.f32.mrb[0].mxu0
      %927 = vmatprep.mubr.bf16.mxu0 0
      %928 = vmatmul.mubr.bf16.gmra.mrb[0].mxu0 %v834
      %v929 = vpop.f32.mrb[0].mxu0
      %v930 = vadd.f32 0.0, %v929
      %v931 = vpop.f32.mrb[0].mxu0
      %v932 = vpop.f32.mrb[0].mxu0
      %v933 = vadd.f32 0.0, %v932
      %v934 = vpop.f32.mrb[0].mxu0
      %935 = vmatprep.mubr.bf16.mxu0 0
      %936 = vmatmul.mubr.bf16.gmra.mrb[0].mxu0 %v837
      %v937 = vpop.f32.mrb[0].mxu0
      %v938 = vadd.f32 0.0, %v937
      %v939 = vpop.f32.mrb[0].mxu0
      %v940 = vpop.f32.mrb[0].mxu0
      %v941 = vadd.f32 0.0, %v940
      %v942 = vpop.f32.mrb[0].mxu0
      %943 = vmatprep.mubr.bf16.mxu0 0
      %944 = vmatmul.mubr.bf16.gmra.mrb[0].mxu0 %v840
      %v945 = vpop.f32.mrb[0].mxu0
      %v946 = vadd.f32 0.0, %v945
      %v947 = vpop.f32.mrb[0].mxu0
      %v948 = vpop.f32.mrb[0].mxu0
      %v949 = vadd.f32 0.0, %v948
      %v950 = vpop.f32.mrb[0].mxu0
      %951 = vmatprep.mubr.bf16.mxu0 0
      %952 = vmatmul.mubr.bf16.gmra.mrb[0].mxu0 %v843
      %v953 = vpop.f32.mrb[0].mxu0
      %v954 = vadd.f32 0.0, %v953
      %v955 = vpop.f32.mrb[0].mxu0
      %v956 = vpop.f32.mrb[0].mxu0
      %v957 = vadd.f32 0.0, %v956
      %v958 = vpop.f32.mrb[0].mxu0
      %959 = vmatprep.mubr.bf16.mxu0 0
      %960 = vmatmul.mubr.bf16.gmra.mrb[0].mxu0 %v846
      %v961 = vpop.f32.mrb[0].mxu0
      %v962 = vadd.f32 0.0, %v961
      %v963 = vpop.f32.mrb[0].mxu0
      %v964 = vpop.f32.mrb[0].mxu0
      %v965 = vadd.f32 0.0, %v964
      %v966 = vpop.f32.mrb[0].mxu0
      %967 = vmatprep.mubr.bf16.mxu0 0
      %968 = vmatmul.mubr.bf16.gmra.mrb[0].mxu0 %v849
      %v969 = vpop.f32.mrb[0].mxu0
      %v970 = vadd.f32 0.0, %v969
      %v971 = vpop.f32.mrb[0].mxu0
      %v972 = vpop.f32.mrb[0].mxu0
      %v973 = vadd.f32 0.0, %v972
      %v974 = vpop.f32.mrb[0].mxu0
      %975 = vmatprep.mubr.bf16.mxu0 0
      %976 = vmatmul.mubr.bf16.gmra.mrb[0].mxu0 %v852
      %v977 = vpop.f32.mrb[0].mxu0
      %v978 = vadd.f32 0.0, %v977
      %v979 = vpop.f32.mrb[0].mxu0
      %v980 = vpop.f32.mrb[0].mxu0
      %v981 = vadd.f32 0.0, %v980
      %v982 = vpop.f32.mrb[0].mxu0
      %983 = vmatprep.mubr.bf16.mxu0 0
      %984 = vmatmul.mubr.bf16.gmra.mrb[0].mxu0 %v855
      %v985 = vpop.f32.mrb[0].mxu0
      %v986 = vadd.f32 0.0, %v985
      %v987 = vpop.f32.mrb[0].mxu0
      %v988 = vpop.f32.mrb[0].mxu0
      %v989 = vadd.f32 0.0, %v988
      %v990 = vpop.f32.mrb[0].mxu0
      %991 = vmatprep.mubr.bf16.mxu0 0
      %992 = vmatmul.mubr.bf16.gmra.mrb[0].mxu0 %v858
      %v993 = vpop.f32.mrb[0].mxu0
      %v994 = vadd.f32 0.0, %v993
      %v995 = vpop.f32.mrb[0].mxu0
      %v996 = vpop.f32.mrb[0].mxu0
      %v997 = vadd.f32 0.0, %v996
      %v998 = vpop.f32.mrb[0].mxu0
      %999 = vmatprep.mubr.bf16.mxu0 0
      %1000 = vmatmul.mubr.bf16.gmra.mrb[0].mxu0 %v861
      %v1001 = vpop.f32.mrb[0].mxu0
      %v1002 = vadd.f32 0.0, %v1001
      %v1003 = vpop.f32.mrb[0].mxu0
      %v1004 = vpop.f32.mrb[0].mxu0
      %v1005 = vadd.f32 0.0, %v1004
      %v1006 = vpop.f32.mrb[0].mxu0
      %1007 = vmatprep.mubr.bf16.mxu0 0
      %1008 = vmatmul.mubr.bf16.gmra.mrb[0].mxu0 %v864
      %v1009 = vpop.f32.mrb[0].mxu0
      %v1010 = vadd.f32 0.0, %v1009
      %v1011 = vpop.f32.mrb[0].mxu0
      %v1012 = vpop.f32.mrb[0].mxu0
      %v1013 = vadd.f32 0.0, %v1012
      %v1014 = vpop.f32.mrb[0].mxu0
      %1015 = vmatprep.mubr.bf16.mxu0 0
      %1016 = vmatmul.mubr.bf16.gmra.mrb[0].mxu0 %v867
      %v1017 = vpop.f32.mrb[0].mxu0
      %v1018 = vadd.f32 0.0, %v1017
      %v1019 = vpop.f32.mrb[0].mxu0
      %v1020 = vpop.f32.mrb[0].mxu0
      %v1021 = vadd.f32 0.0, %v1020
      %v1022 = vpop.f32.mrb[0].mxu0
      %1023 = vmatprep.mubr.bf16.mxu0 0
      %1024 = vmatmul.mubr.bf16.gmra.mrb[0].mxu0 %v870
      %v1025 = vpop.f32.mrb[0].mxu0
      %v1026 = vadd.f32 0.0, %v1025
      %v1027 = vpop.f32.mrb[0].mxu0
      %v1028 = vpop.f32.mrb[0].mxu0
      %v1029 = vadd.f32 0.0, %v1028
      %v1030 = vpop.f32.mrb[0].mxu0
      %1031 = vmatprep.mubr.bf16.mxu0 0
      %1032 = vmatmul.mubr.bf16.gmra.mrb[0].mxu0 %v873
      %v1033 = vpop.f32.mrb[0].mxu0
      %v1034 = vadd.f32 0.0, %v1033
      %v1035 = vpop.f32.mrb[0].mxu0
      %v1036 = vpop.f32.mrb[0].mxu0
      %v1037 = vadd.f32 0.0, %v1036
      %v1038 = vpop.f32.mrb[0].mxu0
      %1039 = vdwg.mxu0
      %v1072 = vunpack.c.l.b16 %v334
      %v1073 = vunpack.c.l.b16 %v335
      %v1074 = vunpack.c.l.b16 %v337
      %v1075 = vunpack.c.l.b16 %v338
      %v1076 = vunpack.c.l.b16 %v340
      %v1077 = vunpack.c.l.b16 %v341
      %v1078 = vunpack.c.l.b16 %v343
      %v1079 = vunpack.c.l.b16 %v344
      %v1080 = vunpack.c.l.b16 %v346
      %v1081 = vunpack.c.l.b16 %v347
      %v1082 = vunpack.c.l.b16 %v349
      %v1083 = vunpack.c.l.b16 %v350
      %v1084 = vunpack.c.l.b16 %v352
      %v1085 = vunpack.c.l.b16 %v353
      %v1086 = vunpack.c.l.b16 %v355
      %v1087 = vunpack.c.l.b16 %v356
      %v1088 = vunpack.c.l.b16 %v358
      %v1089 = vunpack.c.l.b16 %v359
      %v1090 = vunpack.c.l.b16 %v361
      %v1091 = vunpack.c.l.b16 %v362
      %v1092 = vunpack.c.l.b16 %v364
      %v1093 = vunpack.c.l.b16 %v365
      %v1094 = vunpack.c.l.b16 %v367
      %v1095 = vunpack.c.l.b16 %v368
      %v1096 = vunpack.c.l.b16 %v370
      %v1097 = vunpack.c.l.b16 %v371
      %v1098 = vunpack.c.l.b16 %v373
      %v1099 = vunpack.c.l.b16 %v374
      %v1100 = vunpack.c.l.b16 %v376
      %v1101 = vunpack.c.l.b16 %v377
      %v1102 = vunpack.c.l.b16 %v379
      %v1103 = vunpack.c.l.b16 %v380
      %v1104 = vpack.c.b16 %v1073, %v1072
      %v1105 = vpack.c.b16 %v1075, %v1074
      %v1106 = vpack.c.b16 %v1077, %v1076
      %v1107 = vpack.c.b16 %v1079, %v1078
      %v1108 = vpack.c.b16 %v1081, %v1080
      %v1109 = vpack.c.b16 %v1083, %v1082
      %v1110 = vpack.c.b16 %v1085, %v1084
      %v1111 = vpack.c.b16 %v1087, %v1086
      %v1112 = vpack.c.b16 %v1089, %v1088
      %v1113 = vpack.c.b16 %v1091, %v1090
      %v1114 = vpack.c.b16 %v1093, %v1092
      %v1115 = vpack.c.b16 %v1095, %v1094
      %v1116 = vpack.c.b16 %v1097, %v1096
      %v1117 = vpack.c.b16 %v1099, %v1098
      %v1118 = vpack.c.b16 %v1101, %v1100
      %v1119 = vpack.c.b16 %v1103, %v1102
      %v1121 = vsel %vm826, %v1104, 0
      %v1124 = vsel %vm826, %v1105, 0
      %v1127 = vsel %vm826, %v1106, 0
      %v1130 = vsel %vm826, %v1107, 0
      %v1133 = vsel %vm826, %v1108, 0
      %v1136 = vsel %vm826, %v1109, 0
      %v1139 = vsel %vm826, %v1110, 0
      %v1142 = vsel %vm826, %v1111, 0
      %v1145 = vsel %vm826, %v1112, 0
      %v1148 = vsel %vm826, %v1113, 0
      %v1151 = vsel %vm826, %v1114, 0
      %v1154 = vsel %vm826, %v1115, 0
      %v1157 = vsel %vm826, %v1116, 0
      %v1160 = vsel %vm826, %v1117, 0
      %v1163 = vsel %vm826, %v1118, 0
      %v1166 = vsel %vm826, %v1119, 0
      %v1169 = vsel %vm875, %v388, 0
      %1171 = vmatprep.subr.bf16.mxu0 0
      %1172 = vmatpush1.bf16.msra.mxu0 %v1169
      %1173 = vmatprep.subr.bf16.mxu0 0
      %1174 = vmatpush1.bf16.msra.mxu0 0
      %1175 = vmatprep.subr.bf16.mxu0 0
      %1176 = vmatpush1.bf16.msra.mxu0 0
      %1177 = vmatprep.subr.bf16.mxu0 0
      %1178 = vmatpush1.bf16.msra.mxu0 0
      %1179 = vmatprep.subr.bf16.mxu0 0
      %1180 = vmatpush1.bf16.msra.mxu0 0
      %1181 = vmatprep.subr.bf16.mxu0 0
      %1182 = vmatpush1.bf16.msra.mxu0 0
      %1183 = vmatprep.subr.bf16.mxu0 0
      %1184 = vmatpush1.bf16.msra.mxu0 0
      %1185 = vmatprep.subr.bf16.mxu0 0
      %1186 = vmatpush1.bf16.msra.mxu0 0
      %1187 = vmatprep.subr.bf16.mxu0 0
      %1188 = vmatpush1.bf16.msra.mxu0 0
      %1189 = vmatprep.subr.bf16.mxu0 0
      %1190 = vmatpush1.bf16.msra.mxu0 0
      %1191 = vmatprep.subr.bf16.mxu0 0
      %1192 = vmatpush1.bf16.msra.mxu0 0
      %1193 = vmatprep.subr.bf16.mxu0 0
      %1194 = vmatpush1.bf16.msra.mxu0 0
      %1195 = vmatprep.subr.bf16.mxu0 0
      %1196 = vmatpush1.bf16.msra.mxu0 0
      %1197 = vmatprep.subr.bf16.mxu0 0
      %1198 = vmatpush1.bf16.msra.mxu0 0
      %1199 = vmatprep.subr.bf16.mxu0 0
      %1200 = vmatpush1.bf16.msra.mxu0 0
      %1201 = vmatprep.subr.bf16.mxu0 0
      %1202 = vmatpush1.bf16.msra.mxu0 0
      %1203 = vmatprep.mubr.bf16.mxu0 0
      %1204 = vmatmul.mubr.bf16.gmra.mrb[0].mxu0 %v1121
      %v1205 = vpop.f32.mrb[0].mxu0
      %v1206 = vadd.f32 %v914, %v1205
      %v1207 = vpop.f32.mrb[0].mxu0
      %v1208 = vpop.f32.mrb[0].mxu0
      %v1209 = vadd.f32 %v917, %v1208
      %v1210 = vpop.f32.mrb[0].mxu0
      %1211 = vmatprep.mubr.bf16.mxu0 0
      %1212 = vmatmul.mubr.bf16.gmra.mrb[0].mxu0 %v1124
      %v1213 = vpop.f32.mrb[0].mxu0
      %v1214 = vadd.f32 %v922, %v1213
      %v1215 = vpop.f32.mrb[0].mxu0
      %v1216 = vpop.f32.mrb[0].mxu0
      %v1217 = vadd.f32 %v925, %v1216
      %v1218 = vpop.f32.mrb[0].mxu0
      %1219 = vmatprep.mubr.bf16.mxu0 0
      %1220 = vmatmul.mubr.bf16.gmra.mrb[0].mxu0 %v1127
      %v1221 = vpop.f32.mrb[0].mxu0
      %v1222 = vadd.f32 %v930, %v1221
      %v1223 = vpop.f32.mrb[0].mxu0
      %v1224 = vpop.f32.mrb[0].mxu0
      %v1225 = vadd.f32 %v933, %v1224
      %v1226 = vpop.f32.mrb[0].mxu0
      %1227 = vmatprep.mubr.bf16.mxu0 0
      %1228 = vmatmul.mubr.bf16.gmra.mrb[0].mxu0 %v1130
      %v1229 = vpop.f32.mrb[0].mxu0
      %v1230 = vadd.f32 %v938, %v1229
      %v1231 = vpop.f32.mrb[0].mxu0
      %v1232 = vpop.f32.mrb[0].mxu0
      %v1233 = vadd.f32 %v941, %v1232
      %v1234 = vpop.f32.mrb[0].mxu0
      %1235 = vmatprep.mubr.bf16.mxu0 0
      %1236 = vmatmul.mubr.bf16.gmra.mrb[0].mxu0 %v1133
      %v1237 = vpop.f32.mrb[0].mxu0
      %v1238 = vadd.f32 %v946, %v1237
      %v1239 = vpop.f32.mrb[0].mxu0
      %v1240 = vpop.f32.mrb[0].mxu0
      %v1241 = vadd.f32 %v949, %v1240
      %v1242 = vpop.f32.mrb[0].mxu0
      %1243 = vmatprep.mubr.bf16.mxu0 0
      %1244 = vmatmul.mubr.bf16.gmra.mrb[0].mxu0 %v1136
      %v1245 = vpop.f32.mrb[0].mxu0
      %v1246 = vadd.f32 %v954, %v1245
      %v1247 = vpop.f32.mrb[0].mxu0
      %v1248 = vpop.f32.mrb[0].mxu0
      %v1249 = vadd.f32 %v957, %v1248
      %v1250 = vpop.f32.mrb[0].mxu0
      %1251 = vmatprep.mubr.bf16.mxu0 0
      %1252 = vmatmul.mubr.bf16.gmra.mrb[0].mxu0 %v1139
      %v1253 = vpop.f32.mrb[0].mxu0
      %v1254 = vadd.f32 %v962, %v1253
      %v1255 = vpop.f32.mrb[0].mxu0
      %v1256 = vpop.f32.mrb[0].mxu0
      %v1257 = vadd.f32 %v965, %v1256
      %v1258 = vpop.f32.mrb[0].mxu0
      %1259 = vmatprep.mubr.bf16.mxu0 0
      %1260 = vmatmul.mubr.bf16.gmra.mrb[0].mxu0 %v1142
      %v1261 = vpop.f32.mrb[0].mxu0
      %v1262 = vadd.f32 %v970, %v1261
      %v1263 = vpop.f32.mrb[0].mxu0
      %v1264 = vpop.f32.mrb[0].mxu0
      %v1265 = vadd.f32 %v973, %v1264
      %v1266 = vpop.f32.mrb[0].mxu0
      %1267 = vmatprep.mubr.bf16.mxu0 0
      %1268 = vmatmul.mubr.bf16.gmra.mrb[0].mxu0 %v1145
      %v1269 = vpop.f32.mrb[0].mxu0
      %v1270 = vadd.f32 %v978, %v1269
      %v1271 = vpop.f32.mrb[0].mxu0
      %v1272 = vpop.f32.mrb[0].mxu0
      %v1273 = vadd.f32 %v981, %v1272
      %v1274 = vpop.f32.mrb[0].mxu0
      %1275 = vmatprep.mubr.bf16.mxu0 0
      %1276 = vmatmul.mubr.bf16.gmra.mrb[0].mxu0 %v1148
      %v1277 = vpop.f32.mrb[0].mxu0
      %v1278 = vadd.f32 %v986, %v1277
      %v1279 = vpop.f32.mrb[0].mxu0
      %v1280 = vpop.f32.mrb[0].mxu0
      %v1281 = vadd.f32 %v989, %v1280
      %v1282 = vpop.f32.mrb[0].mxu0
      %1283 = vmatprep.mubr.bf16.mxu0 0
      %1284 = vmatmul.mubr.bf16.gmra.mrb[0].mxu0 %v1151
      %v1285 = vpop.f32.mrb[0].mxu0
      %v1286 = vadd.f32 %v994, %v1285
      %v1287 = vpop.f32.mrb[0].mxu0
      %v1288 = vpop.f32.mrb[0].mxu0
      %v1289 = vadd.f32 %v997, %v1288
      %v1290 = vpop.f32.mrb[0].mxu0
      %1291 = vmatprep.mubr.bf16.mxu0 0
      %1292 = vmatmul.mubr.bf16.gmra.mrb[0].mxu0 %v1154
      %v1293 = vpop.f32.mrb[0].mxu0
      %v1294 = vadd.f32 %v1002, %v1293
      %v1295 = vpop.f32.mrb[0].mxu0
      %v1296 = vpop.f32.mrb[0].mxu0
      %v1297 = vadd.f32 %v1005, %v1296
      %v1298 = vpop.f32.mrb[0].mxu0
      %1299 = vmatprep.mubr.bf16.mxu0 0
      %1300 = vmatmul.mubr.bf16.gmra.mrb[0].mxu0 %v1157
      %v1301 = vpop.f32.mrb[0].mxu0
      %v1302 = vadd.f32 %v1010, %v1301
      %v1303 = vpop.f32.mrb[0].mxu0
      %v1304 = vpop.f32.mrb[0].mxu0
      %v1305 = vadd.f32 %v1013, %v1304
      %v1306 = vpop.f32.mrb[0].mxu0
      %1307 = vmatprep.mubr.bf16.mxu0 0
      %1308 = vmatmul.mubr.bf16.gmra.mrb[0].mxu0 %v1160
      %v1309 = vpop.f32.mrb[0].mxu0
      %v1310 = vadd.f32 %v1018, %v1309
      %v1311 = vpop.f32.mrb[0].mxu0
      %v1312 = vpop.f32.mrb[0].mxu0
      %v1313 = vadd.f32 %v1021, %v1312
      %v1314 = vpop.f32.mrb[0].mxu0
      %1315 = vmatprep.mubr.bf16.mxu0 0
      %1316 = vmatmul.mubr.bf16.gmra.mrb[0].mxu0 %v1163
      %v1317 = vpop.f32.mrb[0].mxu0
      %v1318 = vadd.f32 %v1026, %v1317
      %v1319 = vpop.f32.mrb[0].mxu0
      %v1320 = vpop.f32.mrb[0].mxu0
      %v1321 = vadd.f32 %v1029, %v1320
      %v1322 = vpop.f32.mrb[0].mxu0
      %1323 = vmatprep.mubr.bf16.mxu0 0
      %1324 = vmatmul.mubr.bf16.gmra.mrb[0].mxu0 %v1166
      %v1325 = vpop.f32.mrb[0].mxu0
      %v1326 = vadd.f32 %v1034, %v1325
      %v1327 = vpop.f32.mrb[0].mxu0
      %v1328 = vpop.f32.mrb[0].mxu0
      %v1329 = vadd.f32 %v1037, %v1328
      %v1330 = vpop.f32.mrb[0].mxu0
      %1331 = vdwg.mxu0
      %vm1348 = vcmask 1042432
      %vm1349 = vcmask 1046532
      %vm1350 = vmor %vm1348, %vm1349
      %v1351 = vrot.slane %v334, 5
      %v1352 = vrot.slane %v1351, 4
      %v1353 = vrot.slane %v335, 5
      %v1354 = vsel %vm1350, %v1352, %v1353
      %v1355 = vrot.slane %v1353, 4
      %v1356 = vrot.slane %v336, 5
      %v1357 = vsel %vm1350, %v1355, %v1356
      %v1358 = vrot.slane %v337, 5
      %v1359 = vrot.slane %v1358, 4
      %v1360 = vrot.slane %v338, 5
      %v1361 = vsel %vm1350, %v1359, %v1360
      %v1362 = vrot.slane %v1360, 4
      %v1363 = vrot.slane %v339, 5
      %v1364 = vsel %vm1350, %v1362, %v1363
      %v1365 = vrot.slane %v340, 5
      %v1366 = vrot.slane %v1365, 4
      %v1367 = vrot.slane %v341, 5
      %v1368 = vsel %vm1350, %v1366, %v1367
      %v1369 = vrot.slane %v1367, 4
      %v1370 = vrot.slane %v342, 5
      %v1371 = vsel %vm1350, %v1369, %v1370
      %v1372 = vrot.slane %v343, 5
      %v1373 = vrot.slane %v1372, 4
      %v1374 = vrot.slane %v344, 5
      %v1375 = vsel %vm1350, %v1373, %v1374
      %v1376 = vrot.slane %v1374, 4
      %v1377 = vrot.slane %v345, 5
      %v1378 = vsel %vm1350, %v1376, %v1377
      %v1379 = vrot.slane %v346, 5
      %v1380 = vrot.slane %v1379, 4
      %v1381 = vrot.slane %v347, 5
      %v1382 = vsel %vm1350, %v1380, %v1381
      %v1383 = vrot.slane %v1381, 4
      %v1384 = vrot.slane %v348, 5
      %v1385 = vsel %vm1350, %v1383, %v1384
      %v1386 = vrot.slane %v349, 5
      %v1387 = vrot.slane %v1386, 4
      %v1388 = vrot.slane %v350, 5
      %v1389 = vsel %vm1350, %v1387, %v1388
      %v1390 = vrot.slane %v1388, 4
      %v1391 = vrot.slane %v351, 5
      %v1392 = vsel %vm1350, %v1390, %v1391
      %v1393 = vrot.slane %v352, 5
      %v1394 = vrot.slane %v1393, 4
      %v1395 = vrot.slane %v353, 5
      %v1396 = vsel %vm1350, %v1394, %v1395
      %v1397 = vrot.slane %v1395, 4
      %v1398 = vrot.slane %v354, 5
      %v1399 = vsel %vm1350, %v1397, %v1398
      %v1400 = vrot.slane %v355, 5
      %v1401 = vrot.slane %v1400, 4
      %v1402 = vrot.slane %v356, 5
      %v1403 = vsel %vm1350, %v1401, %v1402
      %v1404 = vrot.slane %v1402, 4
      %v1405 = vrot.slane %v357, 5
      %v1406 = vsel %vm1350, %v1404, %v1405
      %v1407 = vrot.slane %v358, 5
      %v1408 = vrot.slane %v1407, 4
      %v1409 = vrot.slane %v359, 5
      %v1410 = vsel %vm1350, %v1408, %v1409
      %v1411 = vrot.slane %v1409, 4
      %v1412 = vrot.slane %v360, 5
      %v1413 = vsel %vm1350, %v1411, %v1412
      %v1414 = vrot.slane %v361, 5
      %v1415 = vrot.slane %v1414, 4
      %v1416 = vrot.slane %v362, 5
      %v1417 = vsel %vm1350, %v1415, %v1416
      %v1418 = vrot.slane %v1416, 4
      %v1419 = vrot.slane %v363, 5
      %v1420 = vsel %vm1350, %v1418, %v1419
      %v1421 = vrot.slane %v364, 5
      %v1422 = vrot.slane %v1421, 4
      %v1423 = vrot.slane %v365, 5
      %v1424 = vsel %vm1350, %v1422, %v1423
      %v1425 = vrot.slane %v1423, 4
      %v1426 = vrot.slane %v366, 5
      %v1427 = vsel %vm1350, %v1425, %v1426
      %v1428 = vrot.slane %v367, 5
      %v1429 = vrot.slane %v1428, 4
      %v1430 = vrot.slane %v368, 5
      %v1431 = vsel %vm1350, %v1429, %v1430
      %v1432 = vrot.slane %v1430, 4
      %v1433 = vrot.slane %v369, 5
      %v1434 = vsel %vm1350, %v1432, %v1433
      %v1435 = vrot.slane %v370, 5
      %v1436 = vrot.slane %v1435, 4
      %v1437 = vrot.slane %v371, 5
      %v1438 = vsel %vm1350, %v1436, %v1437
      %v1439 = vrot.slane %v1437, 4
      %v1440 = vrot.slane %v372, 5
      %v1441 = vsel %vm1350, %v1439, %v1440
      %v1442 = vrot.slane %v373, 5
      %v1443 = vrot.slane %v1442, 4
      %v1444 = vrot.slane %v374, 5
      %v1445 = vsel %vm1350, %v1443, %v1444
      %v1446 = vrot.slane %v1444, 4
      %v1447 = vrot.slane %v375, 5
      %v1448 = vsel %vm1350, %v1446, %v1447
      %v1449 = vrot.slane %v376, 5
      %v1450 = vrot.slane %v1449, 4
      %v1451 = vrot.slane %v377, 5
      %v1452 = vsel %vm1350, %v1450, %v1451
      %v1453 = vrot.slane %v1451, 4
      %v1454 = vrot.slane %v378, 5
      %v1455 = vsel %vm1350, %v1453, %v1454
      %v1456 = vrot.slane %v379, 5
      %v1457 = vrot.slane %v1456, 4
      %v1458 = vrot.slane %v380, 5
      %v1459 = vsel %vm1350, %v1457, %v1458
      %v1460 = vrot.slane %v1458, 4
      %v1461 = vrot.slane %v381, 5
      %v1462 = vsel %vm1350, %v1460, %v1461
      %s1463 = scalar_lea.vmem %s1, 4
      %v1464 = vld [vmem:[%s1463] sm:$0x3]
      %v1465 = vunpack.c.l.b16 %v1354
      %v1466 = vunpack.c.l.b16 %v1357
      %v1467 = vunpack.c.l.b16 %v1361
      %v1468 = vunpack.c.l.b16 %v1364
      %v1469 = vunpack.c.l.b16 %v1368
      %v1470 = vunpack.c.l.b16 %v1371
      %v1471 = vunpack.c.l.b16 %v1375
      %v1472 = vunpack.c.l.b16 %v1378
      %v1473 = vunpack.c.l.b16 %v1382
      %v1474 = vunpack.c.l.b16 %v1385
      %v1475 = vunpack.c.l.b16 %v1389
      %v1476 = vunpack.c.l.b16 %v1392
      %v1477 = vunpack.c.l.b16 %v1396
      %v1478 = vunpack.c.l.b16 %v1399
      %v1479 = vunpack.c.l.b16 %v1403
      %v1480 = vunpack.c.l.b16 %v1406
      %v1481 = vunpack.c.l.b16 %v1410
      %v1482 = vunpack.c.l.b16 %v1413
      %v1483 = vunpack.c.l.b16 %v1417
      %v1484 = vunpack.c.l.b16 %v1420
      %v1485 = vunpack.c.l.b16 %v1424
      %v1486 = vunpack.c.l.b16 %v1427
      %v1487 = vunpack.c.l.b16 %v1431
      %v1488 = vunpack.c.l.b16 %v1434
      %v1489 = vunpack.c.l.b16 %v1438
      %v1490 = vunpack.c.l.b16 %v1441
      %v1491 = vunpack.c.l.b16 %v1445
      %v1492 = vunpack.c.l.b16 %v1448
      %v1493 = vunpack.c.l.b16 %v1452
      %v1494 = vunpack.c.l.b16 %v1455
      %v1495 = vunpack.c.l.b16 %v1459
      %v1496 = vunpack.c.l.b16 %v1462
      %v1497 = vpack.c.b16 %v1466, %v1465
      %v1498 = vpack.c.b16 %v1468, %v1467
      %v1499 = vpack.c.b16 %v1470, %v1469
      %v1500 = vpack.c.b16 %v1472, %v1471
      %v1501 = vpack.c.b16 %v1474, %v1473
      %v1502 = vpack.c.b16 %v1476, %v1475
      %v1503 = vpack.c.b16 %v1478, %v1477
      %v1504 = vpack.c.b16 %v1480, %v1479
      %v1505 = vpack.c.b16 %v1482, %v1481
      %v1506 = vpack.c.b16 %v1484, %v1483
      %v1507 = vpack.c.b16 %v1486, %v1485
      %v1508 = vpack.c.b16 %v1488, %v1487
      %v1509 = vpack.c.b16 %v1490, %v1489
      %v1510 = vpack.c.b16 %v1492, %v1491
      %v1511 = vpack.c.b16 %v1494, %v1493
      %v1512 = vpack.c.b16 %v1496, %v1495
      %v1514 = vsel %vm826, %v1497, 0
      %v1517 = vsel %vm826, %v1498, 0
      %v1520 = vsel %vm826, %v1499, 0
      %v1523 = vsel %vm826, %v1500, 0
      %v1526 = vsel %vm826, %v1501, 0
      %v1529 = vsel %vm826, %v1502, 0
      %v1532 = vsel %vm826, %v1503, 0
      %v1535 = vsel %vm826, %v1504, 0
      %v1538 = vsel %vm826, %v1505, 0
      %v1541 = vsel %vm826, %v1506, 0
      %v1544 = vsel %vm826, %v1507, 0
      %v1547 = vsel %vm826, %v1508, 0
      %v1550 = vsel %vm826, %v1509, 0
      %v1553 = vsel %vm826, %v1510, 0
      %v1556 = vsel %vm826, %v1511, 0
      %v1559 = vsel %vm826, %v1512, 0
      %v1562 = vsel %vm875, %v1464, 0
      %1564 = vmatprep.subr.bf16.mxu0 0
      %1565 = vmatpush1.bf16.msra.mxu0 %v1562
      %1566 = vmatprep.subr.bf16.mxu0 0
      %1567 = vmatpush1.bf16.msra.mxu0 0
      %1568 = vmatprep.subr.bf16.mxu0 0
      %1569 = vmatpush1.bf16.msra.mxu0 0
      %1570 = vmatprep.subr.bf16.mxu0 0
      %1571 = vmatpush1.bf16.msra.mxu0 0
      %1572 = vmatprep.subr.bf16.mxu0 0
      %1573 = vmatpush1.bf16.msra.mxu0 0
      %1574 = vmatprep.subr.bf16.mxu0 0
      %1575 = vmatpush1.bf16.msra.mxu0 0
      %1576 = vmatprep.subr.bf16.mxu0 0
      %1577 = vmatpush1.bf16.msra.mxu0 0
      %1578 = vmatprep.subr.bf16.mxu0 0
      %1579 = vmatpush1.bf16.msra.mxu0 0
      %1580 = vmatprep.subr.bf16.mxu0 0
      %1581 = vmatpush1.bf16.msra.mxu0 0
      %1582 = vmatprep.subr.bf16.mxu0 0
      %1583 = vmatpush1.bf16.msra.mxu0 0
      %1584 = vmatprep.subr.bf16.mxu0 0
      %1585 = vmatpush1.bf16.msra.mxu0 0
      %1586 = vmatprep.subr.bf16.mxu0 0
      %1587 = vmatpush1.bf16.msra.mxu0 0
      %1588 = vmatprep.subr.bf16.mxu0 0
      %1589 = vmatpush1.bf16.msra.mxu0 0
      %1590 = vmatprep.subr.bf16.mxu0 0
      %1591 = vmatpush1.bf16.msra.mxu0 0
      %1592 = vmatprep.subr.bf16.mxu0 0
      %1593 = vmatpush1.bf16.msra.mxu0 0
      %1594 = vmatprep.subr.bf16.mxu0 0
      %1595 = vmatpush1.bf16.msra.mxu0 0
      %1596 = vmatprep.mubr.bf16.mxu0 0
      %1597 = vmatmul.mubr.bf16.gmra.mrb[0].mxu0 %v1514
      %v1598 = vpop.f32.mrb[0].mxu0
      %v1599 = vadd.f32 0.0, %v1598
      %v1600 = vpop.f32.mrb[0].mxu0
      %v1601 = vpop.f32.mrb[0].mxu0
      %v1602 = vadd.f32 0.0, %v1601
      %v1603 = vpop.f32.mrb[0].mxu0
      %1604 = vmatprep.mubr.bf16.mxu0 0
      %1605 = vmatmul.mubr.bf16.gmra.mrb[0].mxu0 %v1517
      %v1606 = vpop.f32.mrb[0].mxu0
      %v1607 = vadd.f32 0.0, %v1606
      %v1608 = vpop.f32.mrb[0].mxu0
      %v1609 = vpop.f32.mrb[0].mxu0
      %v1610 = vadd.f32 0.0, %v1609
      %v1611 = vpop.f32.mrb[0].mxu0
      %1612 = vmatprep.mubr.bf16.mxu0 0
      %1613 = vmatmul.mubr.bf16.gmra.mrb[0].mxu0 %v1520
      %v1614 = vpop.f32.mrb[0].mxu0
      %v1615 = vadd.f32 0.0, %v1614
      %v1616 = vpop.f32.mrb[0].mxu0
      %v1617 = vpop.f32.mrb[0].mxu0
      %v1618 = vadd.f32 0.0, %v1617
      %v1619 = vpop.f32.mrb[0].mxu0
      %1620 = vmatprep.mubr.bf16.mxu0 0
      %1621 = vmatmul.mubr.bf16.gmra.mrb[0].mxu0 %v1523
      %v1622 = vpop.f32.mrb[0].mxu0
      %v1623 = vadd.f32 0.0, %v1622
      %v1624 = vpop.f32.mrb[0].mxu0
      %v1625 = vpop.f32.mrb[0].mxu0
      %v1626 = vadd.f32 0.0, %v1625
      %v1627 = vpop.f32.mrb[0].mxu0
      %1628 = vmatprep.mubr.bf16.mxu0 0
      %1629 = vmatmul.mubr.bf16.gmra.mrb[0].mxu0 %v1526
      %v1630 = vpop.f32.mrb[0].mxu0
      %v1631 = vadd.f32 0.0, %v1630
      %v1632 = vpop.f32.mrb[0].mxu0
      %v1633 = vpop.f32.mrb[0].mxu0
      %v1634 = vadd.f32 0.0, %v1633
      %v1635 = vpop.f32.mrb[0].mxu0
      %1636 = vmatprep.mubr.bf16.mxu0 0
      %1637 = vmatmul.mubr.bf16.gmra.mrb[0].mxu0 %v1529
      %v1638 = vpop.f32.mrb[0].mxu0
      %v1639 = vadd.f32 0.0, %v1638
      %v1640 = vpop.f32.mrb[0].mxu0
      %v1641 = vpop.f32.mrb[0].mxu0
      %v1642 = vadd.f32 0.0, %v1641
      %v1643 = vpop.f32.mrb[0].mxu0
      %1644 = vmatprep.mubr.bf16.mxu0 0
      %1645 = vmatmul.mubr.bf16.gmra.mrb[0].mxu0 %v1532
      %v1646 = vpop.f32.mrb[0].mxu0
      %v1647 = vadd.f32 0.0, %v1646
      %v1648 = vpop.f32.mrb[0].mxu0
      %v1649 = vpop.f32.mrb[0].mxu0
      %v1650 = vadd.f32 0.0, %v1649
      %v1651 = vpop.f32.mrb[0].mxu0
      %1652 = vmatprep.mubr.bf16.mxu0 0
      %1653 = vmatmul.mubr.bf16.gmra.mrb[0].mxu0 %v1535
      %v1654 = vpop.f32.mrb[0].mxu0
      %v1655 = vadd.f32 0.0, %v1654
      %v1656 = vpop.f32.mrb[0].mxu0
      %v1657 = vpop.f32.mrb[0].mxu0
      %v1658 = vadd.f32 0.0, %v1657
      %v1659 = vpop.f32.mrb[0].mxu0
      %1660 = vmatprep.mubr.bf16.mxu0 0
      %1661 = vmatmul.mubr.bf16.gmra.mrb[0].mxu0 %v1538
      %v1662 = vpop.f32.mrb[0].mxu0
      %v1663 = vadd.f32 0.0, %v1662
      %v1664 = vpop.f32.mrb[0].mxu0
      %v1665 = vpop.f32.mrb[0].mxu0
      %v1666 = vadd.f32 0.0, %v1665
      %v1667 = vpop.f32.mrb[0].mxu0
      %1668 = vmatprep.mubr.bf16.mxu0 0
      %1669 = vmatmul.mubr.bf16.gmra.mrb[0].mxu0 %v1541
      %v1670 = vpop.f32.mrb[0].mxu0
      %v1671 = vadd.f32 0.0, %v1670
      %v1672 = vpop.f32.mrb[0].mxu0
      %v1673 = vpop.f32.mrb[0].mxu0
      %v1674 = vadd.f32 0.0, %v1673
      %v1675 = vpop.f32.mrb[0].mxu0
      %1676 = vmatprep.mubr.bf16.mxu0 0
      %1677 = vmatmul.mubr.bf16.gmra.mrb[0].mxu0 %v1544
      %v1678 = vpop.f32.mrb[0].mxu0
      %v1679 = vadd.f32 0.0, %v1678
      %v1680 = vpop.f32.mrb[0].mxu0
      %v1681 = vpop.f32.mrb[0].mxu0
      %v1682 = vadd.f32 0.0, %v1681
      %v1683 = vpop.f32.mrb[0].mxu0
      %1684 = vmatprep.mubr.bf16.mxu0 0
      %1685 = vmatmul.mubr.bf16.gmra.mrb[0].mxu0 %v1547
      %v1686 = vpop.f32.mrb[0].mxu0
      %v1687 = vadd.f32 0.0, %v1686
      %v1688 = vpop.f32.mrb[0].mxu0
      %v1689 = vpop.f32.mrb[0].mxu0
      %v1690 = vadd.f32 0.0, %v1689
      %v1691 = vpop.f32.mrb[0].mxu0
      %1692 = vmatprep.mubr.bf16.mxu0 0
      %1693 = vmatmul.mubr.bf16.gmra.mrb[0].mxu0 %v1550
      %v1694 = vpop.f32.mrb[0].mxu0
      %v1695 = vadd.f32 0.0, %v1694
      %v1696 = vpop.f32.mrb[0].mxu0
      %v1697 = vpop.f32.mrb[0].mxu0
      %v1698 = vadd.f32 0.0, %v1697
      %v1699 = vpop.f32.mrb[0].mxu0
      %1700 = vmatprep.mubr.bf16.mxu0 0
      %1701 = vmatmul.mubr.bf16.gmra.mrb[0].mxu0 %v1553
      %v1702 = vpop.f32.mrb[0].mxu0
      %v1703 = vadd.f32 0.0, %v1702
      %v1704 = vpop.f32.mrb[0].mxu0
      %v1705 = vpop.f32.mrb[0].mxu0
      %v1706 = vadd.f32 0.0, %v1705
      %v1707 = vpop.f32.mrb[0].mxu0
      %1708 = vmatprep.mubr.bf16.mxu0 0
      %1709 = vmatmul.mubr.bf16.gmra.mrb[0].mxu0 %v1556
      %v1710 = vpop.f32.mrb[0].mxu0
      %v1711 = vadd.f32 0.0, %v1710
      %v1712 = vpop.f32.mrb[0].mxu0
      %v1713 = vpop.f32.mrb[0].mxu0
      %v1714 = vadd.f32 0.0, %v1713
      %v1715 = vpop.f32.mrb[0].mxu0
      %1716 = vmatprep.mubr.bf16.mxu0 0
      %1717 = vmatmul.mubr.bf16.gmra.mrb[0].mxu0 %v1559
      %v1718 = vpop.f32.mrb[0].mxu0
      %v1719 = vadd.f32 0.0, %v1718
      %v1720 = vpop.f32.mrb[0].mxu0
      %v1721 = vpop.f32.mrb[0].mxu0
      %v1722 = vadd.f32 0.0, %v1721
      %v1723 = vpop.f32.mrb[0].mxu0
      %1724 = vdwg.mxu0
      %v1725 = vadd.f32 %v1206, %v1599
      %v1726 = vadd.f32 %v1209, %v1602
      %v1727 = vadd.f32 %v1214, %v1607
      %v1728 = vadd.f32 %v1217, %v1610
      %v1729 = vadd.f32 %v1222, %v1615
      %v1730 = vadd.f32 %v1225, %v1618
      %v1731 = vadd.f32 %v1230, %v1623
      %v1732 = vadd.f32 %v1233, %v1626
      %v1733 = vadd.f32 %v1238, %v1631
      %v1734 = vadd.f32 %v1241, %v1634
      %v1735 = vadd.f32 %v1246, %v1639
      %v1736 = vadd.f32 %v1249, %v1642
      %v1737 = vadd.f32 %v1254, %v1647
      %v1738 = vadd.f32 %v1257, %v1650
      %v1739 = vadd.f32 %v1262, %v1655
      %v1740 = vadd.f32 %v1265, %v1658
      %v1741 = vadd.f32 %v1270, %v1663
      %v1742 = vadd.f32 %v1273, %v1666
      %v1743 = vadd.f32 %v1278, %v1671
      %v1744 = vadd.f32 %v1281, %v1674
      %v1745 = vadd.f32 %v1286, %v1679
      %v1746 = vadd.f32 %v1289, %v1682
      %v1747 = vadd.f32 %v1294, %v1687
      %v1748 = vadd.f32 %v1297, %v1690
      %v1749 = vadd.f32 %v1302, %v1695
      %v1750 = vadd.f32 %v1305, %v1698
      %v1751 = vadd.f32 %v1310, %v1703
      %v1752 = vadd.f32 %v1313, %v1706
      %v1753 = vadd.f32 %v1318, %v1711
      %v1754 = vadd.f32 %v1321, %v1714
      %v1755 = vadd.f32 %v1326, %v1719
      %v1756 = vadd.f32 %v1329, %v1722
      %s1757 = scalar_lea.vmem %s1, 6
      %v1758 = vld [vmem:[%s1757] sm:$0x3]
      %v1761 = vunpack.c.l.b16 %v382
      %v1762 = vunpack.c.l.b16 %v383
      %v1763 = vpack.c.b16 %v1762, %v1761
      %v1765 = vsel %vm826, %v1763, 0
      %v1768 = vsel %vm875, %v1758, 0
      %1770 = vmatprep.subr.bf16.mxu0 0
      %1771 = vmatpush1.bf16.msra.mxu0 %v1768
      %1772 = vmatprep.subr.bf16.mxu0 0
      %1773 = vmatpush1.bf16.msra.mxu0 0
      %1774 = vmatprep.subr.bf16.mxu0 0
      %1775 = vmatpush1.bf16.msra.mxu0 0
      %1776 = vmatprep.subr.bf16.mxu0 0
      %1777 = vmatpush1.bf16.msra.mxu0 0
      %1778 = vmatprep.subr.bf16.mxu0 0
      %1779 = vmatpush1.bf16.msra.mxu0 0
      %1780 = vmatprep.subr.bf16.mxu0 0
      %1781 = vmatpush1.bf16.msra.mxu0 0
      %1782 = vmatprep.subr.bf16.mxu0 0
      %1783 = vmatpush1.bf16.msra.mxu0 0
      %1784 = vmatprep.subr.bf16.mxu0 0
      %1785 = vmatpush1.bf16.msra.mxu0 0
      %1786 = vmatprep.subr.bf16.mxu0 0
      %1787 = vmatpush1.bf16.msra.mxu0 0
      %1788 = vmatprep.subr.bf16.mxu0 0
      %1789 = vmatpush1.bf16.msra.mxu0 0
      %1790 = vmatprep.subr.bf16.mxu0 0
      %1791 = vmatpush1.bf16.msra.mxu0 0
      %1792 = vmatprep.subr.bf16.mxu0 0
      %1793 = vmatpush1.bf16.msra.mxu0 0
      %1794 = vmatprep.subr.bf16.mxu0 0
      %1795 = vmatpush1.bf16.msra.mxu0 0
      %1796 = vmatprep.subr.bf16.mxu0 0
      %1797 = vmatpush1.bf16.msra.mxu0 0
      %1798 = vmatprep.subr.bf16.mxu0 0
      %1799 = vmatpush1.bf16.msra.mxu0 0
      %1800 = vmatprep.subr.bf16.mxu0 0
      %1801 = vmatpush1.bf16.msra.mxu0 0
      %1802 = vmatprep.mubr.bf16.mxu0 0
      %1803 = vmatmul.mubr.bf16.gmra.mrb[0].mxu0 %v1124
      %v1804 = vpop.f32.mrb[0].mxu0
      %v1805 = vadd.f32 0.0, %v1804
      %v1806 = vpop.f32.mrb[0].mxu0
      %v1807 = vpop.f32.mrb[0].mxu0
      %v1808 = vadd.f32 0.0, %v1807
      %v1809 = vpop.f32.mrb[0].mxu0
      %1810 = vmatprep.mubr.bf16.mxu0 0
      %1811 = vmatmul.mubr.bf16.gmra.mrb[0].mxu0 %v1127
      %v1812 = vpop.f32.mrb[0].mxu0
      %v1813 = vadd.f32 0.0, %v1812
      %v1814 = vpop.f32.mrb[0].mxu0
      %v1815 = vpop.f32.mrb[0].mxu0
      %v1816 = vadd.f32 0.0, %v1815
      %v1817 = vpop.f32.mrb[0].mxu0
      %1818 = vmatprep.mubr.bf16.mxu0 0
      %1819 = vmatmul.mubr.bf16.gmra.mrb[0].mxu0 %v1130
      %v1820 = vpop.f32.mrb[0].mxu0
      %v1821 = vadd.f32 0.0, %v1820
      %v1822 = vpop.f32.mrb[0].mxu0
      %v1823 = vpop.f32.mrb[0].mxu0
      %v1824 = vadd.f32 0.0, %v1823
      %v1825 = vpop.f32.mrb[0].mxu0
      %1826 = vmatprep.mubr.bf16.mxu0 0
      %1827 = vmatmul.mubr.bf16.gmra.mrb[0].mxu0 %v1133
      %v1828 = vpop.f32.mrb[0].mxu0
      %v1829 = vadd.f32 0.0, %v1828
      %v1830 = vpop.f32.mrb[0].mxu0
      %v1831 = vpop.f32.mrb[0].mxu0
      %v1832 = vadd.f32 0.0, %v1831
      %v1833 = vpop.f32.mrb[0].mxu0
      %1834 = vmatprep.mubr.bf16.mxu0 0
      %1835 = vmatmul.mubr.bf16.gmra.mrb[0].mxu0 %v1136
      %v1836 = vpop.f32.mrb[0].mxu0
      %v1837 = vadd.f32 0.0, %v1836
      %v1838 = vpop.f32.mrb[0].mxu0
      %v1839 = vpop.f32.mrb[0].mxu0
      %v1840 = vadd.f32 0.0, %v1839
      %v1841 = vpop.f32.mrb[0].mxu0
      %1842 = vmatprep.mubr.bf16.mxu0 0
      %1843 = vmatmul.mubr.bf16.gmra.mrb[0].mxu0 %v1139
      %v1844 = vpop.f32.mrb[0].mxu0
      %v1845 = vadd.f32 0.0, %v1844
      %v1846 = vpop.f32.mrb[0].mxu0
      %v1847 = vpop.f32.mrb[0].mxu0
      %v1848 = vadd.f32 0.0, %v1847
      %v1849 = vpop.f32.mrb[0].mxu0
      %1850 = vmatprep.mubr.bf16.mxu0 0
      %1851 = vmatmul.mubr.bf16.gmra.mrb[0].mxu0 %v1142
      %v1852 = vpop.f32.mrb[0].mxu0
      %v1853 = vadd.f32 0.0, %v1852
      %v1854 = vpop.f32.mrb[0].mxu0
      %v1855 = vpop.f32.mrb[0].mxu0
      %v1856 = vadd.f32 0.0, %v1855
      %v1857 = vpop.f32.mrb[0].mxu0
      %1858 = vmatprep.mubr.bf16.mxu0 0
      %1859 = vmatmul.mubr.bf16.gmra.mrb[0].mxu0 %v1145
      %v1860 = vpop.f32.mrb[0].mxu0
      %v1861 = vadd.f32 0.0, %v1860
      %v1862 = vpop.f32.mrb[0].mxu0
      %v1863 = vpop.f32.mrb[0].mxu0
      %v1864 = vadd.f32 0.0, %v1863
      %v1865 = vpop.f32.mrb[0].mxu0
      %1866 = vmatprep.mubr.bf16.mxu0 0
      %1867 = vmatmul.mubr.bf16.gmra.mrb[0].mxu0 %v1148
      %v1868 = vpop.f32.mrb[0].mxu0
      %v1869 = vadd.f32 0.0, %v1868
      %v1870 = vpop.f32.mrb[0].mxu0
      %v1871 = vpop.f32.mrb[0].mxu0
      %v1872 = vadd.f32 0.0, %v1871
      %v1873 = vpop.f32.mrb[0].mxu0
      %1874 = vmatprep.mubr.bf16.mxu0 0
      %1875 = vmatmul.mubr.bf16.gmra.mrb[0].mxu0 %v1151
      %v1876 = vpop.f32.mrb[0].mxu0
      %v1877 = vadd.f32 0.0, %v1876
      %v1878 = vpop.f32.mrb[0].mxu0
      %v1879 = vpop.f32.mrb[0].mxu0
      %v1880 = vadd.f32 0.0, %v1879
      %v1881 = vpop.f32.mrb[0].mxu0
      %1882 = vmatprep.mubr.bf16.mxu0 0
      %1883 = vmatmul.mubr.bf16.gmra.mrb[0].mxu0 %v1154
      %v1884 = vpop.f32.mrb[0].mxu0
      %v1885 = vadd.f32 0.0, %v1884
      %v1886 = vpop.f32.mrb[0].mxu0
      %v1887 = vpop.f32.mrb[0].mxu0
      %v1888 = vadd.f32 0.0, %v1887
      %v1889 = vpop.f32.mrb[0].mxu0
      %1890 = vmatprep.mubr.bf16.mxu0 0
      %1891 = vmatmul.mubr.bf16.gmra.mrb[0].mxu0 %v1157
      %v1892 = vpop.f32.mrb[0].mxu0
      %v1893 = vadd.f32 0.0, %v1892
      %v1894 = vpop.f32.mrb[0].mxu0
      %v1895 = vpop.f32.mrb[0].mxu0
      %v1896 = vadd.f32 0.0, %v1895
      %v1897 = vpop.f32.mrb[0].mxu0
      %1898 = vmatprep.mubr.bf16.mxu0 0
      %1899 = vmatmul.mubr.bf16.gmra.mrb[0].mxu0 %v1160
      %v1900 = vpop.f32.mrb[0].mxu0
      %v1901 = vadd.f32 0.0, %v1900
      %v1902 = vpop.f32.mrb[0].mxu0
      %v1903 = vpop.f32.mrb[0].mxu0
      %v1904 = vadd.f32 0.0, %v1903
      %v1905 = vpop.f32.mrb[0].mxu0
      %1906 = vmatprep.mubr.bf16.mxu0 0
      %1907 = vmatmul.mubr.bf16.gmra.mrb[0].mxu0 %v1163
      %v1908 = vpop.f32.mrb[0].mxu0
      %v1909 = vadd.f32 0.0, %v1908
      %v1910 = vpop.f32.mrb[0].mxu0
      %v1911 = vpop.f32.mrb[0].mxu0
      %v1912 = vadd.f32 0.0, %v1911
      %v1913 = vpop.f32.mrb[0].mxu0
      %1914 = vmatprep.mubr.bf16.mxu0 0
      %1915 = vmatmul.mubr.bf16.gmra.mrb[0].mxu0 %v1166
      %v1916 = vpop.f32.mrb[0].mxu0
      %v1917 = vadd.f32 0.0, %v1916
      %v1918 = vpop.f32.mrb[0].mxu0
      %v1919 = vpop.f32.mrb[0].mxu0
      %v1920 = vadd.f32 0.0, %v1919
      %v1921 = vpop.f32.mrb[0].mxu0
      %1922 = vmatprep.mubr.bf16.mxu0 0
      %1923 = vmatmul.mubr.bf16.gmra.mrb[0].mxu0 %v1765
      %v1924 = vpop.f32.mrb[0].mxu0
      %v1925 = vadd.f32 0.0, %v1924
      %v1926 = vpop.f32.mrb[0].mxu0
      %v1927 = vpop.f32.mrb[0].mxu0
      %v1928 = vadd.f32 0.0, %v1927
      %v1929 = vpop.f32.mrb[0].mxu0
      %1930 = vdwg.mxu0
      %v1931 = vadd.f32 %v1725, %v1805
      %v1932 = vadd.f32 %v1726, %v1808
      %v1933 = vadd.f32 %v1727, %v1813
      %v1934 = vadd.f32 %v1728, %v1816
      %v1935 = vadd.f32 %v1729, %v1821
      %v1936 = vadd.f32 %v1730, %v1824
      %v1937 = vadd.f32 %v1731, %v1829
      %v1938 = vadd.f32 %v1732, %v1832
      %v1939 = vadd.f32 %v1733, %v1837
      %v1940 = vadd.f32 %v1734, %v1840
      %v1941 = vadd.f32 %v1735, %v1845
      %v1942 = vadd.f32 %v1736, %v1848
      %v1943 = vadd.f32 %v1737, %v1853
      %v1944 = vadd.f32 %v1738, %v1856
      %v1945 = vadd.f32 %v1739, %v1861
      %v1946 = vadd.f32 %v1740, %v1864
      %v1947 = vadd.f32 %v1741, %v1869
      %v1948 = vadd.f32 %v1742, %v1872
      %v1949 = vadd.f32 %v1743, %v1877
      %v1950 = vadd.f32 %v1744, %v1880
      %v1951 = vadd.f32 %v1745, %v1885
      %v1952 = vadd.f32 %v1746, %v1888
      %v1953 = vadd.f32 %v1747, %v1893
      %v1954 = vadd.f32 %v1748, %v1896
      %v1955 = vadd.f32 %v1749, %v1901
      %v1956 = vadd.f32 %v1750, %v1904
      %v1957 = vadd.f32 %v1751, %v1909
      %v1958 = vadd.f32 %v1752, %v1912
      %v1959 = vadd.f32 %v1753, %v1917
      %v1960 = vadd.f32 %v1754, %v1920
      %v1961 = vadd.f32 %v1755, %v1925
      %v1962 = vadd.f32 %v1756, %v1928
      %v1964 = vshrl.u32 %v382, 16
      %v1966 = vrot.slane %v1964, 4
      %v1967 = vshll.u32 %v382, 16
      %v1969 = vrot.slane %v1967, 5
      %v1970 = vor.u32 %v1966, %v1969
      %v1971 = vrot.slane %v1970, 4
      %v1973 = vshll.u32 %v383, 16
      %v1975 = vrot.slane %v1973, 5
      %v1976 = vsel %vm391, %v1971, %v1975
      %v1977 = vshrl.u32 %v383, 16
      %v1979 = vrot.slane %v1977, 4
      %v1980 = vor.u32 %v1979, %v1975
      %v1981 = vrot.slane %v1980, 4
      %v1983 = vshll.u32 %v384, 16
      %v1985 = vrot.slane %v1983, 5
      %v1986 = vsel %vm391, %v1981, %v1985
      %s1987 = scalar_lea.vmem %s1, 8
      %v1988 = vld [vmem:[%s1987] sm:$0x3]
      %v1989 = vunpack.c.l.b16 %v1976
      %v1990 = vunpack.c.l.b16 %v1986
      %v1991 = vpack.c.b16 %v1990, %v1989
      %v1993 = vsel %vm826, %v1991, 0
      %v1996 = vsel %vm875, %v1988, 0
      %1998 = vmatprep.subr.bf16.mxu0 0
      %1999 = vmatpush1.bf16.msra.mxu0 %v1996
      %2000 = vmatprep.subr.bf16.mxu0 0
      %2001 = vmatpush1.bf16.msra.mxu0 0
      %2002 = vmatprep.subr.bf16.mxu0 0
      %2003 = vmatpush1.bf16.msra.mxu0 0
      %2004 = vmatprep.subr.bf16.mxu0 0
      %2005 = vmatpush1.bf16.msra.mxu0 0
      %2006 = vmatprep.subr.bf16.mxu0 0
      %2007 = vmatpush1.bf16.msra.mxu0 0
      %2008 = vmatprep.subr.bf16.mxu0 0
      %2009 = vmatpush1.bf16.msra.mxu0 0
      %2010 = vmatprep.subr.bf16.mxu0 0
      %2011 = vmatpush1.bf16.msra.mxu0 0
      %2012 = vmatprep.subr.bf16.mxu0 0
      %2013 = vmatpush1.bf16.msra.mxu0 0
      %2014 = vmatprep.subr.bf16.mxu0 0
      %2015 = vmatpush1.bf16.msra.mxu0 0
      %2016 = vmatprep.subr.bf16.mxu0 0
      %2017 = vmatpush1.bf16.msra.mxu0 0
      %2018 = vmatprep.subr.bf16.mxu0 0
      %2019 = vmatpush1.bf16.msra.mxu0 0
      %2020 = vmatprep.subr.bf16.mxu0 0
      %2021 = vmatpush1.bf16.msra.mxu0 0
      %2022 = vmatprep.subr.bf16.mxu0 0
      %2023 = vmatpush1.bf16.msra.mxu0 0
      %2024 = vmatprep.subr.bf16.mxu0 0
      %2025 = vmatpush1.bf16.msra.mxu0 0
      %2026 = vmatprep.subr.bf16.mxu0 0
      %2027 = vmatpush1.bf16.msra.mxu0 0
      %2028 = vmatprep.subr.bf16.mxu0 0
      %2029 = vmatpush1.bf16.msra.mxu0 0
      %2030 = vmatprep.mubr.bf16.mxu0 0
      %2031 = vmatmul.mubr.bf16.gmra.mrb[0].mxu0 %v831
      %v2032 = vpop.f32.mrb[0].mxu0
      %v2033 = vadd.f32 0.0, %v2032
      %v2034 = vpop.f32.mrb[0].mxu0
      %v2035 = vpop.f32.mrb[0].mxu0
      %v2036 = vadd.f32 0.0, %v2035
      %v2037 = vpop.f32.mrb[0].mxu0
      %2038 = vmatprep.mubr.bf16.mxu0 0
      %2039 = vmatmul.mubr.bf16.gmra.mrb[0].mxu0 %v834
      %v2040 = vpop.f32.mrb[0].mxu0
      %v2041 = vadd.f32 0.0, %v2040
      %v2042 = vpop.f32.mrb[0].mxu0
      %v2043 = vpop.f32.mrb[0].mxu0
      %v2044 = vadd.f32 0.0, %v2043
      %v2045 = vpop.f32.mrb[0].mxu0
      %2046 = vmatprep.mubr.bf16.mxu0 0
      %2047 = vmatmul.mubr.bf16.gmra.mrb[0].mxu0 %v837
      %v2048 = vpop.f32.mrb[0].mxu0
      %v2049 = vadd.f32 0.0, %v2048
      %v2050 = vpop.f32.mrb[0].mxu0
      %v2051 = vpop.f32.mrb[0].mxu0
      %v2052 = vadd.f32 0.0, %v2051
      %v2053 = vpop.f32.mrb[0].mxu0
      %2054 = vmatprep.mubr.bf16.mxu0 0
      %2055 = vmatmul.mubr.bf16.gmra.mrb[0].mxu0 %v840
      %v2056 = vpop.f32.mrb[0].mxu0
      %v2057 = vadd.f32 0.0, %v2056
      %v2058 = vpop.f32.mrb[0].mxu0
      %v2059 = vpop.f32.mrb[0].mxu0
      %v2060 = vadd.f32 0.0, %v2059
      %v2061 = vpop.f32.mrb[0].mxu0
      %2062 = vmatprep.mubr.bf16.mxu0 0
      %2063 = vmatmul.mubr.bf16.gmra.mrb[0].mxu0 %v843
      %v2064 = vpop.f32.mrb[0].mxu0
      %v2065 = vadd.f32 0.0, %v2064
      %v2066 = vpop.f32.mrb[0].mxu0
      %v2067 = vpop.f32.mrb[0].mxu0
      %v2068 = vadd.f32 0.0, %v2067
      %v2069 = vpop.f32.mrb[0].mxu0
      %2070 = vmatprep.mubr.bf16.mxu0 0
      %2071 = vmatmul.mubr.bf16.gmra.mrb[0].mxu0 %v846
      %v2072 = vpop.f32.mrb[0].mxu0
      %v2073 = vadd.f32 0.0, %v2072
      %v2074 = vpop.f32.mrb[0].mxu0
      %v2075 = vpop.f32.mrb[0].mxu0
      %v2076 = vadd.f32 0.0, %v2075
      %v2077 = vpop.f32.mrb[0].mxu0
      %2078 = vmatprep.mubr.bf16.mxu0 0
      %2079 = vmatmul.mubr.bf16.gmra.mrb[0].mxu0 %v849
      %v2080 = vpop.f32.mrb[0].mxu0
      %v2081 = vadd.f32 0.0, %v2080
      %v2082 = vpop.f32.mrb[0].mxu0
      %v2083 = vpop.f32.mrb[0].mxu0
      %v2084 = vadd.f32 0.0, %v2083
      %v2085 = vpop.f32.mrb[0].mxu0
      %2086 = vmatprep.mubr.bf16.mxu0 0
      %2087 = vmatmul.mubr.bf16.gmra.mrb[0].mxu0 %v852
      %v2088 = vpop.f32.mrb[0].mxu0
      %v2089 = vadd.f32 0.0, %v2088
      %v2090 = vpop.f32.mrb[0].mxu0
      %v2091 = vpop.f32.mrb[0].mxu0
      %v2092 = vadd.f32 0.0, %v2091
      %v2093 = vpop.f32.mrb[0].mxu0
      %2094 = vmatprep.mubr.bf16.mxu0 0
      %2095 = vmatmul.mubr.bf16.gmra.mrb[0].mxu0 %v855
      %v2096 = vpop.f32.mrb[0].mxu0
      %v2097 = vadd.f32 0.0, %v2096
      %v2098 = vpop.f32.mrb[0].mxu0
      %v2099 = vpop.f32.mrb[0].mxu0
      %v2100 = vadd.f32 0.0, %v2099
      %v2101 = vpop.f32.mrb[0].mxu0
      %2102 = vmatprep.mubr.bf16.mxu0 0
      %2103 = vmatmul.mubr.bf16.gmra.mrb[0].mxu0 %v858
      %v2104 = vpop.f32.mrb[0].mxu0
      %v2105 = vadd.f32 0.0, %v2104
      %v2106 = vpop.f32.mrb[0].mxu0
      %v2107 = vpop.f32.mrb[0].mxu0
      %v2108 = vadd.f32 0.0, %v2107
      %v2109 = vpop.f32.mrb[0].mxu0
      %2110 = vmatprep.mubr.bf16.mxu0 0
      %2111 = vmatmul.mubr.bf16.gmra.mrb[0].mxu0 %v861
      %v2112 = vpop.f32.mrb[0].mxu0
      %v2113 = vadd.f32 0.0, %v2112
      %v2114 = vpop.f32.mrb[0].mxu0
      %v2115 = vpop.f32.mrb[0].mxu0
      %v2116 = vadd.f32 0.0, %v2115
      %v2117 = vpop.f32.mrb[0].mxu0
      %2118 = vmatprep.mubr.bf16.mxu0 0
      %2119 = vmatmul.mubr.bf16.gmra.mrb[0].mxu0 %v864
      %v2120 = vpop.f32.mrb[0].mxu0
      %v2121 = vadd.f32 0.0, %v2120
      %v2122 = vpop.f32.mrb[0].mxu0
      %v2123 = vpop.f32.mrb[0].mxu0
      %v2124 = vadd.f32 0.0, %v2123
      %v2125 = vpop.f32.mrb[0].mxu0
      %2126 = vmatprep.mubr.bf16.mxu0 0
      %2127 = vmatmul.mubr.bf16.gmra.mrb[0].mxu0 %v867
      %v2128 = vpop.f32.mrb[0].mxu0
      %v2129 = vadd.f32 0.0, %v2128
      %v2130 = vpop.f32.mrb[0].mxu0
      %v2131 = vpop.f32.mrb[0].mxu0
      %v2132 = vadd.f32 0.0, %v2131
      %v2133 = vpop.f32.mrb[0].mxu0
      %2134 = vmatprep.mubr.bf16.mxu0 0
      %2135 = vmatmul.mubr.bf16.gmra.mrb[0].mxu0 %v870
      %v2136 = vpop.f32.mrb[0].mxu0
      %v2137 = vadd.f32 0.0, %v2136
      %v2138 = vpop.f32.mrb[0].mxu0
      %v2139 = vpop.f32.mrb[0].mxu0
      %v2140 = vadd.f32 0.0, %v2139
      %v2141 = vpop.f32.mrb[0].mxu0
      %2142 = vmatprep.mubr.bf16.mxu0 0
      %2143 = vmatmul.mubr.bf16.gmra.mrb[0].mxu0 %v873
      %v2144 = vpop.f32.mrb[0].mxu0
      %v2145 = vadd.f32 0.0, %v2144
      %v2146 = vpop.f32.mrb[0].mxu0
      %v2147 = vpop.f32.mrb[0].mxu0
      %v2148 = vadd.f32 0.0, %v2147
      %v2149 = vpop.f32.mrb[0].mxu0
      %2150 = vmatprep.mubr.bf16.mxu0 0
      %2151 = vmatmul.mubr.bf16.gmra.mrb[0].mxu0 %v1993
      %v2152 = vpop.f32.mrb[0].mxu0
      %v2153 = vadd.f32 0.0, %v2152
      %v2154 = vpop.f32.mrb[0].mxu0
      %v2155 = vpop.f32.mrb[0].mxu0
      %v2156 = vadd.f32 0.0, %v2155
      %v2157 = vpop.f32.mrb[0].mxu0
      %2158 = vdwg.mxu0
      %v2159 = vadd.f32 %v1931, %v2033
      %v2160 = vadd.f32 %v1932, %v2036
      %v2161 = vadd.f32 %v1933, %v2041
      %v2162 = vadd.f32 %v1934, %v2044
      %v2163 = vadd.f32 %v1935, %v2049
      %v2164 = vadd.f32 %v1936, %v2052
      %v2165 = vadd.f32 %v1937, %v2057
      %v2166 = vadd.f32 %v1938, %v2060
      %v2167 = vadd.f32 %v1939, %v2065
      %v2168 = vadd.f32 %v1940, %v2068
      %v2169 = vadd.f32 %v1941, %v2073
      %v2170 = vadd.f32 %v1942, %v2076
      %v2171 = vadd.f32 %v1943, %v2081
      %v2172 = vadd.f32 %v1944, %v2084
      %v2173 = vadd.f32 %v1945, %v2089
      %v2174 = vadd.f32 %v1946, %v2092
      %v2175 = vadd.f32 %v1947, %v2097
      %v2176 = vadd.f32 %v1948, %v2100
      %v2177 = vadd.f32 %v1949, %v2105
      %v2178 = vadd.f32 %v1950, %v2108
      %v2179 = vadd.f32 %v1951, %v2113
      %v2180 = vadd.f32 %v1952, %v2116
      %v2181 = vadd.f32 %v1953, %v2121
      %v2182 = vadd.f32 %v1954, %v2124
      %v2183 = vadd.f32 %v1955, %v2129
      %v2184 = vadd.f32 %v1956, %v2132
      %v2185 = vadd.f32 %v1957, %v2137
      %v2186 = vadd.f32 %v1958, %v2140
      %v2187 = vadd.f32 %v1959, %v2145
      %v2188 = vadd.f32 %v1960, %v2148
      %v2189 = vadd.f32 %v1961, %v2153
      %v2190 = vadd.f32 %v1962, %v2156
      %v2192 = vrot.slane %v382, 5
      %v2193 = vrot.slane %v2192, 4
      %v2194 = vrot.slane %v383, 5
      %v2195 = vsel %vm1350, %v2193, %v2194
      %v2196 = vrot.slane %v2194, 4
      %v2197 = vrot.slane %v384, 5
      %v2198 = vsel %vm1350, %v2196, %v2197
      %s2199 = scalar_lea.vmem %s1, 10
      %v2200 = vld [vmem:[%s2199] sm:$0x3]
      %v2201 = vunpack.c.l.b16 %v2195
      %v2202 = vunpack.c.l.b16 %v2198
      %v2203 = vpack.c.b16 %v2202, %v2201
      %v2205 = vsel %vm826, %v2203, 0
      %v2208 = vsel %vm875, %v2200, 0
      %2210 = vmatprep.subr.bf16.mxu0 0
      %2211 = vmatpush1.bf16.msra.mxu0 %v2208
      %2212 = vmatprep.subr.bf16.mxu0 0
      %2213 = vmatpush1.bf16.msra.mxu0 0
      %2214 = vmatprep.subr.bf16.mxu0 0
      %2215 = vmatpush1.bf16.msra.mxu0 0
      %2216 = vmatprep.subr.bf16.mxu0 0
      %2217 = vmatpush1.bf16.msra.mxu0 0
      %2218 = vmatprep.subr.bf16.mxu0 0
      %2219 = vmatpush1.bf16.msra.mxu0 0
      %2220 = vmatprep.subr.bf16.mxu0 0
      %2221 = vmatpush1.bf16.msra.mxu0 0
      %2222 = vmatprep.subr.bf16.mxu0 0
      %2223 = vmatpush1.bf16.msra.mxu0 0
      %2224 = vmatprep.subr.bf16.mxu0 0
      %2225 = vmatpush1.bf16.msra.mxu0 0
      %2226 = vmatprep.subr.bf16.mxu0 0
      %2227 = vmatpush1.bf16.msra.mxu0 0
      %2228 = vmatprep.subr.bf16.mxu0 0
      %2229 = vmatpush1.bf16.msra.mxu0 0
      %2230 = vmatprep.subr.bf16.mxu0 0
      %2231 = vmatpush1.bf16.msra.mxu0 0
      %2232 = vmatprep.subr.bf16.mxu0 0
      %2233 = vmatpush1.bf16.msra.mxu0 0
      %2234 = vmatprep.subr.bf16.mxu0 0
      %2235 = vmatpush1.bf16.msra.mxu0 0
      %2236 = vmatprep.subr.bf16.mxu0 0
      %2237 = vmatpush1.bf16.msra.mxu0 0
      %2238 = vmatprep.subr.bf16.mxu0 0
      %2239 = vmatpush1.bf16.msra.mxu0 0
      %2240 = vmatprep.subr.bf16.mxu0 0
      %2241 = vmatpush1.bf16.msra.mxu0 0
      %2242 = vmatprep.mubr.bf16.mxu0 0
      %2243 = vmatmul.mubr.bf16.gmra.mrb[0].mxu0 %v1517
      %v2244 = vpop.f32.mrb[0].mxu0
      %v2245 = vadd.f32 0.0, %v2244
      %v2246 = vpop.f32.mrb[0].mxu0
      %v2247 = vpop.f32.mrb[0].mxu0
      %v2248 = vadd.f32 0.0, %v2247
      %v2249 = vpop.f32.mrb[0].mxu0
      %2250 = vmatprep.mubr.bf16.mxu0 0
      %2251 = vmatmul.mubr.bf16.gmra.mrb[0].mxu0 %v1520
      %v2252 = vpop.f32.mrb[0].mxu0
      %v2253 = vadd.f32 0.0, %v2252
      %v2254 = vpop.f32.mrb[0].mxu0
      %v2255 = vpop.f32.mrb[0].mxu0
      %v2256 = vadd.f32 0.0, %v2255
      %v2257 = vpop.f32.mrb[0].mxu0
      %2258 = vmatprep.mubr.bf16.mxu0 0
      %2259 = vmatmul.mubr.bf16.gmra.mrb[0].mxu0 %v1523
      %v2260 = vpop.f32.mrb[0].mxu0
      %v2261 = vadd.f32 0.0, %v2260
      %v2262 = vpop.f32.mrb[0].mxu0
      %v2263 = vpop.f32.mrb[0].mxu0
      %v2264 = vadd.f32 0.0, %v2263
      %v2265 = vpop.f32.mrb[0].mxu0
      %2266 = vmatprep.mubr.bf16.mxu0 0
      %2267 = vmatmul.mubr.bf16.gmra.mrb[0].mxu0 %v1526
      %v2268 = vpop.f32.mrb[0].mxu0
      %v2269 = vadd.f32 0.0, %v2268
      %v2270 = vpop.f32.mrb[0].mxu0
      %v2271 = vpop.f32.mrb[0].mxu0
      %v2272 = vadd.f32 0.0, %v2271
      %v2273 = vpop.f32.mrb[0].mxu0
      %2274 = vmatprep.mubr.bf16.mxu0 0
      %2275 = vmatmul.mubr.bf16.gmra.mrb[0].mxu0 %v1529
      %v2276 = vpop.f32.mrb[0].mxu0
      %v2277 = vadd.f32 0.0, %v2276
      %v2278 = vpop.f32.mrb[0].mxu0
      %v2279 = vpop.f32.mrb[0].mxu0
      %v2280 = vadd.f32 0.0, %v2279
      %v2281 = vpop.f32.mrb[0].mxu0
      %2282 = vmatprep.mubr.bf16.mxu0 0
      %2283 = vmatmul.mubr.bf16.gmra.mrb[0].mxu0 %v1532
      %v2284 = vpop.f32.mrb[0].mxu0
      %v2285 = vadd.f32 0.0, %v2284
      %v2286 = vpop.f32.mrb[0].mxu0
      %v2287 = vpop.f32.mrb[0].mxu0
      %v2288 = vadd.f32 0.0, %v2287
      %v2289 = vpop.f32.mrb[0].mxu0
      %2290 = vmatprep.mubr.bf16.mxu0 0
      %2291 = vmatmul.mubr.bf16.gmra.mrb[0].mxu0 %v1535
      %v2292 = vpop.f32.mrb[0].mxu0
      %v2293 = vadd.f32 0.0, %v2292
      %v2294 = vpop.f32.mrb[0].mxu0
      %v2295 = vpop.f32.mrb[0].mxu0
      %v2296 = vadd.f32 0.0, %v2295
      %v2297 = vpop.f32.mrb[0].mxu0
      %2298 = vmatprep.mubr.bf16.mxu0 0
      %2299 = vmatmul.mubr.bf16.gmra.mrb[0].mxu0 %v1538
      %v2300 = vpop.f32.mrb[0].mxu0
      %v2301 = vadd.f32 0.0, %v2300
      %v2302 = vpop.f32.mrb[0].mxu0
      %v2303 = vpop.f32.mrb[0].mxu0
      %v2304 = vadd.f32 0.0, %v2303
      %v2305 = vpop.f32.mrb[0].mxu0
      %2306 = vmatprep.mubr.bf16.mxu0 0
      %2307 = vmatmul.mubr.bf16.gmra.mrb[0].mxu0 %v1541
      %v2308 = vpop.f32.mrb[0].mxu0
      %v2309 = vadd.f32 0.0, %v2308
      %v2310 = vpop.f32.mrb[0].mxu0
      %v2311 = vpop.f32.mrb[0].mxu0
      %v2312 = vadd.f32 0.0, %v2311
      %v2313 = vpop.f32.mrb[0].mxu0
      %2314 = vmatprep.mubr.bf16.mxu0 0
      %2315 = vmatmul.mubr.bf16.gmra.mrb[0].mxu0 %v1544
      %v2316 = vpop.f32.mrb[0].mxu0
      %v2317 = vadd.f32 0.0, %v2316
      %v2318 = vpop.f32.mrb[0].mxu0
      %v2319 = vpop.f32.mrb[0].mxu0
      %v2320 = vadd.f32 0.0, %v2319
      %v2321 = vpop.f32.mrb[0].mxu0
      %2322 = vmatprep.mubr.bf16.mxu0 0
      %2323 = vmatmul.mubr.bf16.gmra.mrb[0].mxu0 %v1547
      %v2324 = vpop.f32.mrb[0].mxu0
      %v2325 = vadd.f32 0.0, %v2324
      %v2326 = vpop.f32.mrb[0].mxu0
      %v2327 = vpop.f32.mrb[0].mxu0
      %v2328 = vadd.f32 0.0, %v2327
      %v2329 = vpop.f32.mrb[0].mxu0
      %2330 = vmatprep.mubr.bf16.mxu0 0
      %2331 = vmatmul.mubr.bf16.gmra.mrb[0].mxu0 %v1550
      %v2332 = vpop.f32.mrb[0].mxu0
      %v2333 = vadd.f32 0.0, %v2332
      %v2334 = vpop.f32.mrb[0].mxu0
      %v2335 = vpop.f32.mrb[0].mxu0
      %v2336 = vadd.f32 0.0, %v2335
      %v2337 = vpop.f32.mrb[0].mxu0
      %2338 = vmatprep.mubr.bf16.mxu0 0
      %2339 = vmatmul.mubr.bf16.gmra.mrb[0].mxu0 %v1553
      %v2340 = vpop.f32.mrb[0].mxu0
      %v2341 = vadd.f32 0.0, %v2340
      %v2342 = vpop.f32.mrb[0].mxu0
      %v2343 = vpop.f32.mrb[0].mxu0
      %v2344 = vadd.f32 0.0, %v2343
      %v2345 = vpop.f32.mrb[0].mxu0
      %2346 = vmatprep.mubr.bf16.mxu0 0
      %2347 = vmatmul.mubr.bf16.gmra.mrb[0].mxu0 %v1556
      %v2348 = vpop.f32.mrb[0].mxu0
      %v2349 = vadd.f32 0.0, %v2348
      %v2350 = vpop.f32.mrb[0].mxu0
      %v2351 = vpop.f32.mrb[0].mxu0
      %v2352 = vadd.f32 0.0, %v2351
      %v2353 = vpop.f32.mrb[0].mxu0
      %2354 = vmatprep.mubr.bf16.mxu0 0
      %2355 = vmatmul.mubr.bf16.gmra.mrb[0].mxu0 %v1559
      %v2356 = vpop.f32.mrb[0].mxu0
      %v2357 = vadd.f32 0.0, %v2356
      %v2358 = vpop.f32.mrb[0].mxu0
      %v2359 = vpop.f32.mrb[0].mxu0
      %v2360 = vadd.f32 0.0, %v2359
      %v2361 = vpop.f32.mrb[0].mxu0
      %2362 = vmatprep.mubr.bf16.mxu0 0
      %2363 = vmatmul.mubr.bf16.gmra.mrb[0].mxu0 %v2205
      %v2364 = vpop.f32.mrb[0].mxu0
      %v2365 = vadd.f32 0.0, %v2364
      %v2366 = vpop.f32.mrb[0].mxu0
      %v2367 = vpop.f32.mrb[0].mxu0
      %v2368 = vadd.f32 0.0, %v2367
      %v2369 = vpop.f32.mrb[0].mxu0
      %2370 = vdwg.mxu0
      %v2371 = vadd.f32 %v2159, %v2245
      %v2372 = vadd.f32 %v2160, %v2248
      %v2373 = vadd.f32 %v2161, %v2253
      %v2374 = vadd.f32 %v2162, %v2256
      %v2375 = vadd.f32 %v2163, %v2261
      %v2376 = vadd.f32 %v2164, %v2264
      %v2377 = vadd.f32 %v2165, %v2269
      %v2378 = vadd.f32 %v2166, %v2272
      %v2379 = vadd.f32 %v2167, %v2277
      %v2380 = vadd.f32 %v2168, %v2280
      %v2381 = vadd.f32 %v2169, %v2285
      %v2382 = vadd.f32 %v2170, %v2288
      %v2383 = vadd.f32 %v2171, %v2293
      %v2384 = vadd.f32 %v2172, %v2296
      %v2385 = vadd.f32 %v2173, %v2301
      %v2386 = vadd.f32 %v2174, %v2304
      %v2387 = vadd.f32 %v2175, %v2309
      %v2388 = vadd.f32 %v2176, %v2312
      %v2389 = vadd.f32 %v2177, %v2317
      %v2390 = vadd.f32 %v2178, %v2320
      %v2391 = vadd.f32 %v2179, %v2325
      %v2392 = vadd.f32 %v2180, %v2328
      %v2393 = vadd.f32 %v2181, %v2333
      %v2394 = vadd.f32 %v2182, %v2336
      %v2395 = vadd.f32 %v2183, %v2341
      %v2396 = vadd.f32 %v2184, %v2344
      %v2397 = vadd.f32 %v2185, %v2349
      %v2398 = vadd.f32 %v2186, %v2352
      %v2399 = vadd.f32 %v2187, %v2357
      %v2400 = vadd.f32 %v2188, %v2360
      %v2401 = vadd.f32 %v2189, %v2365
      %v2402 = vadd.f32 %v2190, %v2368
      %s2403 = scalar_lea.vmem %s1, 12
      %v2404 = vld [vmem:[%s2403] sm:$0x3]
      %v2407 = vunpack.c.l.b16 %v385
      %v2408 = vunpack.c.l.b16 %v386
      %v2409 = vpack.c.b16 %v2408, %v2407
      %v2411 = vsel %vm826, %v2409, 0
      %v2414 = vsel %vm875, %v2404, 0
      %2416 = vmatprep.subr.bf16.mxu0 0
      %2417 = vmatpush1.bf16.msra.mxu0 %v2414
      %2418 = vmatprep.subr.bf16.mxu0 0
      %2419 = vmatpush1.bf16.msra.mxu0 0
      %2420 = vmatprep.subr.bf16.mxu0 0
      %2421 = vmatpush1.bf16.msra.mxu0 0
      %2422 = vmatprep.subr.bf16.mxu0 0
      %2423 = vmatpush1.bf16.msra.mxu0 0
      %2424 = vmatprep.subr.bf16.mxu0 0
      %2425 = vmatpush1.bf16.msra.mxu0 0
      %2426 = vmatprep.subr.bf16.mxu0 0
      %2427 = vmatpush1.bf16.msra.mxu0 0
      %2428 = vmatprep.subr.bf16.mxu0 0
      %2429 = vmatpush1.bf16.msra.mxu0 0
      %2430 = vmatprep.subr.bf16.mxu0 0
      %2431 = vmatpush1.bf16.msra.mxu0 0
      %2432 = vmatprep.subr.bf16.mxu0 0
      %2433 = vmatpush1.bf16.msra.mxu0 0
      %2434 = vmatprep.subr.bf16.mxu0 0
      %2435 = vmatpush1.bf16.msra.mxu0 0
      %2436 = vmatprep.subr.bf16.mxu0 0
      %2437 = vmatpush1.bf16.msra.mxu0 0
      %2438 = vmatprep.subr.bf16.mxu0 0
      %2439 = vmatpush1.bf16.msra.mxu0 0
      %2440 = vmatprep.subr.bf16.mxu0 0
      %2441 = vmatpush1.bf16.msra.mxu0 0
      %2442 = vmatprep.subr.bf16.mxu0 0
      %2443 = vmatpush1.bf16.msra.mxu0 0
      %2444 = vmatprep.subr.bf16.mxu0 0
      %2445 = vmatpush1.bf16.msra.mxu0 0
      %2446 = vmatprep.subr.bf16.mxu0 0
      %2447 = vmatpush1.bf16.msra.mxu0 0
      %2448 = vmatprep.mubr.bf16.mxu0 0
      %2449 = vmatmul.mubr.bf16.gmra.mrb[0].mxu0 %v1127
      %v2450 = vpop.f32.mrb[0].mxu0
      %v2451 = vadd.f32 0.0, %v2450
      %v2452 = vpop.f32.mrb[0].mxu0
      %v2453 = vpop.f32.mrb[0].mxu0
      %v2454 = vadd.f32 0.0, %v2453
      %v2455 = vpop.f32.mrb[0].mxu0
      %2456 = vmatprep.mubr.bf16.mxu0 0
      %2457 = vmatmul.mubr.bf16.gmra.mrb[0].mxu0 %v1130
      %v2458 = vpop.f32.mrb[0].mxu0
      %v2459 = vadd.f32 0.0, %v2458
      %v2460 = vpop.f32.mrb[0].mxu0
      %v2461 = vpop.f32.mrb[0].mxu0
      %v2462 = vadd.f32 0.0, %v2461
      %v2463 = vpop.f32.mrb[0].mxu0
      %2464 = vmatprep.mubr.bf16.mxu0 0
      %2465 = vmatmul.mubr.bf16.gmra.mrb[0].mxu0 %v1133
      %v2466 = vpop.f32.mrb[0].mxu0
      %v2467 = vadd.f32 0.0, %v2466
      %v2468 = vpop.f32.mrb[0].mxu0
      %v2469 = vpop.f32.mrb[0].mxu0
      %v2470 = vadd.f32 0.0, %v2469
      %v2471 = vpop.f32.mrb[0].mxu0
      %2472 = vmatprep.mubr.bf16.mxu0 0
      %2473 = vmatmul.mubr.bf16.gmra.mrb[0].mxu0 %v1136
      %v2474 = vpop.f32.mrb[0].mxu0
      %v2475 = vadd.f32 0.0, %v2474
      %v2476 = vpop.f32.mrb[0].mxu0
      %v2477 = vpop.f32.mrb[0].mxu0
      %v2478 = vadd.f32 0.0, %v2477
      %v2479 = vpop.f32.mrb[0].mxu0
      %2480 = vmatprep.mubr.bf16.mxu0 0
      %2481 = vmatmul.mubr.bf16.gmra.mrb[0].mxu0 %v1139
      %v2482 = vpop.f32.mrb[0].mxu0
      %v2483 = vadd.f32 0.0, %v2482
      %v2484 = vpop.f32.mrb[0].mxu0
      %v2485 = vpop.f32.mrb[0].mxu0
      %v2486 = vadd.f32 0.0, %v2485
      %v2487 = vpop.f32.mrb[0].mxu0
      %2488 = vmatprep.mubr.bf16.mxu0 0
      %2489 = vmatmul.mubr.bf16.gmra.mrb[0].mxu0 %v1142
      %v2490 = vpop.f32.mrb[0].mxu0
      %v2491 = vadd.f32 0.0, %v2490
      %v2492 = vpop.f32.mrb[0].mxu0
      %v2493 = vpop.f32.mrb[0].mxu0
      %v2494 = vadd.f32 0.0, %v2493
      %v2495 = vpop.f32.mrb[0].mxu0
      %2496 = vmatprep.mubr.bf16.mxu0 0
      %2497 = vmatmul.mubr.bf16.gmra.mrb[0].mxu0 %v1145
      %v2498 = vpop.f32.mrb[0].mxu0
      %v2499 = vadd.f32 0.0, %v2498
      %v2500 = vpop.f32.mrb[0].mxu0
      %v2501 = vpop.f32.mrb[0].mxu0
      %v2502 = vadd.f32 0.0, %v2501
      %v2503 = vpop.f32.mrb[0].mxu0
      %2504 = vmatprep.mubr.bf16.mxu0 0
      %2505 = vmatmul.mubr.bf16.gmra.mrb[0].mxu0 %v1148
      %v2506 = vpop.f32.mrb[0].mxu0
      %v2507 = vadd.f32 0.0, %v2506
      %v2508 = vpop.f32.mrb[0].mxu0
      %v2509 = vpop.f32.mrb[0].mxu0
      %v2510 = vadd.f32 0.0, %v2509
      %v2511 = vpop.f32.mrb[0].mxu0
      %2512 = vmatprep.mubr.bf16.mxu0 0
      %2513 = vmatmul.mubr.bf16.gmra.mrb[0].mxu0 %v1151
      %v2514 = vpop.f32.mrb[0].mxu0
      %v2515 = vadd.f32 0.0, %v2514
      %v2516 = vpop.f32.mrb[0].mxu0
      %v2517 = vpop.f32.mrb[0].mxu0
      %v2518 = vadd.f32 0.0, %v2517
      %v2519 = vpop.f32.mrb[0].mxu0
      %2520 = vmatprep.mubr.bf16.mxu0 0
      %2521 = vmatmul.mubr.bf16.gmra.mrb[0].mxu0 %v1154
      %v2522 = vpop.f32.mrb[0].mxu0
      %v2523 = vadd.f32 0.0, %v2522
      %v2524 = vpop.f32.mrb[0].mxu0
      %v2525 = vpop.f32.mrb[0].mxu0
      %v2526 = vadd.f32 0.0, %v2525
      %v2527 = vpop.f32.mrb[0].mxu0
      %2528 = vmatprep.mubr.bf16.mxu0 0
      %2529 = vmatmul.mubr.bf16.gmra.mrb[0].mxu0 %v1157
      %v2530 = vpop.f32.mrb[0].mxu0
      %v2531 = vadd.f32 0.0, %v2530
      %v2532 = vpop.f32.mrb[0].mxu0
      %v2533 = vpop.f32.mrb[0].mxu0
      %v2534 = vadd.f32 0.0, %v2533
      %v2535 = vpop.f32.mrb[0].mxu0
      %2536 = vmatprep.mubr.bf16.mxu0 0
      %2537 = vmatmul.mubr.bf16.gmra.mrb[0].mxu0 %v1160
      %v2538 = vpop.f32.mrb[0].mxu0
      %v2539 = vadd.f32 0.0, %v2538
      %v2540 = vpop.f32.mrb[0].mxu0
      %v2541 = vpop.f32.mrb[0].mxu0
      %v2542 = vadd.f32 0.0, %v2541
      %v2543 = vpop.f32.mrb[0].mxu0
      %2544 = vmatprep.mubr.bf16.mxu0 0
      %2545 = vmatmul.mubr.bf16.gmra.mrb[0].mxu0 %v1163
      %v2546 = vpop.f32.mrb[0].mxu0
      %v2547 = vadd.f32 0.0, %v2546
      %v2548 = vpop.f32.mrb[0].mxu0
      %v2549 = vpop.f32.mrb[0].mxu0
      %v2550 = vadd.f32 0.0, %v2549
      %v2551 = vpop.f32.mrb[0].mxu0
      %2552 = vmatprep.mubr.bf16.mxu0 0
      %2553 = vmatmul.mubr.bf16.gmra.mrb[0].mxu0 %v1166
      %v2554 = vpop.f32.mrb[0].mxu0
      %v2555 = vadd.f32 0.0, %v2554
      %v2556 = vpop.f32.mrb[0].mxu0
      %v2557 = vpop.f32.mrb[0].mxu0
      %v2558 = vadd.f32 0.0, %v2557
      %v2559 = vpop.f32.mrb[0].mxu0
      %2560 = vmatprep.mubr.bf16.mxu0 0
      %2561 = vmatmul.mubr.bf16.gmra.mrb[0].mxu0 %v1765
      %v2562 = vpop.f32.mrb[0].mxu0
      %v2563 = vadd.f32 0.0, %v2562
      %v2564 = vpop.f32.mrb[0].mxu0
      %v2565 = vpop.f32.mrb[0].mxu0
      %v2566 = vadd.f32 0.0, %v2565
      %v2567 = vpop.f32.mrb[0].mxu0
      %2568 = vmatprep.mubr.bf16.mxu0 0
      %2569 = vmatmul.mubr.bf16.gmra.mrb[0].mxu0 %v2411
      %v2570 = vpop.f32.mrb[0].mxu0
      %v2571 = vadd.f32 0.0, %v2570
      %v2572 = vpop.f32.mrb[0].mxu0
      %v2573 = vpop.f32.mrb[0].mxu0
      %v2574 = vadd.f32 0.0, %v2573
      %v2575 = vpop.f32.mrb[0].mxu0
      %2576 = vdwg.mxu0
      %v2577 = vadd.f32 %v2371, %v2451
      %v2578 = vadd.f32 %v2372, %v2454
      %v2579 = vadd.f32 %v2373, %v2459
      %v2580 = vadd.f32 %v2374, %v2462
      %v2581 = vadd.f32 %v2375, %v2467
      %v2582 = vadd.f32 %v2376, %v2470
      %v2583 = vadd.f32 %v2377, %v2475
      %v2584 = vadd.f32 %v2378, %v2478
      %v2585 = vadd.f32 %v2379, %v2483
      %v2586 = vadd.f32 %v2380, %v2486
      %v2587 = vadd.f32 %v2381, %v2491
      %v2588 = vadd.f32 %v2382, %v2494
      %v2589 = vadd.f32 %v2383, %v2499
      %v2590 = vadd.f32 %v2384, %v2502
      %v2591 = vadd.f32 %v2385, %v2507
      %v2592 = vadd.f32 %v2386, %v2510
      %v2593 = vadd.f32 %v2387, %v2515
      %v2594 = vadd.f32 %v2388, %v2518
      %v2595 = vadd.f32 %v2389, %v2523
      %v2596 = vadd.f32 %v2390, %v2526
      %v2597 = vadd.f32 %v2391, %v2531
      %v2598 = vadd.f32 %v2392, %v2534
      %v2599 = vadd.f32 %v2393, %v2539
      %v2600 = vadd.f32 %v2394, %v2542
      %v2601 = vadd.f32 %v2395, %v2547
      %v2602 = vadd.f32 %v2396, %v2550
      %v2603 = vadd.f32 %v2397, %v2555
      %v2604 = vadd.f32 %v2398, %v2558
      %v2605 = vadd.f32 %v2399, %v2563
      %v2606 = vadd.f32 %v2400, %v2566
      %v2607 = vadd.f32 %v2401, %v2571
      %v2608 = vadd.f32 %v2402, %v2574
      %v2610 = vshrl.u32 %v385, 16
      %v2612 = vrot.slane %v2610, 4
      %v2613 = vshll.u32 %v385, 16
      %v2615 = vrot.slane %v2613, 5
      %v2616 = vor.u32 %v2612, %v2615
      %v2617 = vrot.slane %v2616, 4
      %v2619 = vshll.u32 %v386, 16
      %v2621 = vrot.slane %v2619, 5
      %v2622 = vsel %vm391, %v2617, %v2621
      %v2623 = vshrl.u32 %v386, 16
      %v2625 = vrot.slane %v2623, 4
      %v2626 = vor.u32 %v2625, %v2621
      %v2627 = vrot.slane %v2626, 4
      %v2629 = vshll.u32 %v387, 16
      %v2631 = vrot.slane %v2629, 5
      %v2632 = vsel %vm391, %v2627, %v2631
      %s2633 = scalar_lea.vmem %s1, 14
      %v2634 = vld [vmem:[%s2633] sm:$0x3]
      %v2635 = vunpack.c.l.b16 %v2622
      %v2636 = vunpack.c.l.b16 %v2632
      %v2637 = vpack.c.b16 %v2636, %v2635
      %v2639 = vsel %vm826, %v2637, 0
      %v2642 = vsel %vm875, %v2634, 0
      %2644 = vmatprep.subr.bf16.mxu0 0
      %2645 = vmatpush1.bf16.msra.mxu0 %v2642
      %2646 = vmatprep.subr.bf16.mxu0 0
      %2647 = vmatpush1.bf16.msra.mxu0 0
      %2648 = vmatprep.subr.bf16.mxu0 0
      %2649 = vmatpush1.bf16.msra.mxu0 0
      %2650 = vmatprep.subr.bf16.mxu0 0
      %2651 = vmatpush1.bf16.msra.mxu0 0
      %2652 = vmatprep.subr.bf16.mxu0 0
      %2653 = vmatpush1.bf16.msra.mxu0 0
      %2654 = vmatprep.subr.bf16.mxu0 0
      %2655 = vmatpush1.bf16.msra.mxu0 0
      %2656 = vmatprep.subr.bf16.mxu0 0
      %2657 = vmatpush1.bf16.msra.mxu0 0
      %2658 = vmatprep.subr.bf16.mxu0 0
      %2659 = vmatpush1.bf16.msra.mxu0 0
      %2660 = vmatprep.subr.bf16.mxu0 0
      %2661 = vmatpush1.bf16.msra.mxu0 0
      %2662 = vmatprep.subr.bf16.mxu0 0
      %2663 = vmatpush1.bf16.msra.mxu0 0
      %2664 = vmatprep.subr.bf16.mxu0 0
      %2665 = vmatpush1.bf16.msra.mxu0 0
      %2666 = vmatprep.subr.bf16.mxu0 0
      %2667 = vmatpush1.bf16.msra.mxu0 0
      %2668 = vmatprep.subr.bf16.mxu0 0
      %2669 = vmatpush1.bf16.msra.mxu0 0
      %2670 = vmatprep.subr.bf16.mxu0 0
      %2671 = vmatpush1.bf16.msra.mxu0 0
      %2672 = vmatprep.subr.bf16.mxu0 0
      %2673 = vmatpush1.bf16.msra.mxu0 0
      %2674 = vmatprep.subr.bf16.mxu0 0
      %2675 = vmatpush1.bf16.msra.mxu0 0
      %2676 = vmatprep.mubr.bf16.mxu0 0
      %2677 = vmatmul.mubr.bf16.gmra.mrb[0].mxu0 %v834
      %v2678 = vpop.f32.mrb[0].mxu0
      %v2679 = vadd.f32 0.0, %v2678
      %v2680 = vpop.f32.mrb[0].mxu0
      %v2681 = vpop.f32.mrb[0].mxu0
      %v2682 = vadd.f32 0.0, %v2681
      %v2683 = vpop.f32.mrb[0].mxu0
      %2684 = vmatprep.mubr.bf16.mxu0 0
      %2685 = vmatmul.mubr.bf16.gmra.mrb[0].mxu0 %v837
      %v2686 = vpop.f32.mrb[0].mxu0
      %v2687 = vadd.f32 0.0, %v2686
      %v2688 = vpop.f32.mrb[0].mxu0
      %v2689 = vpop.f32.mrb[0].mxu0
      %v2690 = vadd.f32 0.0, %v2689
      %v2691 = vpop.f32.mrb[0].mxu0
      %2692 = vmatprep.mubr.bf16.mxu0 0
      %2693 = vmatmul.mubr.bf16.gmra.mrb[0].mxu0 %v840
      %v2694 = vpop.f32.mrb[0].mxu0
      %v2695 = vadd.f32 0.0, %v2694
      %v2696 = vpop.f32.mrb[0].mxu0
      %v2697 = vpop.f32.mrb[0].mxu0
      %v2698 = vadd.f32 0.0, %v2697
      %v2699 = vpop.f32.mrb[0].mxu0
      %2700 = vmatprep.mubr.bf16.mxu0 0
      %2701 = vmatmul.mubr.bf16.gmra.mrb[0].mxu0 %v843
      %v2702 = vpop.f32.mrb[0].mxu0
      %v2703 = vadd.f32 0.0, %v2702
      %v2704 = vpop.f32.mrb[0].mxu0
      %v2705 = vpop.f32.mrb[0].mxu0
      %v2706 = vadd.f32 0.0, %v2705
      %v2707 = vpop.f32.mrb[0].mxu0
      %2708 = vmatprep.mubr.bf16.mxu0 0
      %2709 = vmatmul.mubr.bf16.gmra.mrb[0].mxu0 %v846
      %v2710 = vpop.f32.mrb[0].mxu0
      %v2711 = vadd.f32 0.0, %v2710
      %v2712 = vpop.f32.mrb[0].mxu0
      %v2713 = vpop.f32.mrb[0].mxu0
      %v2714 = vadd.f32 0.0, %v2713
      %v2715 = vpop.f32.mrb[0].mxu0
      %2716 = vmatprep.mubr.bf16.mxu0 0
      %2717 = vmatmul.mubr.bf16.gmra.mrb[0].mxu0 %v849
      %v2718 = vpop.f32.mrb[0].mxu0
      %v2719 = vadd.f32 0.0, %v2718
      %v2720 = vpop.f32.mrb[0].mxu0
      %v2721 = vpop.f32.mrb[0].mxu0
      %v2722 = vadd.f32 0.0, %v2721
      %v2723 = vpop.f32.mrb[0].mxu0
      %2724 = vmatprep.mubr.bf16.mxu0 0
      %2725 = vmatmul.mubr.bf16.gmra.mrb[0].mxu0 %v852
      %v2726 = vpop.f32.mrb[0].mxu0
      %v2727 = vadd.f32 0.0, %v2726
      %v2728 = vpop.f32.mrb[0].mxu0
      %v2729 = vpop.f32.mrb[0].mxu0
      %v2730 = vadd.f32 0.0, %v2729
      %v2731 = vpop.f32.mrb[0].mxu0
      %2732 = vmatprep.mubr.bf16.mxu0 0
      %2733 = vmatmul.mubr.bf16.gmra.mrb[0].mxu0 %v855
      %v2734 = vpop.f32.mrb[0].mxu0
      %v2735 = vadd.f32 0.0, %v2734
      %v2736 = vpop.f32.mrb[0].mxu0
      %v2737 = vpop.f32.mrb[0].mxu0
      %v2738 = vadd.f32 0.0, %v2737
      %v2739 = vpop.f32.mrb[0].mxu0
      %2740 = vmatprep.mubr.bf16.mxu0 0
      %2741 = vmatmul.mubr.bf16.gmra.mrb[0].mxu0 %v858
      %v2742 = vpop.f32.mrb[0].mxu0
      %v2743 = vadd.f32 0.0, %v2742
      %v2744 = vpop.f32.mrb[0].mxu0
      %v2745 = vpop.f32.mrb[0].mxu0
      %v2746 = vadd.f32 0.0, %v2745
      %v2747 = vpop.f32.mrb[0].mxu0
      %2748 = vmatprep.mubr.bf16.mxu0 0
      %2749 = vmatmul.mubr.bf16.gmra.mrb[0].mxu0 %v861
      %v2750 = vpop.f32.mrb[0].mxu0
      %v2751 = vadd.f32 0.0, %v2750
      %v2752 = vpop.f32.mrb[0].mxu0
      %v2753 = vpop.f32.mrb[0].mxu0
      %v2754 = vadd.f32 0.0, %v2753
      %v2755 = vpop.f32.mrb[0].mxu0
      %2756 = vmatprep.mubr.bf16.mxu0 0
      %2757 = vmatmul.mubr.bf16.gmra.mrb[0].mxu0 %v864
      %v2758 = vpop.f32.mrb[0].mxu0
      %v2759 = vadd.f32 0.0, %v2758
      %v2760 = vpop.f32.mrb[0].mxu0
      %v2761 = vpop.f32.mrb[0].mxu0
      %v2762 = vadd.f32 0.0, %v2761
      %v2763 = vpop.f32.mrb[0].mxu0
      %2764 = vmatprep.mubr.bf16.mxu0 0
      %2765 = vmatmul.mubr.bf16.gmra.mrb[0].mxu0 %v867
      %v2766 = vpop.f32.mrb[0].mxu0
      %v2767 = vadd.f32 0.0, %v2766
      %v2768 = vpop.f32.mrb[0].mxu0
      %v2769 = vpop.f32.mrb[0].mxu0
      %v2770 = vadd.f32 0.0, %v2769
      %v2771 = vpop.f32.mrb[0].mxu0
      %2772 = vmatprep.mubr.bf16.mxu0 0
      %2773 = vmatmul.mubr.bf16.gmra.mrb[0].mxu0 %v870
      %v2774 = vpop.f32.mrb[0].mxu0
      %v2775 = vadd.f32 0.0, %v2774
      %v2776 = vpop.f32.mrb[0].mxu0
      %v2777 = vpop.f32.mrb[0].mxu0
      %v2778 = vadd.f32 0.0, %v2777
      %v2779 = vpop.f32.mrb[0].mxu0
      %2780 = vmatprep.mubr.bf16.mxu0 0
      %2781 = vmatmul.mubr.bf16.gmra.mrb[0].mxu0 %v873
      %v2782 = vpop.f32.mrb[0].mxu0
      %v2783 = vadd.f32 0.0, %v2782
      %v2784 = vpop.f32.mrb[0].mxu0
      %v2785 = vpop.f32.mrb[0].mxu0
      %v2786 = vadd.f32 0.0, %v2785
      %v2787 = vpop.f32.mrb[0].mxu0
      %2788 = vmatprep.mubr.bf16.mxu0 0
      %2789 = vmatmul.mubr.bf16.gmra.mrb[0].mxu0 %v1993
      %v2790 = vpop.f32.mrb[0].mxu0
      %v2791 = vadd.f32 0.0, %v2790
      %v2792 = vpop.f32.mrb[0].mxu0
      %v2793 = vpop.f32.mrb[0].mxu0
      %v2794 = vadd.f32 0.0, %v2793
      %v2795 = vpop.f32.mrb[0].mxu0
      %2796 = vmatprep.mubr.bf16.mxu0 0
      %2797 = vmatmul.mubr.bf16.gmra.mrb[0].mxu0 %v2639
      %v2798 = vpop.f32.mrb[0].mxu0
      %v2799 = vadd.f32 0.0, %v2798
      %v2800 = vpop.f32.mrb[0].mxu0
      %v2801 = vpop.f32.mrb[0].mxu0
      %v2802 = vadd.f32 0.0, %v2801
      %v2803 = vpop.f32.mrb[0].mxu0
      %2804 = vdwg.mxu0
      %v2805 = vadd.f32 %v2577, %v2679
      %v2806 = vadd.f32 %v2578, %v2682
      %v2807 = vadd.f32 %v2579, %v2687
      %v2808 = vadd.f32 %v2580, %v2690
      %v2809 = vadd.f32 %v2581, %v2695
      %v2810 = vadd.f32 %v2582, %v2698
      %v2811 = vadd.f32 %v2583, %v2703
      %v2812 = vadd.f32 %v2584, %v2706
      %v2813 = vadd.f32 %v2585, %v2711
      %v2814 = vadd.f32 %v2586, %v2714
      %v2815 = vadd.f32 %v2587, %v2719
      %v2816 = vadd.f32 %v2588, %v2722
      %v2817 = vadd.f32 %v2589, %v2727
      %v2818 = vadd.f32 %v2590, %v2730
      %v2819 = vadd.f32 %v2591, %v2735
      %v2820 = vadd.f32 %v2592, %v2738
      %v2821 = vadd.f32 %v2593, %v2743
      %v2822 = vadd.f32 %v2594, %v2746
      %v2823 = vadd.f32 %v2595, %v2751
      %v2824 = vadd.f32 %v2596, %v2754
      %v2825 = vadd.f32 %v2597, %v2759
      %v2826 = vadd.f32 %v2598, %v2762
      %v2827 = vadd.f32 %v2599, %v2767
      %v2828 = vadd.f32 %v2600, %v2770
      %v2829 = vadd.f32 %v2601, %v2775
      %v2830 = vadd.f32 %v2602, %v2778
      %v2831 = vadd.f32 %v2603, %v2783
      %v2832 = vadd.f32 %v2604, %v2786
      %v2833 = vadd.f32 %v2605, %v2791
      %v2834 = vadd.f32 %v2606, %v2794
      %v2835 = vadd.f32 %v2607, %v2799
      %v2836 = vadd.f32 %v2608, %v2802
      %v2838 = vrot.slane %v385, 5
      %v2839 = vrot.slane %v2838, 4
      %v2840 = vrot.slane %v386, 5
      %v2841 = vsel %vm1350, %v2839, %v2840
      %v2842 = vrot.slane %v2840, 4
      %v2843 = vrot.slane %v387, 5
      %v2844 = vsel %vm1350, %v2842, %v2843
      %s2845 = scalar_lea.vmem %s1, 16
      %v2846 = vld [vmem:[%s2845] sm:$0x3]
      %v2847 = vunpack.c.l.b16 %v2841
      %v2848 = vunpack.c.l.b16 %v2844
      %v2849 = vpack.c.b16 %v2848, %v2847
      %v2851 = vsel %vm826, %v2849, 0
      %v2854 = vsel %vm875, %v2846, 0
      %2856 = vmatprep.subr.bf16.mxu0 0
      %2857 = vmatpush1.bf16.msra.mxu0 %v2854
      %2858 = vmatprep.subr.bf16.mxu0 0
      %2859 = vmatpush1.bf16.msra.mxu0 0
      %2860 = vmatprep.subr.bf16.mxu0 0
      %2861 = vmatpush1.bf16.msra.mxu0 0
      %2862 = vmatprep.subr.bf16.mxu0 0
      %2863 = vmatpush1.bf16.msra.mxu0 0
      %2864 = vmatprep.subr.bf16.mxu0 0
      %2865 = vmatpush1.bf16.msra.mxu0 0
      %2866 = vmatprep.subr.bf16.mxu0 0
      %2867 = vmatpush1.bf16.msra.mxu0 0
      %2868 = vmatprep.subr.bf16.mxu0 0
      %2869 = vmatpush1.bf16.msra.mxu0 0
      %2870 = vmatprep.subr.bf16.mxu0 0
      %2871 = vmatpush1.bf16.msra.mxu0 0
      %2872 = vmatprep.subr.bf16.mxu0 0
      %2873 = vmatpush1.bf16.msra.mxu0 0
      %2874 = vmatprep.subr.bf16.mxu0 0
      %2875 = vmatpush1.bf16.msra.mxu0 0
      %2876 = vmatprep.subr.bf16.mxu0 0
      %2877 = vmatpush1.bf16.msra.mxu0 0
      %2878 = vmatprep.subr.bf16.mxu0 0
      %2879 = vmatpush1.bf16.msra.mxu0 0
      %2880 = vmatprep.subr.bf16.mxu0 0
      %2881 = vmatpush1.bf16.msra.mxu0 0
      %2882 = vmatprep.subr.bf16.mxu0 0
      %2883 = vmatpush1.bf16.msra.mxu0 0
      %2884 = vmatprep.subr.bf16.mxu0 0
      %2885 = vmatpush1.bf16.msra.mxu0 0
      %2886 = vmatprep.subr.bf16.mxu0 0
      %2887 = vmatpush1.bf16.msra.mxu0 0
      %2888 = vmatprep.mubr.bf16.mxu0 0
      %2889 = vmatmul.mubr.bf16.gmra.mrb[0].mxu0 %v1520
      %v2890 = vpop.f32.mrb[0].mxu0
      %v2891 = vadd.f32 0.0, %v2890
      %v2892 = vpop.f32.mrb[0].mxu0
      %v2893 = vpop.f32.mrb[0].mxu0
      %v2894 = vadd.f32 0.0, %v2893
      %v2895 = vpop.f32.mrb[0].mxu0
      %2896 = vmatprep.mubr.bf16.mxu0 0
      %2897 = vmatmul.mubr.bf16.gmra.mrb[0].mxu0 %v1523
      %v2898 = vpop.f32.mrb[0].mxu0
      %v2899 = vadd.f32 0.0, %v2898
      %v2900 = vpop.f32.mrb[0].mxu0
      %v2901 = vpop.f32.mrb[0].mxu0
      %v2902 = vadd.f32 0.0, %v2901
      %v2903 = vpop.f32.mrb[0].mxu0
      %2904 = vmatprep.mubr.bf16.mxu0 0
      %2905 = vmatmul.mubr.bf16.gmra.mrb[0].mxu0 %v1526
      %v2906 = vpop.f32.mrb[0].mxu0
      %v2907 = vadd.f32 0.0, %v2906
      %v2908 = vpop.f32.mrb[0].mxu0
      %v2909 = vpop.f32.mrb[0].mxu0
      %v2910 = vadd.f32 0.0, %v2909
      %v2911 = vpop.f32.mrb[0].mxu0
      %2912 = vmatprep.mubr.bf16.mxu0 0
      %2913 = vmatmul.mubr.bf16.gmra.mrb[0].mxu0 %v1529
      %v2914 = vpop.f32.mrb[0].mxu0
      %v2915 = vadd.f32 0.0, %v2914
      %v2916 = vpop.f32.mrb[0].mxu0
      %v2917 = vpop.f32.mrb[0].mxu0
      %v2918 = vadd.f32 0.0, %v2917
      %v2919 = vpop.f32.mrb[0].mxu0
      %2920 = vmatprep.mubr.bf16.mxu0 0
      %2921 = vmatmul.mubr.bf16.gmra.mrb[0].mxu0 %v1532
      %v2922 = vpop.f32.mrb[0].mxu0
      %v2923 = vadd.f32 0.0, %v2922
      %v2924 = vpop.f32.mrb[0].mxu0
      %v2925 = vpop.f32.mrb[0].mxu0
      %v2926 = vadd.f32 0.0, %v2925
      %v2927 = vpop.f32.mrb[0].mxu0
      %2928 = vmatprep.mubr.bf16.mxu0 0
      %2929 = vmatmul.mubr.bf16.gmra.mrb[0].mxu0 %v1535
      %v2930 = vpop.f32.mrb[0].mxu0
      %v2931 = vadd.f32 0.0, %v2930
      %v2932 = vpop.f32.mrb[0].mxu0
      %v2933 = vpop.f32.mrb[0].mxu0
      %v2934 = vadd.f32 0.0, %v2933
      %v2935 = vpop.f32.mrb[0].mxu0
      %2936 = vmatprep.mubr.bf16.mxu0 0
      %2937 = vmatmul.mubr.bf16.gmra.mrb[0].mxu0 %v1538
      %v2938 = vpop.f32.mrb[0].mxu0
      %v2939 = vadd.f32 0.0, %v2938
      %v2940 = vpop.f32.mrb[0].mxu0
      %v2941 = vpop.f32.mrb[0].mxu0
      %v2942 = vadd.f32 0.0, %v2941
      %v2943 = vpop.f32.mrb[0].mxu0
      %2944 = vmatprep.mubr.bf16.mxu0 0
      %2945 = vmatmul.mubr.bf16.gmra.mrb[0].mxu0 %v1541
      %v2946 = vpop.f32.mrb[0].mxu0
      %v2947 = vadd.f32 0.0, %v2946
      %v2948 = vpop.f32.mrb[0].mxu0
      %v2949 = vpop.f32.mrb[0].mxu0
      %v2950 = vadd.f32 0.0, %v2949
      %v2951 = vpop.f32.mrb[0].mxu0
      %2952 = vmatprep.mubr.bf16.mxu0 0
      %2953 = vmatmul.mubr.bf16.gmra.mrb[0].mxu0 %v1544
      %v2954 = vpop.f32.mrb[0].mxu0
      %v2955 = vadd.f32 0.0, %v2954
      %v2956 = vpop.f32.mrb[0].mxu0
      %v2957 = vpop.f32.mrb[0].mxu0
      %v2958 = vadd.f32 0.0, %v2957
      %v2959 = vpop.f32.mrb[0].mxu0
      %2960 = vmatprep.mubr.bf16.mxu0 0
      %2961 = vmatmul.mubr.bf16.gmra.mrb[0].mxu0 %v1547
      %v2962 = vpop.f32.mrb[0].mxu0
      %v2963 = vadd.f32 0.0, %v2962
      %v2964 = vpop.f32.mrb[0].mxu0
      %v2965 = vpop.f32.mrb[0].mxu0
      %v2966 = vadd.f32 0.0, %v2965
      %v2967 = vpop.f32.mrb[0].mxu0
      %2968 = vmatprep.mubr.bf16.mxu0 0
      %2969 = vmatmul.mubr.bf16.gmra.mrb[0].mxu0 %v1550
      %v2970 = vpop.f32.mrb[0].mxu0
      %v2971 = vadd.f32 0.0, %v2970
      %v2972 = vpop.f32.mrb[0].mxu0
      %v2973 = vpop.f32.mrb[0].mxu0
      %v2974 = vadd.f32 0.0, %v2973
      %v2975 = vpop.f32.mrb[0].mxu0
      %2976 = vmatprep.mubr.bf16.mxu0 0
      %2977 = vmatmul.mubr.bf16.gmra.mrb[0].mxu0 %v1553
      %v2978 = vpop.f32.mrb[0].mxu0
      %v2979 = vadd.f32 0.0, %v2978
      %v2980 = vpop.f32.mrb[0].mxu0
      %v2981 = vpop.f32.mrb[0].mxu0
      %v2982 = vadd.f32 0.0, %v2981
      %v2983 = vpop.f32.mrb[0].mxu0
      %2984 = vmatprep.mubr.bf16.mxu0 0
      %2985 = vmatmul.mubr.bf16.gmra.mrb[0].mxu0 %v1556
      %v2986 = vpop.f32.mrb[0].mxu0
      %v2987 = vadd.f32 0.0, %v2986
      %v2988 = vpop.f32.mrb[0].mxu0
      %v2989 = vpop.f32.mrb[0].mxu0
      %v2990 = vadd.f32 0.0, %v2989
      %v2991 = vpop.f32.mrb[0].mxu0
      %2992 = vmatprep.mubr.bf16.mxu0 0
      %2993 = vmatmul.mubr.bf16.gmra.mrb[0].mxu0 %v1559
      %v2994 = vpop.f32.mrb[0].mxu0
      %v2995 = vadd.f32 0.0, %v2994
      %v2996 = vpop.f32.mrb[0].mxu0
      %v2997 = vpop.f32.mrb[0].mxu0
      %v2998 = vadd.f32 0.0, %v2997
      %v2999 = vpop.f32.mrb[0].mxu0
      %3000 = vmatprep.mubr.bf16.mxu0 0
      %3001 = vmatmul.mubr.bf16.gmra.mrb[0].mxu0 %v2205
      %v3002 = vpop.f32.mrb[0].mxu0
      %v3003 = vadd.f32 0.0, %v3002
      %v3004 = vpop.f32.mrb[0].mxu0
      %v3005 = vpop.f32.mrb[0].mxu0
      %v3006 = vadd.f32 0.0, %v3005
      %v3007 = vpop.f32.mrb[0].mxu0
      %3008 = vmatprep.mubr.bf16.mxu0 0
      %3009 = vmatmul.mubr.bf16.gmra.mrb[0].mxu0 %v2851
      %v3010 = vpop.f32.mrb[0].mxu0
      %v3011 = vadd.f32 0.0, %v3010
      %v3012 = vpop.f32.mrb[0].mxu0
      %v3013 = vpop.f32.mrb[0].mxu0
      %v3014 = vadd.f32 0.0, %v3013
      %v3015 = vpop.f32.mrb[0].mxu0
      %3016 = vdwg.mxu0
      %v3017 = vadd.f32 %v2805, %v2891
      %v3018 = vadd.f32 %v2806, %v2894
      %v3019 = vadd.f32 %v2807, %v2899
      %v3020 = vadd.f32 %v2808, %v2902
      %v3021 = vadd.f32 %v2809, %v2907
      %v3022 = vadd.f32 %v2810, %v2910
      %v3023 = vadd.f32 %v2811, %v2915
      %v3024 = vadd.f32 %v2812, %v2918
      %v3025 = vadd.f32 %v2813, %v2923
      %v3026 = vadd.f32 %v2814, %v2926
      %v3027 = vadd.f32 %v2815, %v2931
      %v3028 = vadd.f32 %v2816, %v2934
      %v3029 = vadd.f32 %v2817, %v2939
      %v3030 = vadd.f32 %v2818, %v2942
      %v3031 = vadd.f32 %v2819, %v2947
      %v3032 = vadd.f32 %v2820, %v2950
      %v3033 = vadd.f32 %v2821, %v2955
      %v3034 = vadd.f32 %v2822, %v2958
      %v3035 = vadd.f32 %v2823, %v2963
      %v3036 = vadd.f32 %v2824, %v2966
      %v3037 = vadd.f32 %v2825, %v2971
      %v3038 = vadd.f32 %v2826, %v2974
      %v3039 = vadd.f32 %v2827, %v2979
      %v3040 = vadd.f32 %v2828, %v2982
      %v3041 = vadd.f32 %v2829, %v2987
      %v3042 = vadd.f32 %v2830, %v2990
      %v3043 = vadd.f32 %v2831, %v2995
      %v3044 = vadd.f32 %v2832, %v2998
      %v3045 = vadd.f32 %v2833, %v3003
      %v3046 = vadd.f32 %v2834, %v3006
      %v3047 = vadd.f32 %v2835, %v3011
      %v3048 = vadd.f32 %v2836, %v3014
      %v3049 = vld [vmem:[%s2] sm:$0x1]
      %v3051 = vlaneseq
      %v3052 = vshrl.u32 %v3051, 7
      %v3053 = vsub.s32 0, %v3052
      %v3054 = vrot.slane %v3049, %v3053
      %v3056 = vmul.f32 %v3017, %v3054
      %v3057 = vmul.f32 %v3018, %v3054
      %v3058 = vmul.f32 %v3019, %v3054
      %v3059 = vmul.f32 %v3020, %v3054
      %v3060 = vmul.f32 %v3021, %v3054
      %v3061 = vmul.f32 %v3022, %v3054
      %v3062 = vmul.f32 %v3023, %v3054
      %v3063 = vmul.f32 %v3024, %v3054
      %v3064 = vmul.f32 %v3025, %v3054
      %v3065 = vmul.f32 %v3026, %v3054
      %v3066 = vmul.f32 %v3027, %v3054
      %v3067 = vmul.f32 %v3028, %v3054
      %v3068 = vmul.f32 %v3029, %v3054
      %v3069 = vmul.f32 %v3030, %v3054
      %v3070 = vmul.f32 %v3031, %v3054
      %v3071 = vmul.f32 %v3032, %v3054
      %v3072 = vmul.f32 %v3033, %v3054
      %v3073 = vmul.f32 %v3034, %v3054
      %v3074 = vmul.f32 %v3035, %v3054
      %v3075 = vmul.f32 %v3036, %v3054
      %v3076 = vmul.f32 %v3037, %v3054
      %v3077 = vmul.f32 %v3038, %v3054
      %v3078 = vmul.f32 %v3039, %v3054
      %v3079 = vmul.f32 %v3040, %v3054
      %v3080 = vmul.f32 %v3041, %v3054
      %v3081 = vmul.f32 %v3042, %v3054
      %v3082 = vmul.f32 %v3043, %v3054
      %v3083 = vmul.f32 %v3044, %v3054
      %v3084 = vmul.f32 %v3045, %v3054
      %v3085 = vmul.f32 %v3046, %v3054
      %v3086 = vmul.f32 %v3047, %v3054
      %v3087 = vmul.f32 %v3048, %v3054
      %v3088 = vld [vmem:[%s3] sm:$0x1]
      %v3090 = vlaneseq
      %v3091 = vshrl.u32 %v3090, 7
      %v3092 = vsub.s32 0, %v3091
      %v3093 = vrot.slane %v3088, %v3092
      %v3095 = vadd.f32 %v3056, %v3093
      %v3096 = vadd.f32 %v3057, %v3093
      %v3097 = vadd.f32 %v3058, %v3093
      %v3098 = vadd.f32 %v3059, %v3093
      %v3099 = vadd.f32 %v3060, %v3093
      %v3100 = vadd.f32 %v3061, %v3093
      %v3101 = vadd.f32 %v3062, %v3093
      %v3102 = vadd.f32 %v3063, %v3093
      %v3103 = vadd.f32 %v3064, %v3093
      %v3104 = vadd.f32 %v3065, %v3093
      %v3105 = vadd.f32 %v3066, %v3093
      %v3106 = vadd.f32 %v3067, %v3093
      %v3107 = vadd.f32 %v3068, %v3093
      %v3108 = vadd.f32 %v3069, %v3093
      %v3109 = vadd.f32 %v3070, %v3093
      %v3110 = vadd.f32 %v3071, %v3093
      %v3111 = vadd.f32 %v3072, %v3093
      %v3112 = vadd.f32 %v3073, %v3093
      %v3113 = vadd.f32 %v3074, %v3093
      %v3114 = vadd.f32 %v3075, %v3093
      %v3115 = vadd.f32 %v3076, %v3093
      %v3116 = vadd.f32 %v3077, %v3093
      %v3117 = vadd.f32 %v3078, %v3093
      %v3118 = vadd.f32 %v3079, %v3093
      %v3119 = vadd.f32 %v3080, %v3093
      %v3120 = vadd.f32 %v3081, %v3093
      %v3121 = vadd.f32 %v3082, %v3093
      %v3122 = vadd.f32 %v3083, %v3093
      %v3123 = vadd.f32 %v3084, %v3093
      %v3124 = vadd.f32 %v3085, %v3093
      %v3125 = vadd.f32 %v3086, %v3093
      %v3126 = vadd.f32 %v3087, %v3093
      %v3127 = vmax.f32 %v3095, 0.0
      %v3128 = vmax.f32 %v3096, 0.0
      %v3129 = vmax.f32 %v3097, 0.0
      %v3130 = vmax.f32 %v3098, 0.0
      %v3131 = vmax.f32 %v3099, 0.0
      %v3132 = vmax.f32 %v3100, 0.0
      %v3133 = vmax.f32 %v3101, 0.0
      %v3134 = vmax.f32 %v3102, 0.0
      %v3135 = vmax.f32 %v3103, 0.0
      %v3136 = vmax.f32 %v3104, 0.0
      %v3137 = vmax.f32 %v3105, 0.0
      %v3138 = vmax.f32 %v3106, 0.0
      %v3139 = vmax.f32 %v3107, 0.0
      %v3140 = vmax.f32 %v3108, 0.0
      %v3141 = vmax.f32 %v3109, 0.0
      %v3142 = vmax.f32 %v3110, 0.0
      %v3143 = vmax.f32 %v3111, 0.0
      %v3144 = vmax.f32 %v3112, 0.0
      %v3145 = vmax.f32 %v3113, 0.0
      %v3146 = vmax.f32 %v3114, 0.0
      %v3147 = vmax.f32 %v3115, 0.0
      %v3148 = vmax.f32 %v3116, 0.0
      %v3149 = vmax.f32 %v3117, 0.0
      %v3150 = vmax.f32 %v3118, 0.0
      %v3151 = vmax.f32 %v3119, 0.0
      %v3152 = vmax.f32 %v3120, 0.0
      %v3153 = vmax.f32 %v3121, 0.0
      %v3154 = vmax.f32 %v3122, 0.0
      %v3155 = vmax.f32 %v3123, 0.0
      %v3156 = vmax.f32 %v3124, 0.0
      %v3157 = vmax.f32 %v3125, 0.0
      %v3158 = vmax.f32 %v3126, 0.0
      %vm3159 = vcmask 64512
      %3160 = vst.msk [vmem:[#allocation2] sm:$0xff] %vm3159, 0.0
      %3161 = vst.msk [vmem:[#allocation2 + $0x8] sm:$0xff] %vm3159, 0.0
      %vm3162 = vcmask 58368
      %3163 = vst.msk [vmem:[#allocation2 + $0x10] sm:$0x3] %vm3162, 0.0
      %3164 = vst.msk [vmem:[#allocation2 + $0x18] sm:$0xff] %vm3159, 0.0
      %3165 = vst.msk [vmem:[#allocation2 + $0x20] sm:$0xff] %vm3159, 0.0
      %3166 = vst.msk [vmem:[#allocation2 + $0x28] sm:$0x3] %vm3162, 0.0
      %3167 = vst.msk [vmem:[#allocation2 + $0x30] sm:$0xff] %vm3159, 0.0
      %3168 = vst.msk [vmem:[#allocation2 + $0x38] sm:$0xff] %vm3159, 0.0
      %3169 = vst.msk [vmem:[#allocation2 + $0x40] sm:$0x3] %vm3162, 0.0
      %3170 = vst.msk [vmem:[#allocation2 + $0x48] sm:$0xff] %vm3159, 0.0
      %3171 = vst.msk [vmem:[#allocation2 + $0x50] sm:$0xff] %vm3159, 0.0
      %3172 = vst.msk [vmem:[#allocation2 + $0x58] sm:$0x3] %vm3162, 0.0
      %3173 = vst.msk [vmem:[#allocation2 + $0x60] sm:$0xff] %vm3159, 0.0
      %3174 = vst.msk [vmem:[#allocation2 + $0x68] sm:$0xff] %vm3159, 0.0
      %3175 = vst.msk [vmem:[#allocation2 + $0x70] sm:$0x3] %vm3162, 0.0
      %3176 = vst.msk [vmem:[#allocation2 + $0x78] sm:$0xff] %vm3159, 0.0
      %3177 = vst.msk [vmem:[#allocation2 + $0x80] sm:$0xff] %vm3159, 0.0
      %3178 = vst.msk [vmem:[#allocation2 + $0x88] sm:$0x3] %vm3162, 0.0
      %3179 = vst.msk [vmem:[#allocation2 + $0x90] sm:$0xff] %vm3159, 0.0
      %3180 = vst.msk [vmem:[#allocation2 + $0x98] sm:$0xff] %vm3159, 0.0
      %3181 = vst.msk [vmem:[#allocation2 + $0xa0] sm:$0x3] %vm3162, 0.0
      %3182 = vst.msk [vmem:[#allocation2 + $0xa8] sm:$0xff] %vm3159, 0.0
      %3183 = vst.msk [vmem:[#allocation2 + $0xb0] sm:$0xff] %vm3159, 0.0
      %3184 = vst.msk [vmem:[#allocation2 + $0xb8] sm:$0x3] %vm3162, 0.0
      %3185 = vst.msk [vmem:[#allocation2 + $0xc0] sm:$0xff] %vm3159, 0.0
      %3186 = vst.msk [vmem:[#allocation2 + $0xc8] sm:$0xff] %vm3159, 0.0
      %3187 = vst.msk [vmem:[#allocation2 + $0xd0] sm:$0x3] %vm3162, 0.0
      %3188 = vst.msk [vmem:[#allocation2 + $0xd8] sm:$0xff] %vm3159, 0.0
      %3189 = vst.msk [vmem:[#allocation2 + $0xe0] sm:$0xff] %vm3159, 0.0
      %3190 = vst.msk [vmem:[#allocation2 + $0xe8] sm:$0x3] %vm3162, 0.0
      %3191 = vst.msk [vmem:[#allocation2 + $0xf0] sm:$0xff] %vm3159, 0.0
      %3192 = vst.msk [vmem:[#allocation2 + $0xf8] sm:$0xff] %vm3159, 0.0
      %3193 = vst.msk [vmem:[#allocation2 + $0x100] sm:$0x3] %vm3162, 0.0
      %3194 = vst.msk [vmem:[#allocation2 + $0x108] sm:$0xff] %vm3159, 0.0
      %3195 = vst.msk [vmem:[#allocation2 + $0x110] sm:$0xff] %vm3159, 0.0
      %3196 = vst.msk [vmem:[#allocation2 + $0x118] sm:$0x3] %vm3162, 0.0
      %3197 = vst.msk [vmem:[#allocation2 + $0x120] sm:$0xff] %vm3159, 0.0
      %3198 = vst.msk [vmem:[#allocation2 + $0x128] sm:$0xff] %vm3159, 0.0
      %3199 = vst.msk [vmem:[#allocation2 + $0x130] sm:$0x3] %vm3162, 0.0
      %3200 = vst.msk [vmem:[#allocation2 + $0x138] sm:$0xff] %vm3159, 0.0
      %3201 = vst.msk [vmem:[#allocation2 + $0x140] sm:$0xff] %vm3159, 0.0
      %3202 = vst.msk [vmem:[#allocation2 + $0x148] sm:$0x3] %vm3162, 0.0
      %3203 = vst.msk [vmem:[#allocation2 + $0x150] sm:$0xff] %vm3159, 0.0
      %3204 = vst.msk [vmem:[#allocation2 + $0x158] sm:$0xff] %vm3159, 0.0
      %3205 = vst.msk [vmem:[#allocation2 + $0x160] sm:$0x3] %vm3162, 0.0
      %3206 = vst.msk [vmem:[#allocation2 + $0x168] sm:$0xff] %vm3159, 0.0
      %3207 = vst.msk [vmem:[#allocation2 + $0x170] sm:$0xff] %vm3159, 0.0
      %3208 = vst.msk [vmem:[#allocation2 + $0x178] sm:$0x3] %vm3162, 0.0
      %3209 = vst.msk [vmem:[#allocation2 + $0x180] sm:$0xff] %vm3159, 0.0
      %3210 = vst.msk [vmem:[#allocation2 + $0x188] sm:$0xff] %vm3159, 0.0
      %3211 = vst.msk [vmem:[#allocation2 + $0x190] sm:$0x3] %vm3162, 0.0
      %3212 = vst.msk [vmem:[#allocation2 + $0x198] sm:$0xff] %vm3159, 0.0
      %3213 = vst.msk [vmem:[#allocation2 + $0x1a0] sm:$0xff] %vm3159, 0.0
      %3214 = vst.msk [vmem:[#allocation2 + $0x1a8] sm:$0x3] %vm3162, 0.0
      %s3215 = scalar_lea.vmem [#allocation2], 24
      %3216 = vst.msk [vmem:[%s3215 + $0x1] sm:$0xff] %vm3159, %v3127
      %3217 = vst.msk [vmem:[%s3215 + $0x9] sm:$0xff] %vm3159, %v3128
      %3218 = vst.msk [vmem:[%s3215 + $0x19] sm:$0xff] %vm3159, %v3129
      %3219 = vst.msk [vmem:[%s3215 + $0x21] sm:$0xff] %vm3159, %v3130
      %3220 = vst.msk [vmem:[%s3215 + $0x31] sm:$0xff] %vm3159, %v3131
      %3221 = vst.msk [vmem:[%s3215 + $0x39] sm:$0xff] %vm3159, %v3132
      %3222 = vst.msk [vmem:[%s3215 + $0x49] sm:$0xff] %vm3159, %v3133
      %3223 = vst.msk [vmem:[%s3215 + $0x51] sm:$0xff] %vm3159, %v3134
      %3224 = vst.msk [vmem:[%s3215 + $0x61] sm:$0xff] %vm3159, %v3135
      %3225 = vst.msk [vmem:[%s3215 + $0x69] sm:$0xff] %vm3159, %v3136
      %3226 = vst.msk [vmem:[%s3215 + $0x79] sm:$0xff] %vm3159, %v3137
      %3227 = vst.msk [vmem:[%s3215 + $0x81] sm:$0xff] %vm3159, %v3138
      %3228 = vst.msk [vmem:[%s3215 + $0x91] sm:$0xff] %vm3159, %v3139
      %3229 = vst.msk [vmem:[%s3215 + $0x99] sm:$0xff] %vm3159, %v3140
      %3230 = vst.msk [vmem:[%s3215 + $0xa9] sm:$0xff] %vm3159, %v3141
      %3231 = vst.msk [vmem:[%s3215 + $0xb1] sm:$0xff] %vm3159, %v3142
      %3232 = vst.msk [vmem:[%s3215 + $0xc1] sm:$0xff] %vm3159, %v3143
      %3233 = vst.msk [vmem:[%s3215 + $0xc9] sm:$0xff] %vm3159, %v3144
      %3234 = vst.msk [vmem:[%s3215 + $0xd9] sm:$0xff] %vm3159, %v3145
      %3235 = vst.msk [vmem:[%s3215 + $0xe1] sm:$0xff] %vm3159, %v3146
      %3236 = vst.msk [vmem:[%s3215 + $0xf1] sm:$0xff] %vm3159, %v3147
      %3237 = vst.msk [vmem:[%s3215 + $0xf9] sm:$0xff] %vm3159, %v3148
      %3238 = vst.msk [vmem:[%s3215 + $0x109] sm:$0xff] %vm3159, %v3149
      %3239 = vst.msk [vmem:[%s3215 + $0x111] sm:$0xff] %vm3159, %v3150
      %3240 = vst.msk [vmem:[%s3215 + $0x121] sm:$0xff] %vm3159, %v3151
      %3241 = vst.msk [vmem:[%s3215 + $0x129] sm:$0xff] %vm3159, %v3152
      %3242 = vst.msk [vmem:[%s3215 + $0x139] sm:$0xff] %vm3159, %v3153
      %3243 = vst.msk [vmem:[%s3215 + $0x141] sm:$0xff] %vm3159, %v3154
      %3244 = vst.msk [vmem:[%s3215 + $0x151] sm:$0xff] %vm3159, %v3155
      %3245 = vst.msk [vmem:[%s3215 + $0x159] sm:$0xff] %vm3159, %v3156
      %3246 = vst.msk [vmem:[%s3215 + $0x169] sm:$0xff] %vm3159, %v3157
      %3247 = vst.msk [vmem:[%s3215 + $0x171] sm:$0xff] %vm3159, %v3158
      %v3248 = vld [vmem:[#allocation2] sm:$0xff]
      %v3249 = vld [vmem:[#allocation2 + $0x8] sm:$0xff]
      %v3250 = vld [vmem:[#allocation2 + $0x18] sm:$0xff]
      %v3251 = vld [vmem:[#allocation2 + $0x20] sm:$0xff]
      %v3252 = vld [vmem:[#allocation2 + $0x30] sm:$0xff]
      %v3253 = vld [vmem:[#allocation2 + $0x38] sm:$0xff]
      %v3254 = vld [vmem:[#allocation2 + $0x48] sm:$0xff]
      %v3255 = vld [vmem:[#allocation2 + $0x50] sm:$0xff]
      %v3256 = vld [vmem:[#allocation2 + $0x60] sm:$0xff]
      %v3257 = vld [vmem:[#allocation2 + $0x68] sm:$0xff]
      %v3258 = vld [vmem:[#allocation2 + $0x78] sm:$0xff]
      %v3259 = vld [vmem:[#allocation2 + $0x80] sm:$0xff]
      %v3260 = vld [vmem:[#allocation2 + $0x90] sm:$0xff]
      %v3261 = vld [vmem:[#allocation2 + $0x98] sm:$0xff]
      %v3262 = vld [vmem:[#allocation2 + $0xa8] sm:$0xff]
      %v3263 = vld [vmem:[#allocation2 + $0xb0] sm:$0xff]
      %v3264 = vld [vmem:[#allocation2 + $0xc0] sm:$0xff]
      %v3265 = vld [vmem:[#allocation2 + $0xc8] sm:$0xff]
      %v3266 = vld [vmem:[#allocation2 + $0xd8] sm:$0xff]
      %v3267 = vld [vmem:[#allocation2 + $0xe0] sm:$0xff]
      %v3268 = vld [vmem:[#allocation2 + $0xf0] sm:$0xff]
      %v3269 = vld [vmem:[#allocation2 + $0xf8] sm:$0xff]
      %v3270 = vld [vmem:[#allocation2 + $0x108] sm:$0xff]
      %v3271 = vld [vmem:[#allocation2 + $0x110] sm:$0xff]
      %v3272 = vld [vmem:[#allocation2 + $0x120] sm:$0xff]
      %v3273 = vld [vmem:[#allocation2 + $0x128] sm:$0xff]
      %v3274 = vld [vmem:[#allocation2 + $0x138] sm:$0xff]
      %v3275 = vld [vmem:[#allocation2 + $0x140] sm:$0xff]
      %v3276 = vld [vmem:[#allocation2 + $0x150] sm:$0xff]
      %v3277 = vld [vmem:[#allocation2 + $0x158] sm:$0xff]
      %v3278 = vld [vmem:[#allocation2 + $0x168] sm:$0xff]
      %v3279 = vld [vmem:[#allocation2 + $0x170] sm:$0xff]
      %v3280 = vpack.c.bf16 %v3249, %v3248
      %v3281 = vpack.c.bf16 %v3251, %v3250
      %v3282 = vpack.c.bf16 %v3253, %v3252
      %v3283 = vpack.c.bf16 %v3255, %v3254
      %v3284 = vpack.c.bf16 %v3257, %v3256
      %v3285 = vpack.c.bf16 %v3259, %v3258
      %v3286 = vpack.c.bf16 %v3261, %v3260
      %v3287 = vpack.c.bf16 %v3263, %v3262
      %v3288 = vpack.c.bf16 %v3265, %v3264
      %v3289 = vpack.c.bf16 %v3267, %v3266
      %v3290 = vpack.c.bf16 %v3269, %v3268
      %v3291 = vpack.c.bf16 %v3271, %v3270
      %v3292 = vpack.c.bf16 %v3273, %v3272
      %v3293 = vpack.c.bf16 %v3275, %v3274
      %v3294 = vpack.c.bf16 %v3277, %v3276
      %v3295 = vpack.c.bf16 %v3279, %v3278
      %v3296 = vld [vmem:[%s4] sm:$0xf]
      %v3297 = vld [vmem:[#allocation2 + $0x1] sm:$0xff]
      %v3298 = vld [vmem:[#allocation2 + $0x9] sm:$0xff]
      %v3299 = vld [vmem:[#allocation2 + $0x19] sm:$0xff]
      %v3300 = vld [vmem:[#allocation2 + $0x21] sm:$0xff]
      %v3301 = vld [vmem:[#allocation2 + $0x31] sm:$0xff]
      %v3302 = vld [vmem:[#allocation2 + $0x39] sm:$0xff]
      %v3303 = vld [vmem:[#allocation2 + $0x49] sm:$0xff]
      %v3304 = vld [vmem:[#allocation2 + $0x51] sm:$0xff]
      %v3305 = vld [vmem:[#allocation2 + $0x61] sm:$0xff]
      %v3306 = vld [vmem:[#allocation2 + $0x69] sm:$0xff]
      %v3307 = vld [vmem:[#allocation2 + $0x79] sm:$0xff]
      %v3308 = vld [vmem:[#allocation2 + $0x81] sm:$0xff]
      %v3309 = vld [vmem:[#allocation2 + $0x91] sm:$0xff]
      %v3310 = vld [vmem:[#allocation2 + $0x99] sm:$0xff]
      %v3311 = vld [vmem:[#allocation2 + $0xa9] sm:$0xff]
      %v3312 = vld [vmem:[#allocation2 + $0xb1] sm:$0xff]
      %v3313 = vld [vmem:[#allocation2 + $0xc1] sm:$0xff]
      %v3314 = vld [vmem:[#allocation2 + $0xc9] sm:$0xff]
      %v3315 = vld [vmem:[#allocation2 + $0xd9] sm:$0xff]
      %v3316 = vld [vmem:[#allocation2 + $0xe1] sm:$0xff]
      %v3317 = vld [vmem:[#allocation2 + $0xf1] sm:$0xff]
      %v3318 = vld [vmem:[#allocation2 + $0xf9] sm:$0xff]
      %v3319 = vld [vmem:[#allocation2 + $0x109] sm:$0xff]
      %v3320 = vld [vmem:[#allocation2 + $0x111] sm:$0xff]
      %v3321 = vld [vmem:[#allocation2 + $0x121] sm:$0xff]
      %v3322 = vld [vmem:[#allocation2 + $0x129] sm:$0xff]
      %v3323 = vld [vmem:[#allocation2 + $0x139] sm:$0xff]
      %v3324 = vld [vmem:[#allocation2 + $0x141] sm:$0xff]
      %v3325 = vld [vmem:[#allocation2 + $0x151] sm:$0xff]
      %v3326 = vld [vmem:[#allocation2 + $0x159] sm:$0xff]
      %v3327 = vld [vmem:[#allocation2 + $0x169] sm:$0xff]
      %v3328 = vld [vmem:[#allocation2 + $0x171] sm:$0xff]
      %v3329 = vpack.c.bf16 %v3298, %v3297
      %v3330 = vpack.c.bf16 %v3300, %v3299
      %v3331 = vpack.c.bf16 %v3302, %v3301
      %v3332 = vpack.c.bf16 %v3304, %v3303
      %v3333 = vpack.c.bf16 %v3306, %v3305
      %v3334 = vpack.c.bf16 %v3308, %v3307
      %v3335 = vpack.c.bf16 %v3310, %v3309
      %v3336 = vpack.c.bf16 %v3312, %v3311
      %v3337 = vpack.c.bf16 %v3314, %v3313
      %v3338 = vpack.c.bf16 %v3316, %v3315
      %v3339 = vpack.c.bf16 %v3318, %v3317
      %v3340 = vpack.c.bf16 %v3320, %v3319
      %v3341 = vpack.c.bf16 %v3322, %v3321
      %v3342 = vpack.c.bf16 %v3324, %v3323
      %v3343 = vpack.c.bf16 %v3326, %v3325
      %v3344 = vpack.c.bf16 %v3328, %v3327
      %s3345 = scalar_lea.vmem %s4, 4
      %v3346 = vld [vmem:[%s3345] sm:$0xf]
      %v3348 = vsel %vm3159, %v3329, 0
      %v3351 = vsel %vm3159, %v3330, 0
      %v3354 = vsel %vm3159, %v3331, 0
      %v3357 = vsel %vm3159, %v3332, 0
      %v3360 = vsel %vm3159, %v3333, 0
      %v3363 = vsel %vm3159, %v3334, 0
      %v3366 = vsel %vm3159, %v3335, 0
      %v3369 = vsel %vm3159, %v3336, 0
      %v3372 = vsel %vm3159, %v3337, 0
      %v3375 = vsel %vm3159, %v3338, 0
      %v3378 = vsel %vm3159, %v3339, 0
      %v3381 = vsel %vm3159, %v3340, 0
      %v3384 = vsel %vm3159, %v3341, 0
      %v3387 = vsel %vm3159, %v3342, 0
      %v3390 = vsel %vm3159, %v3343, 0
      %v3393 = vsel %vm3159, %v3344, 0
      %vm3395 = vcmask 1043456
      %v3397 = vsel %vm3395, %v3346, 0
      %3399 = vmatprep.subr.bf16.mxu0 0
      %3400 = vmatpush1.bf16.msra.mxu0 %v3397
      %3401 = vmatprep.subr.bf16.mxu0 0
      %3402 = vmatpush1.bf16.msra.mxu0 0
      %3403 = vmatprep.subr.bf16.mxu0 0
      %3404 = vmatpush1.bf16.msra.mxu0 0
      %3405 = vmatprep.subr.bf16.mxu0 0
      %3406 = vmatpush1.bf16.msra.mxu0 0
      %3407 = vmatprep.subr.bf16.mxu0 0
      %3408 = vmatpush1.bf16.msra.mxu0 0
      %3409 = vmatprep.subr.bf16.mxu0 0
      %3410 = vmatpush1.bf16.msra.mxu0 0
      %3411 = vmatprep.subr.bf16.mxu0 0
      %3412 = vmatpush1.bf16.msra.mxu0 0
      %3413 = vmatprep.subr.bf16.mxu0 0
      %3414 = vmatpush1.bf16.msra.mxu0 0
      %3415 = vmatprep.subr.bf16.mxu0 0
      %3416 = vmatpush1.bf16.msra.mxu0 0
      %3417 = vmatprep.subr.bf16.mxu0 0
      %3418 = vmatpush1.bf16.msra.mxu0 0
      %3419 = vmatprep.subr.bf16.mxu0 0
      %3420 = vmatpush1.bf16.msra.mxu0 0
      %3421 = vmatprep.subr.bf16.mxu0 0
      %3422 = vmatpush1.bf16.msra.mxu0 0
      %3423 = vmatprep.subr.bf16.mxu0 0
      %3424 = vmatpush1.bf16.msra.mxu0 0
      %3425 = vmatprep.subr.bf16.mxu0 0
      %3426 = vmatpush1.bf16.msra.mxu0 0
      %3427 = vmatprep.subr.bf16.mxu0 0
      %3428 = vmatpush1.bf16.msra.mxu0 0
      %3429 = vmatprep.subr.bf16.mxu0 0
      %3430 = vmatpush1.bf16.msra.mxu0 0
      %3431 = vmatprep.mubr.bf16.mxu0 0
      %3432 = vmatmul.mubr.bf16.gmra.mrb[0].mxu0 %v3348
      %v3433 = vpop.f32.mrb[0].mxu0
      %v3434 = vadd.f32 0.0, %v3433
      %v3435 = vpop.f32.mrb[0].mxu0
      %v3436 = vpop.f32.mrb[0].mxu0
      %v3437 = vadd.f32 0.0, %v3436
      %v3438 = vpop.f32.mrb[0].mxu0
      %3439 = vmatprep.mubr.bf16.mxu0 0
      %3440 = vmatmul.mubr.bf16.gmra.mrb[0].mxu0 %v3351
      %v3441 = vpop.f32.mrb[0].mxu0
      %v3442 = vadd.f32 0.0, %v3441
      %v3443 = vpop.f32.mrb[0].mxu0
      %v3444 = vpop.f32.mrb[0].mxu0
      %v3445 = vadd.f32 0.0, %v3444
      %v3446 = vpop.f32.mrb[0].mxu0
      %3447 = vmatprep.mubr.bf16.mxu0 0
      %3448 = vmatmul.mubr.bf16.gmra.mrb[0].mxu0 %v3354
      %v3449 = vpop.f32.mrb[0].mxu0
      %v3450 = vadd.f32 0.0, %v3449
      %v3451 = vpop.f32.mrb[0].mxu0
      %v3452 = vpop.f32.mrb[0].mxu0
      %v3453 = vadd.f32 0.0, %v3452
      %v3454 = vpop.f32.mrb[0].mxu0
      %3455 = vmatprep.mubr.bf16.mxu0 0
      %3456 = vmatmul.mubr.bf16.gmra.mrb[0].mxu0 %v3357
      %v3457 = vpop.f32.mrb[0].mxu0
      %v3458 = vadd.f32 0.0, %v3457
      %v3459 = vpop.f32.mrb[0].mxu0
      %v3460 = vpop.f32.mrb[0].mxu0
      %v3461 = vadd.f32 0.0, %v3460
      %v3462 = vpop.f32.mrb[0].mxu0
      %3463 = vmatprep.mubr.bf16.mxu0 0
      %3464 = vmatmul.mubr.bf16.gmra.mrb[0].mxu0 %v3360
      %v3465 = vpop.f32.mrb[0].mxu0
      %v3466 = vadd.f32 0.0, %v3465
      %v3467 = vpop.f32.mrb[0].mxu0
      %v3468 = vpop.f32.mrb[0].mxu0
      %v3469 = vadd.f32 0.0, %v3468
      %v3470 = vpop.f32.mrb[0].mxu0
      %3471 = vmatprep.mubr.bf16.mxu0 0
      %3472 = vmatmul.mubr.bf16.gmra.mrb[0].mxu0 %v3363
      %v3473 = vpop.f32.mrb[0].mxu0
      %v3474 = vadd.f32 0.0, %v3473
      %v3475 = vpop.f32.mrb[0].mxu0
      %v3476 = vpop.f32.mrb[0].mxu0
      %v3477 = vadd.f32 0.0, %v3476
      %v3478 = vpop.f32.mrb[0].mxu0
      %3479 = vmatprep.mubr.bf16.mxu0 0
      %3480 = vmatmul.mubr.bf16.gmra.mrb[0].mxu0 %v3366
      %v3481 = vpop.f32.mrb[0].mxu0
      %v3482 = vadd.f32 0.0, %v3481
      %v3483 = vpop.f32.mrb[0].mxu0
      %v3484 = vpop.f32.mrb[0].mxu0
      %v3485 = vadd.f32 0.0, %v3484
      %v3486 = vpop.f32.mrb[0].mxu0
      %3487 = vmatprep.mubr.bf16.mxu0 0
      %3488 = vmatmul.mubr.bf16.gmra.mrb[0].mxu0 %v3369
      %v3489 = vpop.f32.mrb[0].mxu0
      %v3490 = vadd.f32 0.0, %v3489
      %v3491 = vpop.f32.mrb[0].mxu0
      %v3492 = vpop.f32.mrb[0].mxu0
      %v3493 = vadd.f32 0.0, %v3492
      %v3494 = vpop.f32.mrb[0].mxu0
      %3495 = vmatprep.mubr.bf16.mxu0 0
      %3496 = vmatmul.mubr.bf16.gmra.mrb[0].mxu0 %v3372
      %v3497 = vpop.f32.mrb[0].mxu0
      %v3498 = vadd.f32 0.0, %v3497
      %v3499 = vpop.f32.mrb[0].mxu0
      %v3500 = vpop.f32.mrb[0].mxu0
      %v3501 = vadd.f32 0.0, %v3500
      %v3502 = vpop.f32.mrb[0].mxu0
      %3503 = vmatprep.mubr.bf16.mxu0 0
      %3504 = vmatmul.mubr.bf16.gmra.mrb[0].mxu0 %v3375
      %v3505 = vpop.f32.mrb[0].mxu0
      %v3506 = vadd.f32 0.0, %v3505
      %v3507 = vpop.f32.mrb[0].mxu0
      %v3508 = vpop.f32.mrb[0].mxu0
      %v3509 = vadd.f32 0.0, %v3508
      %v3510 = vpop.f32.mrb[0].mxu0
      %3511 = vmatprep.mubr.bf16.mxu0 0
      %3512 = vmatmul.mubr.bf16.gmra.mrb[0].mxu0 %v3378
      %v3513 = vpop.f32.mrb[0].mxu0
      %v3514 = vadd.f32 0.0, %v3513
      %v3515 = vpop.f32.mrb[0].mxu0
      %v3516 = vpop.f32.mrb[0].mxu0
      %v3517 = vadd.f32 0.0, %v3516
      %v3518 = vpop.f32.mrb[0].mxu0
      %3519 = vmatprep.mubr.bf16.mxu0 0
      %3520 = vmatmul.mubr.bf16.gmra.mrb[0].mxu0 %v3381
      %v3521 = vpop.f32.mrb[0].mxu0
      %v3522 = vadd.f32 0.0, %v3521
      %v3523 = vpop.f32.mrb[0].mxu0
      %v3524 = vpop.f32.mrb[0].mxu0
      %v3525 = vadd.f32 0.0, %v3524
      %v3526 = vpop.f32.mrb[0].mxu0
      %3527 = vmatprep.mubr.bf16.mxu0 0
      %3528 = vmatmul.mubr.bf16.gmra.mrb[0].mxu0 %v3384
      %v3529 = vpop.f32.mrb[0].mxu0
      %v3530 = vadd.f32 0.0, %v3529
      %v3531 = vpop.f32.mrb[0].mxu0
      %v3532 = vpop.f32.mrb[0].mxu0
      %v3533 = vadd.f32 0.0, %v3532
      %v3534 = vpop.f32.mrb[0].mxu0
      %3535 = vmatprep.mubr.bf16.mxu0 0
      %3536 = vmatmul.mubr.bf16.gmra.mrb[0].mxu0 %v3387
      %v3537 = vpop.f32.mrb[0].mxu0
      %v3538 = vadd.f32 0.0, %v3537
      %v3539 = vpop.f32.mrb[0].mxu0
      %v3540 = vpop.f32.mrb[0].mxu0
      %v3541 = vadd.f32 0.0, %v3540
      %v3542 = vpop.f32.mrb[0].mxu0
      %3543 = vmatprep.mubr.bf16.mxu0 0
      %3544 = vmatmul.mubr.bf16.gmra.mrb[0].mxu0 %v3390
      %v3545 = vpop.f32.mrb[0].mxu0
      %v3546 = vadd.f32 0.0, %v3545
      %v3547 = vpop.f32.mrb[0].mxu0
      %v3548 = vpop.f32.mrb[0].mxu0
      %v3549 = vadd.f32 0.0, %v3548
      %v3550 = vpop.f32.mrb[0].mxu0
      %3551 = vmatprep.mubr.bf16.mxu0 0
      %3552 = vmatmul.mubr.bf16.gmra.mrb[0].mxu0 %v3393
      %v3553 = vpop.f32.mrb[0].mxu0
      %v3554 = vadd.f32 0.0, %v3553
      %v3555 = vpop.f32.mrb[0].mxu0
      %v3556 = vpop.f32.mrb[0].mxu0
      %v3557 = vadd.f32 0.0, %v3556
      %v3558 = vpop.f32.mrb[0].mxu0
      %3559 = vdwg.mxu0
      %v3561 = vsel %vm3159, %v3280, 0
      %v3564 = vsel %vm3159, %v3281, 0
      %v3567 = vsel %vm3159, %v3282, 0
      %v3570 = vsel %vm3159, %v3283, 0
      %v3573 = vsel %vm3159, %v3284, 0
      %v3576 = vsel %vm3159, %v3285, 0
      %v3579 = vsel %vm3159, %v3286, 0
      %v3582 = vsel %vm3159, %v3287, 0
      %v3585 = vsel %vm3159, %v3288, 0
      %v3588 = vsel %vm3159, %v3289, 0
      %v3591 = vsel %vm3159, %v3290, 0
      %v3594 = vsel %vm3159, %v3291, 0
      %v3597 = vsel %vm3159, %v3292, 0
      %v3600 = vsel %vm3159, %v3293, 0
      %v3603 = vsel %vm3159, %v3294, 0
      %v3606 = vsel %vm3159, %v3295, 0
      %v3609 = vsel %vm3395, %v3296, 0
      %3611 = vmatprep.subr.bf16.mxu0 0
      %3612 = vmatpush1.bf16.msra.mxu0 %v3609
      %3613 = vmatprep.subr.bf16.mxu0 0
      %3614 = vmatpush1.bf16.msra.mxu0 0
      %3615 = vmatprep.subr.bf16.mxu0 0
      %3616 = vmatpush1.bf16.msra.mxu0 0
      %3617 = vmatprep.subr.bf16.mxu0 0
      %3618 = vmatpush1.bf16.msra.mxu0 0
      %3619 = vmatprep.subr.bf16.mxu0 0
      %3620 = vmatpush1.bf16.msra.mxu0 0
      %3621 = vmatprep.subr.bf16.mxu0 0
      %3622 = vmatpush1.bf16.msra.mxu0 0
      %3623 = vmatprep.subr.bf16.mxu0 0
      %3624 = vmatpush1.bf16.msra.mxu0 0
      %3625 = vmatprep.subr.bf16.mxu0 0
      %3626 = vmatpush1.bf16.msra.mxu0 0
      %3627 = vmatprep.subr.bf16.mxu0 0
      %3628 = vmatpush1.bf16.msra.mxu0 0
      %3629 = vmatprep.subr.bf16.mxu0 0
      %3630 = vmatpush1.bf16.msra.mxu0 0
      %3631 = vmatprep.subr.bf16.mxu0 0
      %3632 = vmatpush1.bf16.msra.mxu0 0
      %3633 = vmatprep.subr.bf16.mxu0 0
      %3634 = vmatpush1.bf16.msra.mxu0 0
      %3635 = vmatprep.subr.bf16.mxu0 0
      %3636 = vmatpush1.bf16.msra.mxu0 0
      %3637 = vmatprep.subr.bf16.mxu0 0
      %3638 = vmatpush1.bf16.msra.mxu0 0
      %3639 = vmatprep.subr.bf16.mxu0 0
      %3640 = vmatpush1.bf16.msra.mxu0 0
      %3641 = vmatprep.subr.bf16.mxu0 0
      %3642 = vmatpush1.bf16.msra.mxu0 0
      %3643 = vmatprep.mubr.bf16.mxu0 0
      %3644 = vmatmul.mubr.bf16.gmra.mrb[0].mxu0 %v3561
      %v3645 = vpop.f32.mrb[0].mxu0
      %v3646 = vadd.f32 %v3434, %v3645
      %v3647 = vpop.f32.mrb[0].mxu0
      %v3648 = vpop.f32.mrb[0].mxu0
      %v3649 = vadd.f32 %v3437, %v3648
      %v3650 = vpop.f32.mrb[0].mxu0
      %3651 = vmatprep.mubr.bf16.mxu0 0
      %3652 = vmatmul.mubr.bf16.gmra.mrb[0].mxu0 %v3564
      %v3653 = vpop.f32.mrb[0].mxu0
      %v3654 = vadd.f32 %v3442, %v3653
      %v3655 = vpop.f32.mrb[0].mxu0
      %v3656 = vpop.f32.mrb[0].mxu0
      %v3657 = vadd.f32 %v3445, %v3656
      %v3658 = vpop.f32.mrb[0].mxu0
      %3659 = vmatprep.mubr.bf16.mxu0 0
      %3660 = vmatmul.mubr.bf16.gmra.mrb[0].mxu0 %v3567
      %v3661 = vpop.f32.mrb[0].mxu0
      %v3662 = vadd.f32 %v3450, %v3661
      %v3663 = vpop.f32.mrb[0].mxu0
      %v3664 = vpop.f32.mrb[0].mxu0
      %v3665 = vadd.f32 %v3453, %v3664
      %v3666 = vpop.f32.mrb[0].mxu0
      %3667 = vmatprep.mubr.bf16.mxu0 0
      %3668 = vmatmul.mubr.bf16.gmra.mrb[0].mxu0 %v3570
      %v3669 = vpop.f32.mrb[0].mxu0
      %v3670 = vadd.f32 %v3458, %v3669
      %v3671 = vpop.f32.mrb[0].mxu0
      %v3672 = vpop.f32.mrb[0].mxu0
      %v3673 = vadd.f32 %v3461, %v3672
      %v3674 = vpop.f32.mrb[0].mxu0
      %3675 = vmatprep.mubr.bf16.mxu0 0
      %3676 = vmatmul.mubr.bf16.gmra.mrb[0].mxu0 %v3573
      %v3677 = vpop.f32.mrb[0].mxu0
      %v3678 = vadd.f32 %v3466, %v3677
      %v3679 = vpop.f32.mrb[0].mxu0
      %v3680 = vpop.f32.mrb[0].mxu0
      %v3681 = vadd.f32 %v3469, %v3680
      %v3682 = vpop.f32.mrb[0].mxu0
      %3683 = vmatprep.mubr.bf16.mxu0 0
      %3684 = vmatmul.mubr.bf16.gmra.mrb[0].mxu0 %v3576
      %v3685 = vpop.f32.mrb[0].mxu0
      %v3686 = vadd.f32 %v3474, %v3685
      %v3687 = vpop.f32.mrb[0].mxu0
      %v3688 = vpop.f32.mrb[0].mxu0
      %v3689 = vadd.f32 %v3477, %v3688
      %v3690 = vpop.f32.mrb[0].mxu0
      %3691 = vmatprep.mubr.bf16.mxu0 0
      %3692 = vmatmul.mubr.bf16.gmra.mrb[0].mxu0 %v3579
      %v3693 = vpop.f32.mrb[0].mxu0
      %v3694 = vadd.f32 %v3482, %v3693
      %v3695 = vpop.f32.mrb[0].mxu0
      %v3696 = vpop.f32.mrb[0].mxu0
      %v3697 = vadd.f32 %v3485, %v3696
      %v3698 = vpop.f32.mrb[0].mxu0
      %3699 = vmatprep.mubr.bf16.mxu0 0
      %3700 = vmatmul.mubr.bf16.gmra.mrb[0].mxu0 %v3582
      %v3701 = vpop.f32.mrb[0].mxu0
      %v3702 = vadd.f32 %v3490, %v3701
      %v3703 = vpop.f32.mrb[0].mxu0
      %v3704 = vpop.f32.mrb[0].mxu0
      %v3705 = vadd.f32 %v3493, %v3704
      %v3706 = vpop.f32.mrb[0].mxu0
      %3707 = vmatprep.mubr.bf16.mxu0 0
      %3708 = vmatmul.mubr.bf16.gmra.mrb[0].mxu0 %v3585
      %v3709 = vpop.f32.mrb[0].mxu0
      %v3710 = vadd.f32 %v3498, %v3709
      %v3711 = vpop.f32.mrb[0].mxu0
      %v3712 = vpop.f32.mrb[0].mxu0
      %v3713 = vadd.f32 %v3501, %v3712
      %v3714 = vpop.f32.mrb[0].mxu0
      %3715 = vmatprep.mubr.bf16.mxu0 0
      %3716 = vmatmul.mubr.bf16.gmra.mrb[0].mxu0 %v3588
      %v3717 = vpop.f32.mrb[0].mxu0
      %v3718 = vadd.f32 %v3506, %v3717
      %v3719 = vpop.f32.mrb[0].mxu0
      %v3720 = vpop.f32.mrb[0].mxu0
      %v3721 = vadd.f32 %v3509, %v3720
      %v3722 = vpop.f32.mrb[0].mxu0
      %3723 = vmatprep.mubr.bf16.mxu0 0
      %3724 = vmatmul.mubr.bf16.gmra.mrb[0].mxu0 %v3591
      %v3725 = vpop.f32.mrb[0].mxu0
      %v3726 = vadd.f32 %v3514, %v3725
      %v3727 = vpop.f32.mrb[0].mxu0
      %v3728 = vpop.f32.mrb[0].mxu0
      %v3729 = vadd.f32 %v3517, %v3728
      %v3730 = vpop.f32.mrb[0].mxu0
      %3731 = vmatprep.mubr.bf16.mxu0 0
      %3732 = vmatmul.mubr.bf16.gmra.mrb[0].mxu0 %v3594
      %v3733 = vpop.f32.mrb[0].mxu0
      %v3734 = vadd.f32 %v3522, %v3733
      %v3735 = vpop.f32.mrb[0].mxu0
      %v3736 = vpop.f32.mrb[0].mxu0
      %v3737 = vadd.f32 %v3525, %v3736
      %v3738 = vpop.f32.mrb[0].mxu0
      %3739 = vmatprep.mubr.bf16.mxu0 0
      %3740 = vmatmul.mubr.bf16.gmra.mrb[0].mxu0 %v3597
      %v3741 = vpop.f32.mrb[0].mxu0
      %v3742 = vadd.f32 %v3530, %v3741
      %v3743 = vpop.f32.mrb[0].mxu0
      %v3744 = vpop.f32.mrb[0].mxu0
      %v3745 = vadd.f32 %v3533, %v3744
      %v3746 = vpop.f32.mrb[0].mxu0
      %3747 = vmatprep.mubr.bf16.mxu0 0
      %3748 = vmatmul.mubr.bf16.gmra.mrb[0].mxu0 %v3600
      %v3749 = vpop.f32.mrb[0].mxu0
      %v3750 = vadd.f32 %v3538, %v3749
      %v3751 = vpop.f32.mrb[0].mxu0
      %v3752 = vpop.f32.mrb[0].mxu0
      %v3753 = vadd.f32 %v3541, %v3752
      %v3754 = vpop.f32.mrb[0].mxu0
      %3755 = vmatprep.mubr.bf16.mxu0 0
      %3756 = vmatmul.mubr.bf16.gmra.mrb[0].mxu0 %v3603
      %v3757 = vpop.f32.mrb[0].mxu0
      %v3758 = vadd.f32 %v3546, %v3757
      %v3759 = vpop.f32.mrb[0].mxu0
      %v3760 = vpop.f32.mrb[0].mxu0
      %v3761 = vadd.f32 %v3549, %v3760
      %v3762 = vpop.f32.mrb[0].mxu0
      %3763 = vmatprep.mubr.bf16.mxu0 0
      %3764 = vmatmul.mubr.bf16.gmra.mrb[0].mxu0 %v3606
      %v3765 = vpop.f32.mrb[0].mxu0
      %v3766 = vadd.f32 %v3554, %v3765
      %v3767 = vpop.f32.mrb[0].mxu0
      %v3768 = vpop.f32.mrb[0].mxu0
      %v3769 = vadd.f32 %v3557, %v3768
      %v3770 = vpop.f32.mrb[0].mxu0
      %3771 = vdwg.mxu0
      %v3772 = vld [vmem:[#allocation2 + $0x2] sm:$0xff]
      %v3773 = vld [vmem:[#allocation2 + $0xa] sm:$0xff]
      %v3774 = vld [vmem:[#allocation2 + $0x1a] sm:$0xff]
      %v3775 = vld [vmem:[#allocation2 + $0x22] sm:$0xff]
      %v3776 = vld [vmem:[#allocation2 + $0x32] sm:$0xff]
      %v3777 = vld [vmem:[#allocation2 + $0x3a] sm:$0xff]
      %v3778 = vld [vmem:[#allocation2 + $0x4a] sm:$0xff]
      %v3779 = vld [vmem:[#allocation2 + $0x52] sm:$0xff]
      %v3780 = vld [vmem:[#allocation2 + $0x62] sm:$0xff]
      %v3781 = vld [vmem:[#allocation2 + $0x6a] sm:$0xff]
      %v3782 = vld [vmem:[#allocation2 + $0x7a] sm:$0xff]
      %v3783 = vld [vmem:[#allocation2 + $0x82] sm:$0xff]
      %v3784 = vld [vmem:[#allocation2 + $0x92] sm:$0xff]
      %v3785 = vld [vmem:[#allocation2 + $0x9a] sm:$0xff]
      %v3786 = vld [vmem:[#allocation2 + $0xaa] sm:$0xff]
      %v3787 = vld [vmem:[#allocation2 + $0xb2] sm:$0xff]
      %v3788 = vld [vmem:[#allocation2 + $0xc2] sm:$0xff]
      %v3789 = vld [vmem:[#allocation2 + $0xca] sm:$0xff]
      %v3790 = vld [vmem:[#allocation2 + $0xda] sm:$0xff]
      %v3791 = vld [vmem:[#allocation2 + $0xe2] sm:$0xff]
      %v3792 = vld [vmem:[#allocation2 + $0xf2] sm:$0xff]
      %v3793 = vld [vmem:[#allocation2 + $0xfa] sm:$0xff]
      %v3794 = vld [vmem:[#allocation2 + $0x10a] sm:$0xff]
      %v3795 = vld [vmem:[#allocation2 + $0x112] sm:$0xff]
      %v3796 = vld [vmem:[#allocation2 + $0x122] sm:$0xff]
      %v3797 = vld [vmem:[#allocation2 + $0x12a] sm:$0xff]
      %v3798 = vld [vmem:[#allocation2 + $0x13a] sm:$0xff]
      %v3799 = vld [vmem:[#allocation2 + $0x142] sm:$0xff]
      %v3800 = vld [vmem:[#allocation2 + $0x152] sm:$0xff]
      %v3801 = vld [vmem:[#allocation2 + $0x15a] sm:$0xff]
      %v3802 = vld [vmem:[#allocation2 + $0x16a] sm:$0xff]
      %v3803 = vld [vmem:[#allocation2 + $0x172] sm:$0xff]
      %v3804 = vpack.c.bf16 %v3773, %v3772
      %v3805 = vpack.c.bf16 %v3775, %v3774
      %v3806 = vpack.c.bf16 %v3777, %v3776
      %v3807 = vpack.c.bf16 %v3779, %v3778
      %v3808 = vpack.c.bf16 %v3781, %v3780
      %v3809 = vpack.c.bf16 %v3783, %v3782
      %v3810 = vpack.c.bf16 %v3785, %v3784
      %v3811 = vpack.c.bf16 %v3787, %v3786
      %v3812 = vpack.c.bf16 %v3789, %v3788
      %v3813 = vpack.c.bf16 %v3791, %v3790
      %v3814 = vpack.c.bf16 %v3793, %v3792
      %v3815 = vpack.c.bf16 %v3795, %v3794
      %v3816 = vpack.c.bf16 %v3797, %v3796
      %v3817 = vpack.c.bf16 %v3799, %v3798
      %v3818 = vpack.c.bf16 %v3801, %v3800
      %v3819 = vpack.c.bf16 %v3803, %v3802
      %s3820 = scalar_lea.vmem %s4, 8
      %v3821 = vld [vmem:[%s3820] sm:$0xf]
      %v3823 = vsel %vm3159, %v3804, 0
      %v3826 = vsel %vm3159, %v3805, 0
      %v3829 = vsel %vm3159, %v3806, 0
      %v3832 = vsel %vm3159, %v3807, 0
      %v3835 = vsel %vm3159, %v3808, 0
      %v3838 = vsel %vm3159, %v3809, 0
      %v3841 = vsel %vm3159, %v3810, 0
      %v3844 = vsel %vm3159, %v3811, 0
      %v3847 = vsel %vm3159, %v3812, 0
      %v3850 = vsel %vm3159, %v3813, 0
      %v3853 = vsel %vm3159, %v3814, 0
      %v3856 = vsel %vm3159, %v3815, 0
      %v3859 = vsel %vm3159, %v3816, 0
      %v3862 = vsel %vm3159, %v3817, 0
      %v3865 = vsel %vm3159, %v3818, 0
      %v3868 = vsel %vm3159, %v3819, 0
      %v3871 = vsel %vm3395, %v3821, 0
      %3873 = vmatprep.subr.bf16.mxu0 0
      %3874 = vmatpush1.bf16.msra.mxu0 %v3871
      %3875 = vmatprep.subr.bf16.mxu0 0
      %3876 = vmatpush1.bf16.msra.mxu0 0
      %3877 = vmatprep.subr.bf16.mxu0 0
      %3878 = vmatpush1.bf16.msra.mxu0 0
      %3879 = vmatprep.subr.bf16.mxu0 0
      %3880 = vmatpush1.bf16.msra.mxu0 0
      %3881 = vmatprep.subr.bf16.mxu0 0
      %3882 = vmatpush1.bf16.msra.mxu0 0
      %3883 = vmatprep.subr.bf16.mxu0 0
      %3884 = vmatpush1.bf16.msra.mxu0 0
      %3885 = vmatprep.subr.bf16.mxu0 0
      %3886 = vmatpush1.bf16.msra.mxu0 0
      %3887 = vmatprep.subr.bf16.mxu0 0
      %3888 = vmatpush1.bf16.msra.mxu0 0
      %3889 = vmatprep.subr.bf16.mxu0 0
      %3890 = vmatpush1.bf16.msra.mxu0 0
      %3891 = vmatprep.subr.bf16.mxu0 0
      %3892 = vmatpush1.bf16.msra.mxu0 0
      %3893 = vmatprep.subr.bf16.mxu0 0
      %3894 = vmatpush1.bf16.msra.mxu0 0
      %3895 = vmatprep.subr.bf16.mxu0 0
      %3896 = vmatpush1.bf16.msra.mxu0 0
      %3897 = vmatprep.subr.bf16.mxu0 0
      %3898 = vmatpush1.bf16.msra.mxu0 0
      %3899 = vmatprep.subr.bf16.mxu0 0
      %3900 = vmatpush1.bf16.msra.mxu0 0
      %3901 = vmatprep.subr.bf16.mxu0 0
      %3902 = vmatpush1.bf16.msra.mxu0 0
      %3903 = vmatprep.subr.bf16.mxu0 0
      %3904 = vmatpush1.bf16.msra.mxu0 0
      %3905 = vmatprep.mubr.bf16.mxu0 0
      %3906 = vmatmul.mubr.bf16.gmra.mrb[0].mxu0 %v3823
      %v3907 = vpop.f32.mrb[0].mxu0
      %v3908 = vadd.f32 0.0, %v3907
      %v3909 = vpop.f32.mrb[0].mxu0
      %v3910 = vpop.f32.mrb[0].mxu0
      %v3911 = vadd.f32 0.0, %v3910
      %v3912 = vpop.f32.mrb[0].mxu0
      %3913 = vmatprep.mubr.bf16.mxu0 0
      %3914 = vmatmul.mubr.bf16.gmra.mrb[0].mxu0 %v3826
      %v3915 = vpop.f32.mrb[0].mxu0
      %v3916 = vadd.f32 0.0, %v3915
      %v3917 = vpop.f32.mrb[0].mxu0
      %v3918 = vpop.f32.mrb[0].mxu0
      %v3919 = vadd.f32 0.0, %v3918
      %v3920 = vpop.f32.mrb[0].mxu0
      %3921 = vmatprep.mubr.bf16.mxu0 0
      %3922 = vmatmul.mubr.bf16.gmra.mrb[0].mxu0 %v3829
      %v3923 = vpop.f32.mrb[0].mxu0
      %v3924 = vadd.f32 0.0, %v3923
      %v3925 = vpop.f32.mrb[0].mxu0
      %v3926 = vpop.f32.mrb[0].mxu0
      %v3927 = vadd.f32 0.0, %v3926
      %v3928 = vpop.f32.mrb[0].mxu0
      %3929 = vmatprep.mubr.bf16.mxu0 0
      %3930 = vmatmul.mubr.bf16.gmra.mrb[0].mxu0 %v3832
      %v3931 = vpop.f32.mrb[0].mxu0
      %v3932 = vadd.f32 0.0, %v3931
      %v3933 = vpop.f32.mrb[0].mxu0
      %v3934 = vpop.f32.mrb[0].mxu0
      %v3935 = vadd.f32 0.0, %v3934
      %v3936 = vpop.f32.mrb[0].mxu0
      %3937 = vmatprep.mubr.bf16.mxu0 0
      %3938 = vmatmul.mubr.bf16.gmra.mrb[0].mxu0 %v3835
      %v3939 = vpop.f32.mrb[0].mxu0
      %v3940 = vadd.f32 0.0, %v3939
      %v3941 = vpop.f32.mrb[0].mxu0
      %v3942 = vpop.f32.mrb[0].mxu0
      %v3943 = vadd.f32 0.0, %v3942
      %v3944 = vpop.f32.mrb[0].mxu0
      %3945 = vmatprep.mubr.bf16.mxu0 0
      %3946 = vmatmul.mubr.bf16.gmra.mrb[0].mxu0 %v3838
      %v3947 = vpop.f32.mrb[0].mxu0
      %v3948 = vadd.f32 0.0, %v3947
      %v3949 = vpop.f32.mrb[0].mxu0
      %v3950 = vpop.f32.mrb[0].mxu0
      %v3951 = vadd.f32 0.0, %v3950
      %v3952 = vpop.f32.mrb[0].mxu0
      %3953 = vmatprep.mubr.bf16.mxu0 0
      %3954 = vmatmul.mubr.bf16.gmra.mrb[0].mxu0 %v3841
      %v3955 = vpop.f32.mrb[0].mxu0
      %v3956 = vadd.f32 0.0, %v3955
      %v3957 = vpop.f32.mrb[0].mxu0
      %v3958 = vpop.f32.mrb[0].mxu0
      %v3959 = vadd.f32 0.0, %v3958
      %v3960 = vpop.f32.mrb[0].mxu0
      %3961 = vmatprep.mubr.bf16.mxu0 0
      %3962 = vmatmul.mubr.bf16.gmra.mrb[0].mxu0 %v3844
      %v3963 = vpop.f32.mrb[0].mxu0
      %v3964 = vadd.f32 0.0, %v3963
      %v3965 = vpop.f32.mrb[0].mxu0
      %v3966 = vpop.f32.mrb[0].mxu0
      %v3967 = vadd.f32 0.0, %v3966
      %v3968 = vpop.f32.mrb[0].mxu0
      %3969 = vmatprep.mubr.bf16.mxu0 0
      %3970 = vmatmul.mubr.bf16.gmra.mrb[0].mxu0 %v3847
      %v3971 = vpop.f32.mrb[0].mxu0
      %v3972 = vadd.f32 0.0, %v3971
      %v3973 = vpop.f32.mrb[0].mxu0
      %v3974 = vpop.f32.mrb[0].mxu0
      %v3975 = vadd.f32 0.0, %v3974
      %v3976 = vpop.f32.mrb[0].mxu0
      %3977 = vmatprep.mubr.bf16.mxu0 0
      %3978 = vmatmul.mubr.bf16.gmra.mrb[0].mxu0 %v3850
      %v3979 = vpop.f32.mrb[0].mxu0
      %v3980 = vadd.f32 0.0, %v3979
      %v3981 = vpop.f32.mrb[0].mxu0
      %v3982 = vpop.f32.mrb[0].mxu0
      %v3983 = vadd.f32 0.0, %v3982
      %v3984 = vpop.f32.mrb[0].mxu0
      %3985 = vmatprep.mubr.bf16.mxu0 0
      %3986 = vmatmul.mubr.bf16.gmra.mrb[0].mxu0 %v3853
      %v3987 = vpop.f32.mrb[0].mxu0
      %v3988 = vadd.f32 0.0, %v3987
      %v3989 = vpop.f32.mrb[0].mxu0
      %v3990 = vpop.f32.mrb[0].mxu0
      %v3991 = vadd.f32 0.0, %v3990
      %v3992 = vpop.f32.mrb[0].mxu0
      %3993 = vmatprep.mubr.bf16.mxu0 0
      %3994 = vmatmul.mubr.bf16.gmra.mrb[0].mxu0 %v3856
      %v3995 = vpop.f32.mrb[0].mxu0
      %v3996 = vadd.f32 0.0, %v3995
      %v3997 = vpop.f32.mrb[0].mxu0
      %v3998 = vpop.f32.mrb[0].mxu0
      %v3999 = vadd.f32 0.0, %v3998
      %v4000 = vpop.f32.mrb[0].mxu0
      %4001 = vmatprep.mubr.bf16.mxu0 0
      %4002 = vmatmul.mubr.bf16.gmra.mrb[0].mxu0 %v3859
      %v4003 = vpop.f32.mrb[0].mxu0
      %v4004 = vadd.f32 0.0, %v4003
      %v4005 = vpop.f32.mrb[0].mxu0
      %v4006 = vpop.f32.mrb[0].mxu0
      %v4007 = vadd.f32 0.0, %v4006
      %v4008 = vpop.f32.mrb[0].mxu0
      %4009 = vmatprep.mubr.bf16.mxu0 0
      %4010 = vmatmul.mubr.bf16.gmra.mrb[0].mxu0 %v3862
      %v4011 = vpop.f32.mrb[0].mxu0
      %v4012 = vadd.f32 0.0, %v4011
      %v4013 = vpop.f32.mrb[0].mxu0
      %v4014 = vpop.f32.mrb[0].mxu0
      %v4015 = vadd.f32 0.0, %v4014
      %v4016 = vpop.f32.mrb[0].mxu0
      %4017 = vmatprep.mubr.bf16.mxu0 0
      %4018 = vmatmul.mubr.bf16.gmra.mrb[0].mxu0 %v3865
      %v4019 = vpop.f32.mrb[0].mxu0
      %v4020 = vadd.f32 0.0, %v4019
      %v4021 = vpop.f32.mrb[0].mxu0
      %v4022 = vpop.f32.mrb[0].mxu0
      %v4023 = vadd.f32 0.0, %v4022
      %v4024 = vpop.f32.mrb[0].mxu0
      %4025 = vmatprep.mubr.bf16.mxu0 0
      %4026 = vmatmul.mubr.bf16.gmra.mrb[0].mxu0 %v3868
      %v4027 = vpop.f32.mrb[0].mxu0
      %v4028 = vadd.f32 0.0, %v4027
      %v4029 = vpop.f32.mrb[0].mxu0
      %v4030 = vpop.f32.mrb[0].mxu0
      %v4031 = vadd.f32 0.0, %v4030
      %v4032 = vpop.f32.mrb[0].mxu0
      %4033 = vdwg.mxu0
      %v4034 = vadd.f32 %v3646, %v3908
      %v4035 = vadd.f32 %v3649, %v3911
      %v4036 = vadd.f32 %v3654, %v3916
      %v4037 = vadd.f32 %v3657, %v3919
      %v4038 = vadd.f32 %v3662, %v3924
      %v4039 = vadd.f32 %v3665, %v3927
      %v4040 = vadd.f32 %v3670, %v3932
      %v4041 = vadd.f32 %v3673, %v3935
      %v4042 = vadd.f32 %v3678, %v3940
      %v4043 = vadd.f32 %v3681, %v3943
      %v4044 = vadd.f32 %v3686, %v3948
      %v4045 = vadd.f32 %v3689, %v3951
      %v4046 = vadd.f32 %v3694, %v3956
      %v4047 = vadd.f32 %v3697, %v3959
      %v4048 = vadd.f32 %v3702, %v3964
      %v4049 = vadd.f32 %v3705, %v3967
      %v4050 = vadd.f32 %v3710, %v3972
      %v4051 = vadd.f32 %v3713, %v3975
      %v4052 = vadd.f32 %v3718, %v3980
      %v4053 = vadd.f32 %v3721, %v3983
      %v4054 = vadd.f32 %v3726, %v3988
      %v4055 = vadd.f32 %v3729, %v3991
      %v4056 = vadd.f32 %v3734, %v3996
      %v4057 = vadd.f32 %v3737, %v3999
      %v4058 = vadd.f32 %v3742, %v4004
      %v4059 = vadd.f32 %v3745, %v4007
      %v4060 = vadd.f32 %v3750, %v4012
      %v4061 = vadd.f32 %v3753, %v4015
      %v4062 = vadd.f32 %v3758, %v4020
      %v4063 = vadd.f32 %v3761, %v4023
      %v4064 = vadd.f32 %v3766, %v4028
      %v4065 = vadd.f32 %v3769, %v4031
      %v4066 = vld [vmem:[%s3215] sm:$0xff]
      %v4067 = vld [vmem:[%s3215 + $0x8] sm:$0xff]
      %v4068 = vld [vmem:[%s3215 + $0x18] sm:$0xff]
      %v4069 = vld [vmem:[%s3215 + $0x20] sm:$0xff]
      %v4070 = vld [vmem:[%s3215 + $0x30] sm:$0xff]
      %v4071 = vld [vmem:[%s3215 + $0x38] sm:$0xff]
      %v4072 = vld [vmem:[%s3215 + $0x48] sm:$0xff]
      %v4073 = vld [vmem:[%s3215 + $0x50] sm:$0xff]
      %v4074 = vld [vmem:[%s3215 + $0x60] sm:$0xff]
      %v4075 = vld [vmem:[%s3215 + $0x68] sm:$0xff]
      %v4076 = vld [vmem:[%s3215 + $0x78] sm:$0xff]
      %v4077 = vld [vmem:[%s3215 + $0x80] sm:$0xff]
      %v4078 = vld [vmem:[%s3215 + $0x90] sm:$0xff]
      %v4079 = vld [vmem:[%s3215 + $0x98] sm:$0xff]
      %v4080 = vld [vmem:[%s3215 + $0xa8] sm:$0xff]
      %v4081 = vld [vmem:[%s3215 + $0xb0] sm:$0xff]
      %v4082 = vld [vmem:[%s3215 + $0xc0] sm:$0xff]
      %v4083 = vld [vmem:[%s3215 + $0xc8] sm:$0xff]
      %v4084 = vld [vmem:[%s3215 + $0xd8] sm:$0xff]
      %v4085 = vld [vmem:[%s3215 + $0xe0] sm:$0xff]
      %v4086 = vld [vmem:[%s3215 + $0xf0] sm:$0xff]
      %v4087 = vld [vmem:[%s3215 + $0xf8] sm:$0xff]
      %v4088 = vld [vmem:[%s3215 + $0x108] sm:$0xff]
      %v4089 = vld [vmem:[%s3215 + $0x110] sm:$0xff]
      %v4090 = vld [vmem:[%s3215 + $0x120] sm:$0xff]
      %v4091 = vld [vmem:[%s3215 + $0x128] sm:$0xff]
      %v4092 = vld [vmem:[%s3215 + $0x138] sm:$0xff]
      %v4093 = vld [vmem:[%s3215 + $0x140] sm:$0xff]
      %v4094 = vld [vmem:[%s3215 + $0x150] sm:$0xff]
      %v4095 = vld [vmem:[%s3215 + $0x158] sm:$0xff]
      %v4096 = vld [vmem:[%s3215 + $0x168] sm:$0xff]
      %v4097 = vld [vmem:[%s3215 + $0x170] sm:$0xff]
      %v4098 = vpack.c.bf16 %v4067, %v4066
      %v4099 = vpack.c.bf16 %v4069, %v4068
      %v4100 = vpack.c.bf16 %v4071, %v4070
      %v4101 = vpack.c.bf16 %v4073, %v4072
      %v4102 = vpack.c.bf16 %v4075, %v4074
      %v4103 = vpack.c.bf16 %v4077, %v4076
      %v4104 = vpack.c.bf16 %v4079, %v4078
      %v4105 = vpack.c.bf16 %v4081, %v4080
      %v4106 = vpack.c.bf16 %v4083, %v4082
      %v4107 = vpack.c.bf16 %v4085, %v4084
      %v4108 = vpack.c.bf16 %v4087, %v4086
      %v4109 = vpack.c.bf16 %v4089, %v4088
      %v4110 = vpack.c.bf16 %v4091, %v4090
      %v4111 = vpack.c.bf16 %v4093, %v4092
      %v4112 = vpack.c.bf16 %v4095, %v4094
      %v4113 = vpack.c.bf16 %v4097, %v4096
      %s4114 = scalar_lea.vmem %s4, 12
      %v4115 = vld [vmem:[%s4114] sm:$0xf]
      %v4117 = vsel %vm3159, %v4098, 0
      %v4120 = vsel %vm3159, %v4099, 0
      %v4123 = vsel %vm3159, %v4100, 0
      %v4126 = vsel %vm3159, %v4101, 0
      %v4129 = vsel %vm3159, %v4102, 0
      %v4132 = vsel %vm3159, %v4103, 0
      %v4135 = vsel %vm3159, %v4104, 0
      %v4138 = vsel %vm3159, %v4105, 0
      %v4141 = vsel %vm3159, %v4106, 0
      %v4144 = vsel %vm3159, %v4107, 0
      %v4147 = vsel %vm3159, %v4108, 0
      %v4150 = vsel %vm3159, %v4109, 0
      %v4153 = vsel %vm3159, %v4110, 0
      %v4156 = vsel %vm3159, %v4111, 0
      %v4159 = vsel %vm3159, %v4112, 0
      %v4162 = vsel %vm3159, %v4113, 0
      %v4165 = vsel %vm3395, %v4115, 0
      %4167 = vmatprep.subr.bf16.mxu0 0
      %4168 = vmatpush1.bf16.msra.mxu0 %v4165
      %4169 = vmatprep.subr.bf16.mxu0 0
      %4170 = vmatpush1.bf16.msra.mxu0 0
      %4171 = vmatprep.subr.bf16.mxu0 0
      %4172 = vmatpush1.bf16.msra.mxu0 0
      %4173 = vmatprep.subr.bf16.mxu0 0
      %4174 = vmatpush1.bf16.msra.mxu0 0
      %4175 = vmatprep.subr.bf16.mxu0 0
      %4176 = vmatpush1.bf16.msra.mxu0 0
      %4177 = vmatprep.subr.bf16.mxu0 0
      %4178 = vmatpush1.bf16.msra.mxu0 0
      %4179 = vmatprep.subr.bf16.mxu0 0
      %4180 = vmatpush1.bf16.msra.mxu0 0
      %4181 = vmatprep.subr.bf16.mxu0 0
      %4182 = vmatpush1.bf16.msra.mxu0 0
      %4183 = vmatprep.subr.bf16.mxu0 0
      %4184 = vmatpush1.bf16.msra.mxu0 0
      %4185 = vmatprep.subr.bf16.mxu0 0
      %4186 = vmatpush1.bf16.msra.mxu0 0
      %4187 = vmatprep.subr.bf16.mxu0 0
      %4188 = vmatpush1.bf16.msra.mxu0 0
      %4189 = vmatprep.subr.bf16.mxu0 0
      %4190 = vmatpush1.bf16.msra.mxu0 0
      %4191 = vmatprep.subr.bf16.mxu0 0
      %4192 = vmatpush1.bf16.msra.mxu0 0
      %4193 = vmatprep.subr.bf16.mxu0 0
      %4194 = vmatpush1.bf16.msra.mxu0 0
      %4195 = vmatprep.subr.bf16.mxu0 0
      %4196 = vmatpush1.bf16.msra.mxu0 0
      %4197 = vmatprep.subr.bf16.mxu0 0
      %4198 = vmatpush1.bf16.msra.mxu0 0
      %4199 = vmatprep.mubr.bf16.mxu0 0
      %4200 = vmatmul.mubr.bf16.gmra.mrb[0].mxu0 %v4117
      %v4201 = vpop.f32.mrb[0].mxu0
      %v4202 = vadd.f32 0.0, %v4201
      %v4203 = vpop.f32.mrb[0].mxu0
      %v4204 = vpop.f32.mrb[0].mxu0
      %v4205 = vadd.f32 0.0, %v4204
      %v4206 = vpop.f32.mrb[0].mxu0
      %4207 = vmatprep.mubr.bf16.mxu0 0
      %4208 = vmatmul.mubr.bf16.gmra.mrb[0].mxu0 %v4120
      %v4209 = vpop.f32.mrb[0].mxu0
      %v4210 = vadd.f32 0.0, %v4209
      %v4211 = vpop.f32.mrb[0].mxu0
      %v4212 = vpop.f32.mrb[0].mxu0
      %v4213 = vadd.f32 0.0, %v4212
      %v4214 = vpop.f32.mrb[0].mxu0
      %4215 = vmatprep.mubr.bf16.mxu0 0
      %4216 = vmatmul.mubr.bf16.gmra.mrb[0].mxu0 %v4123
      %v4217 = vpop.f32.mrb[0].mxu0
      %v4218 = vadd.f32 0.0, %v4217
      %v4219 = vpop.f32.mrb[0].mxu0
      %v4220 = vpop.f32.mrb[0].mxu0
      %v4221 = vadd.f32 0.0, %v4220
      %v4222 = vpop.f32.mrb[0].mxu0
      %4223 = vmatprep.mubr.bf16.mxu0 0
      %4224 = vmatmul.mubr.bf16.gmra.mrb[0].mxu0 %v4126
      %v4225 = vpop.f32.mrb[0].mxu0
      %v4226 = vadd.f32 0.0, %v4225
      %v4227 = vpop.f32.mrb[0].mxu0
      %v4228 = vpop.f32.mrb[0].mxu0
      %v4229 = vadd.f32 0.0, %v4228
      %v4230 = vpop.f32.mrb[0].mxu0
      %4231 = vmatprep.mubr.bf16.mxu0 0
      %4232 = vmatmul.mubr.bf16.gmra.mrb[0].mxu0 %v4129
      %v4233 = vpop.f32.mrb[0].mxu0
      %v4234 = vadd.f32 0.0, %v4233
      %v4235 = vpop.f32.mrb[0].mxu0
      %v4236 = vpop.f32.mrb[0].mxu0
      %v4237 = vadd.f32 0.0, %v4236
      %v4238 = vpop.f32.mrb[0].mxu0
      %4239 = vmatprep.mubr.bf16.mxu0 0
      %4240 = vmatmul.mubr.bf16.gmra.mrb[0].mxu0 %v4132
      %v4241 = vpop.f32.mrb[0].mxu0
      %v4242 = vadd.f32 0.0, %v4241
      %v4243 = vpop.f32.mrb[0].mxu0
      %v4244 = vpop.f32.mrb[0].mxu0
      %v4245 = vadd.f32 0.0, %v4244
      %v4246 = vpop.f32.mrb[0].mxu0
      %4247 = vmatprep.mubr.bf16.mxu0 0
      %4248 = vmatmul.mubr.bf16.gmra.mrb[0].mxu0 %v4135
      %v4249 = vpop.f32.mrb[0].mxu0
      %v4250 = vadd.f32 0.0, %v4249
      %v4251 = vpop.f32.mrb[0].mxu0
      %v4252 = vpop.f32.mrb[0].mxu0
      %v4253 = vadd.f32 0.0, %v4252
      %v4254 = vpop.f32.mrb[0].mxu0
      %4255 = vmatprep.mubr.bf16.mxu0 0
      %4256 = vmatmul.mubr.bf16.gmra.mrb[0].mxu0 %v4138
      %v4257 = vpop.f32.mrb[0].mxu0
      %v4258 = vadd.f32 0.0, %v4257
      %v4259 = vpop.f32.mrb[0].mxu0
      %v4260 = vpop.f32.mrb[0].mxu0
      %v4261 = vadd.f32 0.0, %v4260
      %v4262 = vpop.f32.mrb[0].mxu0
      %4263 = vmatprep.mubr.bf16.mxu0 0
      %4264 = vmatmul.mubr.bf16.gmra.mrb[0].mxu0 %v4141
      %v4265 = vpop.f32.mrb[0].mxu0
      %v4266 = vadd.f32 0.0, %v4265
      %v4267 = vpop.f32.mrb[0].mxu0
      %v4268 = vpop.f32.mrb[0].mxu0
      %v4269 = vadd.f32 0.0, %v4268
      %v4270 = vpop.f32.mrb[0].mxu0
      %4271 = vmatprep.mubr.bf16.mxu0 0
      %4272 = vmatmul.mubr.bf16.gmra.mrb[0].mxu0 %v4144
      %v4273 = vpop.f32.mrb[0].mxu0
      %v4274 = vadd.f32 0.0, %v4273
      %v4275 = vpop.f32.mrb[0].mxu0
      %v4276 = vpop.f32.mrb[0].mxu0
      %v4277 = vadd.f32 0.0, %v4276
      %v4278 = vpop.f32.mrb[0].mxu0
      %4279 = vmatprep.mubr.bf16.mxu0 0
      %4280 = vmatmul.mubr.bf16.gmra.mrb[0].mxu0 %v4147
      %v4281 = vpop.f32.mrb[0].mxu0
      %v4282 = vadd.f32 0.0, %v4281
      %v4283 = vpop.f32.mrb[0].mxu0
      %v4284 = vpop.f32.mrb[0].mxu0
      %v4285 = vadd.f32 0.0, %v4284
      %v4286 = vpop.f32.mrb[0].mxu0
      %4287 = vmatprep.mubr.bf16.mxu0 0
      %4288 = vmatmul.mubr.bf16.gmra.mrb[0].mxu0 %v4150
      %v4289 = vpop.f32.mrb[0].mxu0
      %v4290 = vadd.f32 0.0, %v4289
      %v4291 = vpop.f32.mrb[0].mxu0
      %v4292 = vpop.f32.mrb[0].mxu0
      %v4293 = vadd.f32 0.0, %v4292
      %v4294 = vpop.f32.mrb[0].mxu0
      %4295 = vmatprep.mubr.bf16.mxu0 0
      %4296 = vmatmul.mubr.bf16.gmra.mrb[0].mxu0 %v4153
      %v4297 = vpop.f32.mrb[0].mxu0
      %v4298 = vadd.f32 0.0, %v4297
      %v4299 = vpop.f32.mrb[0].mxu0
      %v4300 = vpop.f32.mrb[0].mxu0
      %v4301 = vadd.f32 0.0, %v4300
      %v4302 = vpop.f32.mrb[0].mxu0
      %4303 = vmatprep.mubr.bf16.mxu0 0
      %4304 = vmatmul.mubr.bf16.gmra.mrb[0].mxu0 %v4156
      %v4305 = vpop.f32.mrb[0].mxu0
      %v4306 = vadd.f32 0.0, %v4305
      %v4307 = vpop.f32.mrb[0].mxu0
      %v4308 = vpop.f32.mrb[0].mxu0
      %v4309 = vadd.f32 0.0, %v4308
      %v4310 = vpop.f32.mrb[0].mxu0
      %4311 = vmatprep.mubr.bf16.mxu0 0
      %4312 = vmatmul.mubr.bf16.gmra.mrb[0].mxu0 %v4159
      %v4313 = vpop.f32.mrb[0].mxu0
      %v4314 = vadd.f32 0.0, %v4313
      %v4315 = vpop.f32.mrb[0].mxu0
      %v4316 = vpop.f32.mrb[0].mxu0
      %v4317 = vadd.f32 0.0, %v4316
      %v4318 = vpop.f32.mrb[0].mxu0
      %4319 = vmatprep.mubr.bf16.mxu0 0
      %4320 = vmatmul.mubr.bf16.gmra.mrb[0].mxu0 %v4162
      %v4321 = vpop.f32.mrb[0].mxu0
      %v4322 = vadd.f32 0.0, %v4321
      %v4323 = vpop.f32.mrb[0].mxu0
      %v4324 = vpop.f32.mrb[0].mxu0
      %v4325 = vadd.f32 0.0, %v4324
      %v4326 = vpop.f32.mrb[0].mxu0
      %4327 = vdwg.mxu0
      %v4328 = vadd.f32 %v4034, %v4202
      %v4329 = vadd.f32 %v4035, %v4205
      %v4330 = vadd.f32 %v4036, %v4210
      %v4331 = vadd.f32 %v4037, %v4213
      %v4332 = vadd.f32 %v4038, %v4218
      %v4333 = vadd.f32 %v4039, %v4221
      %v4334 = vadd.f32 %v4040, %v4226
      %v4335 = vadd.f32 %v4041, %v4229
      %v4336 = vadd.f32 %v4042, %v4234
      %v4337 = vadd.f32 %v4043, %v4237
      %v4338 = vadd.f32 %v4044, %v4242
      %v4339 = vadd.f32 %v4045, %v4245
      %v4340 = vadd.f32 %v4046, %v4250
      %v4341 = vadd.f32 %v4047, %v4253
      %v4342 = vadd.f32 %v4048, %v4258
      %v4343 = vadd.f32 %v4049, %v4261
      %v4344 = vadd.f32 %v4050, %v4266
      %v4345 = vadd.f32 %v4051, %v4269
      %v4346 = vadd.f32 %v4052, %v4274
      %v4347 = vadd.f32 %v4053, %v4277
      %v4348 = vadd.f32 %v4054, %v4282
      %v4349 = vadd.f32 %v4055, %v4285
      %v4350 = vadd.f32 %v4056, %v4290
      %v4351 = vadd.f32 %v4057, %v4293
      %v4352 = vadd.f32 %v4058, %v4298
      %v4353 = vadd.f32 %v4059, %v4301
      %v4354 = vadd.f32 %v4060, %v4306
      %v4355 = vadd.f32 %v4061, %v4309
      %v4356 = vadd.f32 %v4062, %v4314
      %v4357 = vadd.f32 %v4063, %v4317
      %v4358 = vadd.f32 %v4064, %v4322
      %v4359 = vadd.f32 %v4065, %v4325
      %v4360 = vld [vmem:[%s3215 + $0x1] sm:$0xff]
      %v4361 = vld [vmem:[%s3215 + $0x9] sm:$0xff]
      %v4362 = vld [vmem:[%s3215 + $0x19] sm:$0xff]
      %v4363 = vld [vmem:[%s3215 + $0x21] sm:$0xff]
      %v4364 = vld [vmem:[%s3215 + $0x31] sm:$0xff]
      %v4365 = vld [vmem:[%s3215 + $0x39] sm:$0xff]
      %v4366 = vld [vmem:[%s3215 + $0x49] sm:$0xff]
      %v4367 = vld [vmem:[%s3215 + $0x51] sm:$0xff]
      %v4368 = vld [vmem:[%s3215 + $0x61] sm:$0xff]
      %v4369 = vld [vmem:[%s3215 + $0x69] sm:$0xff]
      %v4370 = vld [vmem:[%s3215 + $0x79] sm:$0xff]
      %v4371 = vld [vmem:[%s3215 + $0x81] sm:$0xff]
      %v4372 = vld [vmem:[%s3215 + $0x91] sm:$0xff]
      %v4373 = vld [vmem:[%s3215 + $0x99] sm:$0xff]
      %v4374 = vld [vmem:[%s3215 + $0xa9] sm:$0xff]
      %v4375 = vld [vmem:[%s3215 + $0xb1] sm:$0xff]
      %v4376 = vld [vmem:[%s3215 + $0xc1] sm:$0xff]
      %v4377 = vld [vmem:[%s3215 + $0xc9] sm:$0xff]
      %v4378 = vld [vmem:[%s3215 + $0xd9] sm:$0xff]
      %v4379 = vld [vmem:[%s3215 + $0xe1] sm:$0xff]
      %v4380 = vld [vmem:[%s3215 + $0xf1] sm:$0xff]
      %v4381 = vld [vmem:[%s3215 + $0xf9] sm:$0xff]
      %v4382 = vld [vmem:[%s3215 + $0x109] sm:$0xff]
      %v4383 = vld [vmem:[%s3215 + $0x111] sm:$0xff]
      %v4384 = vld [vmem:[%s3215 + $0x121] sm:$0xff]
      %v4385 = vld [vmem:[%s3215 + $0x129] sm:$0xff]
      %v4386 = vld [vmem:[%s3215 + $0x139] sm:$0xff]
      %v4387 = vld [vmem:[%s3215 + $0x141] sm:$0xff]
      %v4388 = vld [vmem:[%s3215 + $0x151] sm:$0xff]
      %v4389 = vld [vmem:[%s3215 + $0x159] sm:$0xff]
      %v4390 = vld [vmem:[%s3215 + $0x169] sm:$0xff]
      %v4391 = vld [vmem:[%s3215 + $0x171] sm:$0xff]
      %v4392 = vpack.c.bf16 %v4361, %v4360
      %v4393 = vpack.c.bf16 %v4363, %v4362
      %v4394 = vpack.c.bf16 %v4365, %v4364
      %v4395 = vpack.c.bf16 %v4367, %v4366
      %v4396 = vpack.c.bf16 %v4369, %v4368
      %v4397 = vpack.c.bf16 %v4371, %v4370
      %v4398 = vpack.c.bf16 %v4373, %v4372
      %v4399 = vpack.c.bf16 %v4375, %v4374
      %v4400 = vpack.c.bf16 %v4377, %v4376
      %v4401 = vpack.c.bf16 %v4379, %v4378
      %v4402 = vpack.c.bf16 %v4381, %v4380
      %v4403 = vpack.c.bf16 %v4383, %v4382
      %v4404 = vpack.c.bf16 %v4385, %v4384
      %v4405 = vpack.c.bf16 %v4387, %v4386
      %v4406 = vpack.c.bf16 %v4389, %v4388
      %v4407 = vpack.c.bf16 %v4391, %v4390
      %s4408 = scalar_lea.vmem %s4, 16
      %v4409 = vld [vmem:[%s4408] sm:$0xf]
      %v4411 = vsel %vm3159, %v4392, 0
      %v4414 = vsel %vm3159, %v4393, 0
      %v4417 = vsel %vm3159, %v4394, 0
      %v4420 = vsel %vm3159, %v4395, 0
      %v4423 = vsel %vm3159, %v4396, 0
      %v4426 = vsel %vm3159, %v4397, 0
      %v4429 = vsel %vm3159, %v4398, 0
      %v4432 = vsel %vm3159, %v4399, 0
      %v4435 = vsel %vm3159, %v4400, 0
      %v4438 = vsel %vm3159, %v4401, 0
      %v4441 = vsel %vm3159, %v4402, 0
      %v4444 = vsel %vm3159, %v4403, 0
      %v4447 = vsel %vm3159, %v4404, 0
      %v4450 = vsel %vm3159, %v4405, 0
      %v4453 = vsel %vm3159, %v4406, 0
      %v4456 = vsel %vm3159, %v4407, 0
      %v4459 = vsel %vm3395, %v4409, 0
      %4461 = vmatprep.subr.bf16.mxu0 0
      %4462 = vmatpush1.bf16.msra.mxu0 %v4459
      %4463 = vmatprep.subr.bf16.mxu0 0
      %4464 = vmatpush1.bf16.msra.mxu0 0
      %4465 = vmatprep.subr.bf16.mxu0 0
      %4466 = vmatpush1.bf16.msra.mxu0 0
      %4467 = vmatprep.subr.bf16.mxu0 0
      %4468 = vmatpush1.bf16.msra.mxu0 0
      %4469 = vmatprep.subr.bf16.mxu0 0
      %4470 = vmatpush1.bf16.msra.mxu0 0
      %4471 = vmatprep.subr.bf16.mxu0 0
      %4472 = vmatpush1.bf16.msra.mxu0 0
      %4473 = vmatprep.subr.bf16.mxu0 0
      %4474 = vmatpush1.bf16.msra.mxu0 0
      %4475 = vmatprep.subr.bf16.mxu0 0
      %4476 = vmatpush1.bf16.msra.mxu0 0
      %4477 = vmatprep.subr.bf16.mxu0 0
      %4478 = vmatpush1.bf16.msra.mxu0 0
      %4479 = vmatprep.subr.bf16.mxu0 0
      %4480 = vmatpush1.bf16.msra.mxu0 0
      %4481 = vmatprep.subr.bf16.mxu0 0
      %4482 = vmatpush1.bf16.msra.mxu0 0
      %4483 = vmatprep.subr.bf16.mxu0 0
      %4484 = vmatpush1.bf16.msra.mxu0 0
      %4485 = vmatprep.subr.bf16.mxu0 0
      %4486 = vmatpush1.bf16.msra.mxu0 0
      %4487 = vmatprep.subr.bf16.mxu0 0
      %4488 = vmatpush1.bf16.msra.mxu0 0
      %4489 = vmatprep.subr.bf16.mxu0 0
      %4490 = vmatpush1.bf16.msra.mxu0 0
      %4491 = vmatprep.subr.bf16.mxu0 0
      %4492 = vmatpush1.bf16.msra.mxu0 0
      %4493 = vmatprep.mubr.bf16.mxu0 0
      %4494 = vmatmul.mubr.bf16.gmra.mrb[0].mxu0 %v4411
      %v4495 = vpop.f32.mrb[0].mxu0
      %v4496 = vadd.f32 0.0, %v4495
      %v4497 = vpop.f32.mrb[0].mxu0
      %v4498 = vpop.f32.mrb[0].mxu0
      %v4499 = vadd.f32 0.0, %v4498
      %v4500 = vpop.f32.mrb[0].mxu0
      %4501 = vmatprep.mubr.bf16.mxu0 0
      %4502 = vmatmul.mubr.bf16.gmra.mrb[0].mxu0 %v4414
      %v4503 = vpop.f32.mrb[0].mxu0
      %v4504 = vadd.f32 0.0, %v4503
      %v4505 = vpop.f32.mrb[0].mxu0
      %v4506 = vpop.f32.mrb[0].mxu0
      %v4507 = vadd.f32 0.0, %v4506
      %v4508 = vpop.f32.mrb[0].mxu0
      %4509 = vmatprep.mubr.bf16.mxu0 0
      %4510 = vmatmul.mubr.bf16.gmra.mrb[0].mxu0 %v4417
      %v4511 = vpop.f32.mrb[0].mxu0
      %v4512 = vadd.f32 0.0, %v4511
      %v4513 = vpop.f32.mrb[0].mxu0
      %v4514 = vpop.f32.mrb[0].mxu0
      %v4515 = vadd.f32 0.0, %v4514
      %v4516 = vpop.f32.mrb[0].mxu0
      %4517 = vmatprep.mubr.bf16.mxu0 0
      %4518 = vmatmul.mubr.bf16.gmra.mrb[0].mxu0 %v4420
      %v4519 = vpop.f32.mrb[0].mxu0
      %v4520 = vadd.f32 0.0, %v4519
      %v4521 = vpop.f32.mrb[0].mxu0
      %v4522 = vpop.f32.mrb[0].mxu0
      %v4523 = vadd.f32 0.0, %v4522
      %v4524 = vpop.f32.mrb[0].mxu0
      %4525 = vmatprep.mubr.bf16.mxu0 0
      %4526 = vmatmul.mubr.bf16.gmra.mrb[0].mxu0 %v4423
      %v4527 = vpop.f32.mrb[0].mxu0
      %v4528 = vadd.f32 0.0, %v4527
      %v4529 = vpop.f32.mrb[0].mxu0
      %v4530 = vpop.f32.mrb[0].mxu0
      %v4531 = vadd.f32 0.0, %v4530
      %v4532 = vpop.f32.mrb[0].mxu0
      %4533 = vmatprep.mubr.bf16.mxu0 0
      %4534 = vmatmul.mubr.bf16.gmra.mrb[0].mxu0 %v4426
      %v4535 = vpop.f32.mrb[0].mxu0
      %v4536 = vadd.f32 0.0, %v4535
      %v4537 = vpop.f32.mrb[0].mxu0
      %v4538 = vpop.f32.mrb[0].mxu0
      %v4539 = vadd.f32 0.0, %v4538
      %v4540 = vpop.f32.mrb[0].mxu0
      %4541 = vmatprep.mubr.bf16.mxu0 0
      %4542 = vmatmul.mubr.bf16.gmra.mrb[0].mxu0 %v4429
      %v4543 = vpop.f32.mrb[0].mxu0
      %v4544 = vadd.f32 0.0, %v4543
      %v4545 = vpop.f32.mrb[0].mxu0
      %v4546 = vpop.f32.mrb[0].mxu0
      %v4547 = vadd.f32 0.0, %v4546
      %v4548 = vpop.f32.mrb[0].mxu0
      %4549 = vmatprep.mubr.bf16.mxu0 0
      %4550 = vmatmul.mubr.bf16.gmra.mrb[0].mxu0 %v4432
      %v4551 = vpop.f32.mrb[0].mxu0
      %v4552 = vadd.f32 0.0, %v4551
      %v4553 = vpop.f32.mrb[0].mxu0
      %v4554 = vpop.f32.mrb[0].mxu0
      %v4555 = vadd.f32 0.0, %v4554
      %v4556 = vpop.f32.mrb[0].mxu0
      %4557 = vmatprep.mubr.bf16.mxu0 0
      %4558 = vmatmul.mubr.bf16.gmra.mrb[0].mxu0 %v4435
      %v4559 = vpop.f32.mrb[0].mxu0
      %v4560 = vadd.f32 0.0, %v4559
      %v4561 = vpop.f32.mrb[0].mxu0
      %v4562 = vpop.f32.mrb[0].mxu0
      %v4563 = vadd.f32 0.0, %v4562
      %v4564 = vpop.f32.mrb[0].mxu0
      %4565 = vmatprep.mubr.bf16.mxu0 0
      %4566 = vmatmul.mubr.bf16.gmra.mrb[0].mxu0 %v4438
      %v4567 = vpop.f32.mrb[0].mxu0
      %v4568 = vadd.f32 0.0, %v4567
      %v4569 = vpop.f32.mrb[0].mxu0
      %v4570 = vpop.f32.mrb[0].mxu0
      %v4571 = vadd.f32 0.0, %v4570
      %v4572 = vpop.f32.mrb[0].mxu0
      %4573 = vmatprep.mubr.bf16.mxu0 0
      %4574 = vmatmul.mubr.bf16.gmra.mrb[0].mxu0 %v4441
      %v4575 = vpop.f32.mrb[0].mxu0
      %v4576 = vadd.f32 0.0, %v4575
      %v4577 = vpop.f32.mrb[0].mxu0
      %v4578 = vpop.f32.mrb[0].mxu0
      %v4579 = vadd.f32 0.0, %v4578
      %v4580 = vpop.f32.mrb[0].mxu0
      %4581 = vmatprep.mubr.bf16.mxu0 0
      %4582 = vmatmul.mubr.bf16.gmra.mrb[0].mxu0 %v4444
      %v4583 = vpop.f32.mrb[0].mxu0
      %v4584 = vadd.f32 0.0, %v4583
      %v4585 = vpop.f32.mrb[0].mxu0
      %v4586 = vpop.f32.mrb[0].mxu0
      %v4587 = vadd.f32 0.0, %v4586
      %v4588 = vpop.f32.mrb[0].mxu0
      %4589 = vmatprep.mubr.bf16.mxu0 0
      %4590 = vmatmul.mubr.bf16.gmra.mrb[0].mxu0 %v4447
      %v4591 = vpop.f32.mrb[0].mxu0
      %v4592 = vadd.f32 0.0, %v4591
      %v4593 = vpop.f32.mrb[0].mxu0
      %v4594 = vpop.f32.mrb[0].mxu0
      %v4595 = vadd.f32 0.0, %v4594
      %v4596 = vpop.f32.mrb[0].mxu0
      %4597 = vmatprep.mubr.bf16.mxu0 0
      %4598 = vmatmul.mubr.bf16.gmra.mrb[0].mxu0 %v4450
      %v4599 = vpop.f32.mrb[0].mxu0
      %v4600 = vadd.f32 0.0, %v4599
      %v4601 = vpop.f32.mrb[0].mxu0
      %v4602 = vpop.f32.mrb[0].mxu0
      %v4603 = vadd.f32 0.0, %v4602
      %v4604 = vpop.f32.mrb[0].mxu0
      %4605 = vmatprep.mubr.bf16.mxu0 0
      %4606 = vmatmul.mubr.bf16.gmra.mrb[0].mxu0 %v4453
      %v4607 = vpop.f32.mrb[0].mxu0
      %v4608 = vadd.f32 0.0, %v4607
      %v4609 = vpop.f32.mrb[0].mxu0
      %v4610 = vpop.f32.mrb[0].mxu0
      %v4611 = vadd.f32 0.0, %v4610
      %v4612 = vpop.f32.mrb[0].mxu0
      %4613 = vmatprep.mubr.bf16.mxu0 0
      %4614 = vmatmul.mubr.bf16.gmra.mrb[0].mxu0 %v4456
      %v4615 = vpop.f32.mrb[0].mxu0
      %v4616 = vadd.f32 0.0, %v4615
      %v4617 = vpop.f32.mrb[0].mxu0
      %v4618 = vpop.f32.mrb[0].mxu0
      %v4619 = vadd.f32 0.0, %v4618
      %v4620 = vpop.f32.mrb[0].mxu0
      %4621 = vdwg.mxu0
      %v4622 = vadd.f32 %v4328, %v4496
      %v4623 = vadd.f32 %v4329, %v4499
      %v4624 = vadd.f32 %v4330, %v4504
      %v4625 = vadd.f32 %v4331, %v4507
      %v4626 = vadd.f32 %v4332, %v4512
      %v4627 = vadd.f32 %v4333, %v4515
      %v4628 = vadd.f32 %v4334, %v4520
      %v4629 = vadd.f32 %v4335, %v4523
      %v4630 = vadd.f32 %v4336, %v4528
      %v4631 = vadd.f32 %v4337, %v4531
      %v4632 = vadd.f32 %v4338, %v4536
      %v4633 = vadd.f32 %v4339, %v4539
      %v4634 = vadd.f32 %v4340, %v4544
      %v4635 = vadd.f32 %v4341, %v4547
      %v4636 = vadd.f32 %v4342, %v4552
      %v4637 = vadd.f32 %v4343, %v4555
      %v4638 = vadd.f32 %v4344, %v4560
      %v4639 = vadd.f32 %v4345, %v4563
      %v4640 = vadd.f32 %v4346, %v4568
      %v4641 = vadd.f32 %v4347, %v4571
      %v4642 = vadd.f32 %v4348, %v4576
      %v4643 = vadd.f32 %v4349, %v4579
      %v4644 = vadd.f32 %v4350, %v4584
      %v4645 = vadd.f32 %v4351, %v4587
      %v4646 = vadd.f32 %v4352, %v4592
      %v4647 = vadd.f32 %v4353, %v4595
      %v4648 = vadd.f32 %v4354, %v4600
      %v4649 = vadd.f32 %v4355, %v4603
      %v4650 = vadd.f32 %v4356, %v4608
      %v4651 = vadd.f32 %v4357, %v4611
      %v4652 = vadd.f32 %v4358, %v4616
      %v4653 = vadd.f32 %v4359, %v4619
      %v4654 = vld [vmem:[%s3215 + $0x2] sm:$0xff]
      %v4655 = vld [vmem:[%s3215 + $0xa] sm:$0xff]
      %v4656 = vld [vmem:[%s3215 + $0x1a] sm:$0xff]
      %v4657 = vld [vmem:[%s3215 + $0x22] sm:$0xff]
      %v4658 = vld [vmem:[%s3215 + $0x32] sm:$0xff]
      %v4659 = vld [vmem:[%s3215 + $0x3a] sm:$0xff]
      %v4660 = vld [vmem:[%s3215 + $0x4a] sm:$0xff]
      %v4661 = vld [vmem:[%s3215 + $0x52] sm:$0xff]
      %v4662 = vld [vmem:[%s3215 + $0x62] sm:$0xff]
      %v4663 = vld [vmem:[%s3215 + $0x6a] sm:$0xff]
      %v4664 = vld [vmem:[%s3215 + $0x7a] sm:$0xff]
      %v4665 = vld [vmem:[%s3215 + $0x82] sm:$0xff]
      %v4666 = vld [vmem:[%s3215 + $0x92] sm:$0xff]
      %v4667 = vld [vmem:[%s3215 + $0x9a] sm:$0xff]
      %v4668 = vld [vmem:[%s3215 + $0xaa] sm:$0xff]
      %v4669 = vld [vmem:[%s3215 + $0xb2] sm:$0xff]
      %v4670 = vld [vmem:[%s3215 + $0xc2] sm:$0xff]
      %v4671 = vld [vmem:[%s3215 + $0xca] sm:$0xff]
      %v4672 = vld [vmem:[%s3215 + $0xda] sm:$0xff]
      %v4673 = vld [vmem:[%s3215 + $0xe2] sm:$0xff]
      %v4674 = vld [vmem:[%s3215 + $0xf2] sm:$0xff]
      %v4675 = vld [vmem:[%s3215 + $0xfa] sm:$0xff]
      %v4676 = vld [vmem:[%s3215 + $0x10a] sm:$0xff]
      %v4677 = vld [vmem:[%s3215 + $0x112] sm:$0xff]
      %v4678 = vld [vmem:[%s3215 + $0x122] sm:$0xff]
      %v4679 = vld [vmem:[%s3215 + $0x12a] sm:$0xff]
      %v4680 = vld [vmem:[%s3215 + $0x13a] sm:$0xff]
      %v4681 = vld [vmem:[%s3215 + $0x142] sm:$0xff]
      %v4682 = vld [vmem:[%s3215 + $0x152] sm:$0xff]
      %v4683 = vld [vmem:[%s3215 + $0x15a] sm:$0xff]
      %v4684 = vld [vmem:[%s3215 + $0x16a] sm:$0xff]
      %v4685 = vld [vmem:[%s3215 + $0x172] sm:$0xff]
      %v4686 = vpack.c.bf16 %v4655, %v4654
      %v4687 = vpack.c.bf16 %v4657, %v4656
      %v4688 = vpack.c.bf16 %v4659, %v4658
      %v4689 = vpack.c.bf16 %v4661, %v4660
      %v4690 = vpack.c.bf16 %v4663, %v4662
      %v4691 = vpack.c.bf16 %v4665, %v4664
      %v4692 = vpack.c.bf16 %v4667, %v4666
      %v4693 = vpack.c.bf16 %v4669, %v4668
      %v4694 = vpack.c.bf16 %v4671, %v4670
      %v4695 = vpack.c.bf16 %v4673, %v4672
      %v4696 = vpack.c.bf16 %v4675, %v4674
      %v4697 = vpack.c.bf16 %v4677, %v4676
      %v4698 = vpack.c.bf16 %v4679, %v4678
      %v4699 = vpack.c.bf16 %v4681, %v4680
      %v4700 = vpack.c.bf16 %v4683, %v4682
      %v4701 = vpack.c.bf16 %v4685, %v4684
      %s4702 = scalar_lea.vmem %s4, 20
      %v4703 = vld [vmem:[%s4702] sm:$0xf]
      %v4705 = vsel %vm3159, %v4686, 0
      %v4708 = vsel %vm3159, %v4687, 0
      %v4711 = vsel %vm3159, %v4688, 0
      %v4714 = vsel %vm3159, %v4689, 0
      %v4717 = vsel %vm3159, %v4690, 0
      %v4720 = vsel %vm3159, %v4691, 0
      %v4723 = vsel %vm3159, %v4692, 0
      %v4726 = vsel %vm3159, %v4693, 0
      %v4729 = vsel %vm3159, %v4694, 0
      %v4732 = vsel %vm3159, %v4695, 0
      %v4735 = vsel %vm3159, %v4696, 0
      %v4738 = vsel %vm3159, %v4697, 0
      %v4741 = vsel %vm3159, %v4698, 0
      %v4744 = vsel %vm3159, %v4699, 0
      %v4747 = vsel %vm3159, %v4700, 0
      %v4750 = vsel %vm3159, %v4701, 0
      %v4753 = vsel %vm3395, %v4703, 0
      %4755 = vmatprep.subr.bf16.mxu0 0
      %4756 = vmatpush1.bf16.msra.mxu0 %v4753
      %4757 = vmatprep.subr.bf16.mxu0 0
      %4758 = vmatpush1.bf16.msra.mxu0 0
      %4759 = vmatprep.subr.bf16.mxu0 0
      %4760 = vmatpush1.bf16.msra.mxu0 0
      %4761 = vmatprep.subr.bf16.mxu0 0
      %4762 = vmatpush1.bf16.msra.mxu0 0
      %4763 = vmatprep.subr.bf16.mxu0 0
      %4764 = vmatpush1.bf16.msra.mxu0 0
      %4765 = vmatprep.subr.bf16.mxu0 0
      %4766 = vmatpush1.bf16.msra.mxu0 0
      %4767 = vmatprep.subr.bf16.mxu0 0
      %4768 = vmatpush1.bf16.msra.mxu0 0
      %4769 = vmatprep.subr.bf16.mxu0 0
      %4770 = vmatpush1.bf16.msra.mxu0 0
      %4771 = vmatprep.subr.bf16.mxu0 0
      %4772 = vmatpush1.bf16.msra.mxu0 0
      %4773 = vmatprep.subr.bf16.mxu0 0
      %4774 = vmatpush1.bf16.msra.mxu0 0
      %4775 = vmatprep.subr.bf16.mxu0 0
      %4776 = vmatpush1.bf16.msra.mxu0 0
      %4777 = vmatprep.subr.bf16.mxu0 0
      %4778 = vmatpush1.bf16.msra.mxu0 0
      %4779 = vmatprep.subr.bf16.mxu0 0
      %4780 = vmatpush1.bf16.msra.mxu0 0
      %4781 = vmatprep.subr.bf16.mxu0 0
      %4782 = vmatpush1.bf16.msra.mxu0 0
      %4783 = vmatprep.subr.bf16.mxu0 0
      %4784 = vmatpush1.bf16.msra.mxu0 0
      %4785 = vmatprep.subr.bf16.mxu0 0
      %4786 = vmatpush1.bf16.msra.mxu0 0
      %4787 = vmatprep.mubr.bf16.mxu0 0
      %4788 = vmatmul.mubr.bf16.gmra.mrb[0].mxu0 %v4705
      %v4789 = vpop.f32.mrb[0].mxu0
      %v4790 = vadd.f32 0.0, %v4789
      %v4791 = vpop.f32.mrb[0].mxu0
      %v4792 = vpop.f32.mrb[0].mxu0
      %v4793 = vadd.f32 0.0, %v4792
      %v4794 = vpop.f32.mrb[0].mxu0
      %4795 = vmatprep.mubr.bf16.mxu0 0
      %4796 = vmatmul.mubr.bf16.gmra.mrb[0].mxu0 %v4708
      %v4797 = vpop.f32.mrb[0].mxu0
      %v4798 = vadd.f32 0.0, %v4797
      %v4799 = vpop.f32.mrb[0].mxu0
      %v4800 = vpop.f32.mrb[0].mxu0
      %v4801 = vadd.f32 0.0, %v4800
      %v4802 = vpop.f32.mrb[0].mxu0
      %4803 = vmatprep.mubr.bf16.mxu0 0
      %4804 = vmatmul.mubr.bf16.gmra.mrb[0].mxu0 %v4711
      %v4805 = vpop.f32.mrb[0].mxu0
      %v4806 = vadd.f32 0.0, %v4805
      %v4807 = vpop.f32.mrb[0].mxu0
      %v4808 = vpop.f32.mrb[0].mxu0
      %v4809 = vadd.f32 0.0, %v4808
      %v4810 = vpop.f32.mrb[0].mxu0
      %4811 = vmatprep.mubr.bf16.mxu0 0
      %4812 = vmatmul.mubr.bf16.gmra.mrb[0].mxu0 %v4714
      %v4813 = vpop.f32.mrb[0].mxu0
      %v4814 = vadd.f32 0.0, %v4813
      %v4815 = vpop.f32.mrb[0].mxu0
      %v4816 = vpop.f32.mrb[0].mxu0
      %v4817 = vadd.f32 0.0, %v4816
      %v4818 = vpop.f32.mrb[0].mxu0
      %4819 = vmatprep.mubr.bf16.mxu0 0
      %4820 = vmatmul.mubr.bf16.gmra.mrb[0].mxu0 %v4717
      %v4821 = vpop.f32.mrb[0].mxu0
      %v4822 = vadd.f32 0.0, %v4821
      %v4823 = vpop.f32.mrb[0].mxu0
      %v4824 = vpop.f32.mrb[0].mxu0
      %v4825 = vadd.f32 0.0, %v4824
      %v4826 = vpop.f32.mrb[0].mxu0
      %4827 = vmatprep.mubr.bf16.mxu0 0
      %4828 = vmatmul.mubr.bf16.gmra.mrb[0].mxu0 %v4720
      %v4829 = vpop.f32.mrb[0].mxu0
      %v4830 = vadd.f32 0.0, %v4829
      %v4831 = vpop.f32.mrb[0].mxu0
      %v4832 = vpop.f32.mrb[0].mxu0
      %v4833 = vadd.f32 0.0, %v4832
      %v4834 = vpop.f32.mrb[0].mxu0
      %4835 = vmatprep.mubr.bf16.mxu0 0
      %4836 = vmatmul.mubr.bf16.gmra.mrb[0].mxu0 %v4723
      %v4837 = vpop.f32.mrb[0].mxu0
      %v4838 = vadd.f32 0.0, %v4837
      %v4839 = vpop.f32.mrb[0].mxu0
      %v4840 = vpop.f32.mrb[0].mxu0
      %v4841 = vadd.f32 0.0, %v4840
      %v4842 = vpop.f32.mrb[0].mxu0
      %4843 = vmatprep.mubr.bf16.mxu0 0
      %4844 = vmatmul.mubr.bf16.gmra.mrb[0].mxu0 %v4726
      %v4845 = vpop.f32.mrb[0].mxu0
      %v4846 = vadd.f32 0.0, %v4845
      %v4847 = vpop.f32.mrb[0].mxu0
      %v4848 = vpop.f32.mrb[0].mxu0
      %v4849 = vadd.f32 0.0, %v4848
      %v4850 = vpop.f32.mrb[0].mxu0
      %4851 = vmatprep.mubr.bf16.mxu0 0
      %4852 = vmatmul.mubr.bf16.gmra.mrb[0].mxu0 %v4729
      %v4853 = vpop.f32.mrb[0].mxu0
      %v4854 = vadd.f32 0.0, %v4853
      %v4855 = vpop.f32.mrb[0].mxu0
      %v4856 = vpop.f32.mrb[0].mxu0
      %v4857 = vadd.f32 0.0, %v4856
      %v4858 = vpop.f32.mrb[0].mxu0
      %4859 = vmatprep.mubr.bf16.mxu0 0
      %4860 = vmatmul.mubr.bf16.gmra.mrb[0].mxu0 %v4732
      %v4861 = vpop.f32.mrb[0].mxu0
      %v4862 = vadd.f32 0.0, %v4861
      %v4863 = vpop.f32.mrb[0].mxu0
      %v4864 = vpop.f32.mrb[0].mxu0
      %v4865 = vadd.f32 0.0, %v4864
      %v4866 = vpop.f32.mrb[0].mxu0
      %4867 = vmatprep.mubr.bf16.mxu0 0
      %4868 = vmatmul.mubr.bf16.gmra.mrb[0].mxu0 %v4735
      %v4869 = vpop.f32.mrb[0].mxu0
      %v4870 = vadd.f32 0.0, %v4869
      %v4871 = vpop.f32.mrb[0].mxu0
      %v4872 = vpop.f32.mrb[0].mxu0
      %v4873 = vadd.f32 0.0, %v4872
      %v4874 = vpop.f32.mrb[0].mxu0
      %4875 = vmatprep.mubr.bf16.mxu0 0
      %4876 = vmatmul.mubr.bf16.gmra.mrb[0].mxu0 %v4738
      %v4877 = vpop.f32.mrb[0].mxu0
      %v4878 = vadd.f32 0.0, %v4877
      %v4879 = vpop.f32.mrb[0].mxu0
      %v4880 = vpop.f32.mrb[0].mxu0
      %v4881 = vadd.f32 0.0, %v4880
      %v4882 = vpop.f32.mrb[0].mxu0
      %4883 = vmatprep.mubr.bf16.mxu0 0
      %4884 = vmatmul.mubr.bf16.gmra.mrb[0].mxu0 %v4741
      %v4885 = vpop.f32.mrb[0].mxu0
      %v4886 = vadd.f32 0.0, %v4885
      %v4887 = vpop.f32.mrb[0].mxu0
      %v4888 = vpop.f32.mrb[0].mxu0
      %v4889 = vadd.f32 0.0, %v4888
      %v4890 = vpop.f32.mrb[0].mxu0
      %4891 = vmatprep.mubr.bf16.mxu0 0
      %4892 = vmatmul.mubr.bf16.gmra.mrb[0].mxu0 %v4744
      %v4893 = vpop.f32.mrb[0].mxu0
      %v4894 = vadd.f32 0.0, %v4893
      %v4895 = vpop.f32.mrb[0].mxu0
      %v4896 = vpop.f32.mrb[0].mxu0
      %v4897 = vadd.f32 0.0, %v4896
      %v4898 = vpop.f32.mrb[0].mxu0
      %4899 = vmatprep.mubr.bf16.mxu0 0
      %4900 = vmatmul.mubr.bf16.gmra.mrb[0].mxu0 %v4747
      %v4901 = vpop.f32.mrb[0].mxu0
      %v4902 = vadd.f32 0.0, %v4901
      %v4903 = vpop.f32.mrb[0].mxu0
      %v4904 = vpop.f32.mrb[0].mxu0
      %v4905 = vadd.f32 0.0, %v4904
      %v4906 = vpop.f32.mrb[0].mxu0
      %4907 = vmatprep.mubr.bf16.mxu0 0
      %4908 = vmatmul.mubr.bf16.gmra.mrb[0].mxu0 %v4750
      %v4909 = vpop.f32.mrb[0].mxu0
      %v4910 = vadd.f32 0.0, %v4909
      %v4911 = vpop.f32.mrb[0].mxu0
      %v4912 = vpop.f32.mrb[0].mxu0
      %v4913 = vadd.f32 0.0, %v4912
      %v4914 = vpop.f32.mrb[0].mxu0
      %4915 = vdwg.mxu0
      %v4916 = vadd.f32 %v4622, %v4790
      %v4917 = vadd.f32 %v4623, %v4793
      %v4918 = vadd.f32 %v4624, %v4798
      %v4919 = vadd.f32 %v4625, %v4801
      %v4920 = vadd.f32 %v4626, %v4806
      %v4921 = vadd.f32 %v4627, %v4809
      %v4922 = vadd.f32 %v4628, %v4814
      %v4923 = vadd.f32 %v4629, %v4817
      %v4924 = vadd.f32 %v4630, %v4822
      %v4925 = vadd.f32 %v4631, %v4825
      %v4926 = vadd.f32 %v4632, %v4830
      %v4927 = vadd.f32 %v4633, %v4833
      %v4928 = vadd.f32 %v4634, %v4838
      %v4929 = vadd.f32 %v4635, %v4841
      %v4930 = vadd.f32 %v4636, %v4846
      %v4931 = vadd.f32 %v4637, %v4849
      %v4932 = vadd.f32 %v4638, %v4854
      %v4933 = vadd.f32 %v4639, %v4857
      %v4934 = vadd.f32 %v4640, %v4862
      %v4935 = vadd.f32 %v4641, %v4865
      %v4936 = vadd.f32 %v4642, %v4870
      %v4937 = vadd.f32 %v4643, %v4873
      %v4938 = vadd.f32 %v4644, %v4878
      %v4939 = vadd.f32 %v4645, %v4881
      %v4940 = vadd.f32 %v4646, %v4886
      %v4941 = vadd.f32 %v4647, %v4889
      %v4942 = vadd.f32 %v4648, %v4894
      %v4943 = vadd.f32 %v4649, %v4897
      %v4944 = vadd.f32 %v4650, %v4902
      %v4945 = vadd.f32 %v4651, %v4905
      %v4946 = vadd.f32 %v4652, %v4910
      %v4947 = vadd.f32 %v4653, %v4913
      %s4948 = scalar_lea.vmem [#allocation2], 48
      %v4949 = vld [vmem:[%s4948] sm:$0xff]
      %v4950 = vld [vmem:[%s4948 + $0x8] sm:$0xff]
      %v4951 = vld [vmem:[%s4948 + $0x18] sm:$0xff]
      %v4952 = vld [vmem:[%s4948 + $0x20] sm:$0xff]
      %v4953 = vld [vmem:[%s4948 + $0x30] sm:$0xff]
      %v4954 = vld [vmem:[%s4948 + $0x38] sm:$0xff]
      %v4955 = vld [vmem:[%s4948 + $0x48] sm:$0xff]
      %v4956 = vld [vmem:[%s4948 + $0x50] sm:$0xff]
      %v4957 = vld [vmem:[%s4948 + $0x60] sm:$0xff]
      %v4958 = vld [vmem:[%s4948 + $0x68] sm:$0xff]
      %v4959 = vld [vmem:[%s4948 + $0x78] sm:$0xff]
      %v4960 = vld [vmem:[%s4948 + $0x80] sm:$0xff]
      %v4961 = vld [vmem:[%s4948 + $0x90] sm:$0xff]
      %v4962 = vld [vmem:[%s4948 + $0x98] sm:$0xff]
      %v4963 = vld [vmem:[%s4948 + $0xa8] sm:$0xff]
      %v4964 = vld [vmem:[%s4948 + $0xb0] sm:$0xff]
      %v4965 = vld [vmem:[%s4948 + $0xc0] sm:$0xff]
      %v4966 = vld [vmem:[%s4948 + $0xc8] sm:$0xff]
      %v4967 = vld [vmem:[%s4948 + $0xd8] sm:$0xff]
      %v4968 = vld [vmem:[%s4948 + $0xe0] sm:$0xff]
      %v4969 = vld [vmem:[%s4948 + $0xf0] sm:$0xff]
      %v4970 = vld [vmem:[%s4948 + $0xf8] sm:$0xff]
      %v4971 = vld [vmem:[%s4948 + $0x108] sm:$0xff]
      %v4972 = vld [vmem:[%s4948 + $0x110] sm:$0xff]
      %v4973 = vld [vmem:[%s4948 + $0x120] sm:$0xff]
      %v4974 = vld [vmem:[%s4948 + $0x128] sm:$0xff]
      %v4975 = vld [vmem:[%s4948 + $0x138] sm:$0xff]
      %v4976 = vld [vmem:[%s4948 + $0x140] sm:$0xff]
      %v4977 = vld [vmem:[%s4948 + $0x150] sm:$0xff]
      %v4978 = vld [vmem:[%s4948 + $0x158] sm:$0xff]
      %v4979 = vld [vmem:[%s4948 + $0x168] sm:$0xff]
      %v4980 = vld [vmem:[%s4948 + $0x170] sm:$0xff]
      %v4981 = vpack.c.bf16 %v4950, %v4949
      %v4982 = vpack.c.bf16 %v4952, %v4951
      %v4983 = vpack.c.bf16 %v4954, %v4953
      %v4984 = vpack.c.bf16 %v4956, %v4955
      %v4985 = vpack.c.bf16 %v4958, %v4957
      %v4986 = vpack.c.bf16 %v4960, %v4959
      %v4987 = vpack.c.bf16 %v4962, %v4961
      %v4988 = vpack.c.bf16 %v4964, %v4963
      %v4989 = vpack.c.bf16 %v4966, %v4965
      %v4990 = vpack.c.bf16 %v4968, %v4967
      %v4991 = vpack.c.bf16 %v4970, %v4969
      %v4992 = vpack.c.bf16 %v4972, %v4971
      %v4993 = vpack.c.bf16 %v4974, %v4973
      %v4994 = vpack.c.bf16 %v4976, %v4975
      %v4995 = vpack.c.bf16 %v4978, %v4977
      %v4996 = vpack.c.bf16 %v4980, %v4979
      %s4997 = scalar_lea.vmem %s4, 24
      %v4998 = vld [vmem:[%s4997] sm:$0xf]
      %v5000 = vsel %vm3159, %v4981, 0
      %v5003 = vsel %vm3159, %v4982, 0
      %v5006 = vsel %vm3159, %v4983, 0
      %v5009 = vsel %vm3159, %v4984, 0
      %v5012 = vsel %vm3159, %v4985, 0
      %v5015 = vsel %vm3159, %v4986, 0
      %v5018 = vsel %vm3159, %v4987, 0
      %v5021 = vsel %vm3159, %v4988, 0
      %v5024 = vsel %vm3159, %v4989, 0
      %v5027 = vsel %vm3159, %v4990, 0
      %v5030 = vsel %vm3159, %v4991, 0
      %v5033 = vsel %vm3159, %v4992, 0
      %v5036 = vsel %vm3159, %v4993, 0
      %v5039 = vsel %vm3159, %v4994, 0
      %v5042 = vsel %vm3159, %v4995, 0
      %v5045 = vsel %vm3159, %v4996, 0
      %v5048 = vsel %vm3395, %v4998, 0
      %5050 = vmatprep.subr.bf16.mxu0 0
      %5051 = vmatpush1.bf16.msra.mxu0 %v5048
      %5052 = vmatprep.subr.bf16.mxu0 0
      %5053 = vmatpush1.bf16.msra.mxu0 0
      %5054 = vmatprep.subr.bf16.mxu0 0
      %5055 = vmatpush1.bf16.msra.mxu0 0
      %5056 = vmatprep.subr.bf16.mxu0 0
      %5057 = vmatpush1.bf16.msra.mxu0 0
      %5058 = vmatprep.subr.bf16.mxu0 0
      %5059 = vmatpush1.bf16.msra.mxu0 0
      %5060 = vmatprep.subr.bf16.mxu0 0
      %5061 = vmatpush1.bf16.msra.mxu0 0
      %5062 = vmatprep.subr.bf16.mxu0 0
      %5063 = vmatpush1.bf16.msra.mxu0 0
      %5064 = vmatprep.subr.bf16.mxu0 0
      %5065 = vmatpush1.bf16.msra.mxu0 0
      %5066 = vmatprep.subr.bf16.mxu0 0
      %5067 = vmatpush1.bf16.msra.mxu0 0
      %5068 = vmatprep.subr.bf16.mxu0 0
      %5069 = vmatpush1.bf16.msra.mxu0 0
      %5070 = vmatprep.subr.bf16.mxu0 0
      %5071 = vmatpush1.bf16.msra.mxu0 0
      %5072 = vmatprep.subr.bf16.mxu0 0
      %5073 = vmatpush1.bf16.msra.mxu0 0
      %5074 = vmatprep.subr.bf16.mxu0 0
      %5075 = vmatpush1.bf16.msra.mxu0 0
      %5076 = vmatprep.subr.bf16.mxu0 0
      %5077 = vmatpush1.bf16.msra.mxu0 0
      %5078 = vmatprep.subr.bf16.mxu0 0
      %5079 = vmatpush1.bf16.msra.mxu0 0
      %5080 = vmatprep.subr.bf16.mxu0 0
      %5081 = vmatpush1.bf16.msra.mxu0 0
      %5082 = vmatprep.mubr.bf16.mxu0 0
      %5083 = vmatmul.mubr.bf16.gmra.mrb[0].mxu0 %v5000
      %v5084 = vpop.f32.mrb[0].mxu0
      %v5085 = vadd.f32 0.0, %v5084
      %v5086 = vpop.f32.mrb[0].mxu0
      %v5087 = vpop.f32.mrb[0].mxu0
      %v5088 = vadd.f32 0.0, %v5087
      %v5089 = vpop.f32.mrb[0].mxu0
      %5090 = vmatprep.mubr.bf16.mxu0 0
      %5091 = vmatmul.mubr.bf16.gmra.mrb[0].mxu0 %v5003
      %v5092 = vpop.f32.mrb[0].mxu0
      %v5093 = vadd.f32 0.0, %v5092
      %v5094 = vpop.f32.mrb[0].mxu0
      %v5095 = vpop.f32.mrb[0].mxu0
      %v5096 = vadd.f32 0.0, %v5095
      %v5097 = vpop.f32.mrb[0].mxu0
      %5098 = vmatprep.mubr.bf16.mxu0 0
      %5099 = vmatmul.mubr.bf16.gmra.mrb[0].mxu0 %v5006
      %v5100 = vpop.f32.mrb[0].mxu0
      %v5101 = vadd.f32 0.0, %v5100
      %v5102 = vpop.f32.mrb[0].mxu0
      %v5103 = vpop.f32.mrb[0].mxu0
      %v5104 = vadd.f32 0.0, %v5103
      %v5105 = vpop.f32.mrb[0].mxu0
      %5106 = vmatprep.mubr.bf16.mxu0 0
      %5107 = vmatmul.mubr.bf16.gmra.mrb[0].mxu0 %v5009
      %v5108 = vpop.f32.mrb[0].mxu0
      %v5109 = vadd.f32 0.0, %v5108
      %v5110 = vpop.f32.mrb[0].mxu0
      %v5111 = vpop.f32.mrb[0].mxu0
      %v5112 = vadd.f32 0.0, %v5111
      %v5113 = vpop.f32.mrb[0].mxu0
      %5114 = vmatprep.mubr.bf16.mxu0 0
      %5115 = vmatmul.mubr.bf16.gmra.mrb[0].mxu0 %v5012
      %v5116 = vpop.f32.mrb[0].mxu0
      %v5117 = vadd.f32 0.0, %v5116
      %v5118 = vpop.f32.mrb[0].mxu0
      %v5119 = vpop.f32.mrb[0].mxu0
      %v5120 = vadd.f32 0.0, %v5119
      %v5121 = vpop.f32.mrb[0].mxu0
      %5122 = vmatprep.mubr.bf16.mxu0 0
      %5123 = vmatmul.mubr.bf16.gmra.mrb[0].mxu0 %v5015
      %v5124 = vpop.f32.mrb[0].mxu0
      %v5125 = vadd.f32 0.0, %v5124
      %v5126 = vpop.f32.mrb[0].mxu0
      %v5127 = vpop.f32.mrb[0].mxu0
      %v5128 = vadd.f32 0.0, %v5127
      %v5129 = vpop.f32.mrb[0].mxu0
      %5130 = vmatprep.mubr.bf16.mxu0 0
      %5131 = vmatmul.mubr.bf16.gmra.mrb[0].mxu0 %v5018
      %v5132 = vpop.f32.mrb[0].mxu0
      %v5133 = vadd.f32 0.0, %v5132
      %v5134 = vpop.f32.mrb[0].mxu0
      %v5135 = vpop.f32.mrb[0].mxu0
      %v5136 = vadd.f32 0.0, %v5135
      %v5137 = vpop.f32.mrb[0].mxu0
      %5138 = vmatprep.mubr.bf16.mxu0 0
      %5139 = vmatmul.mubr.bf16.gmra.mrb[0].mxu0 %v5021
      %v5140 = vpop.f32.mrb[0].mxu0
      %v5141 = vadd.f32 0.0, %v5140
      %v5142 = vpop.f32.mrb[0].mxu0
      %v5143 = vpop.f32.mrb[0].mxu0
      %v5144 = vadd.f32 0.0, %v5143
      %v5145 = vpop.f32.mrb[0].mxu0
      %5146 = vmatprep.mubr.bf16.mxu0 0
      %5147 = vmatmul.mubr.bf16.gmra.mrb[0].mxu0 %v5024
      %v5148 = vpop.f32.mrb[0].mxu0
      %v5149 = vadd.f32 0.0, %v5148
      %v5150 = vpop.f32.mrb[0].mxu0
      %v5151 = vpop.f32.mrb[0].mxu0
      %v5152 = vadd.f32 0.0, %v5151
      %v5153 = vpop.f32.mrb[0].mxu0
      %5154 = vmatprep.mubr.bf16.mxu0 0
      %5155 = vmatmul.mubr.bf16.gmra.mrb[0].mxu0 %v5027
      %v5156 = vpop.f32.mrb[0].mxu0
      %v5157 = vadd.f32 0.0, %v5156
      %v5158 = vpop.f32.mrb[0].mxu0
      %v5159 = vpop.f32.mrb[0].mxu0
      %v5160 = vadd.f32 0.0, %v5159
      %v5161 = vpop.f32.mrb[0].mxu0
      %5162 = vmatprep.mubr.bf16.mxu0 0
      %5163 = vmatmul.mubr.bf16.gmra.mrb[0].mxu0 %v5030
      %v5164 = vpop.f32.mrb[0].mxu0
      %v5165 = vadd.f32 0.0, %v5164
      %v5166 = vpop.f32.mrb[0].mxu0
      %v5167 = vpop.f32.mrb[0].mxu0
      %v5168 = vadd.f32 0.0, %v5167
      %v5169 = vpop.f32.mrb[0].mxu0
      %5170 = vmatprep.mubr.bf16.mxu0 0
      %5171 = vmatmul.mubr.bf16.gmra.mrb[0].mxu0 %v5033
      %v5172 = vpop.f32.mrb[0].mxu0
      %v5173 = vadd.f32 0.0, %v5172
      %v5174 = vpop.f32.mrb[0].mxu0
      %v5175 = vpop.f32.mrb[0].mxu0
      %v5176 = vadd.f32 0.0, %v5175
      %v5177 = vpop.f32.mrb[0].mxu0
      %5178 = vmatprep.mubr.bf16.mxu0 0
      %5179 = vmatmul.mubr.bf16.gmra.mrb[0].mxu0 %v5036
      %v5180 = vpop.f32.mrb[0].mxu0
      %v5181 = vadd.f32 0.0, %v5180
      %v5182 = vpop.f32.mrb[0].mxu0
      %v5183 = vpop.f32.mrb[0].mxu0
      %v5184 = vadd.f32 0.0, %v5183
      %v5185 = vpop.f32.mrb[0].mxu0
      %5186 = vmatprep.mubr.bf16.mxu0 0
      %5187 = vmatmul.mubr.bf16.gmra.mrb[0].mxu0 %v5039
      %v5188 = vpop.f32.mrb[0].mxu0
      %v5189 = vadd.f32 0.0, %v5188
      %v5190 = vpop.f32.mrb[0].mxu0
      %v5191 = vpop.f32.mrb[0].mxu0
      %v5192 = vadd.f32 0.0, %v5191
      %v5193 = vpop.f32.mrb[0].mxu0
      %5194 = vmatprep.mubr.bf16.mxu0 0
      %5195 = vmatmul.mubr.bf16.gmra.mrb[0].mxu0 %v5042
      %v5196 = vpop.f32.mrb[0].mxu0
      %v5197 = vadd.f32 0.0, %v5196
      %v5198 = vpop.f32.mrb[0].mxu0
      %v5199 = vpop.f32.mrb[0].mxu0
      %v5200 = vadd.f32 0.0, %v5199
      %v5201 = vpop.f32.mrb[0].mxu0
      %5202 = vmatprep.mubr.bf16.mxu0 0
      %5203 = vmatmul.mubr.bf16.gmra.mrb[0].mxu0 %v5045
      %v5204 = vpop.f32.mrb[0].mxu0
      %v5205 = vadd.f32 0.0, %v5204
      %v5206 = vpop.f32.mrb[0].mxu0
      %v5207 = vpop.f32.mrb[0].mxu0
      %v5208 = vadd.f32 0.0, %v5207
      %v5209 = vpop.f32.mrb[0].mxu0
      %5210 = vdwg.mxu0
      %v5211 = vadd.f32 %v4916, %v5085
      %v5212 = vadd.f32 %v4917, %v5088
      %v5213 = vadd.f32 %v4918, %v5093
      %v5214 = vadd.f32 %v4919, %v5096
      %v5215 = vadd.f32 %v4920, %v5101
      %v5216 = vadd.f32 %v4921, %v5104
      %v5217 = vadd.f32 %v4922, %v5109
      %v5218 = vadd.f32 %v4923, %v5112
      %v5219 = vadd.f32 %v4924, %v5117
      %v5220 = vadd.f32 %v4925, %v5120
      %v5221 = vadd.f32 %v4926, %v5125
      %v5222 = vadd.f32 %v4927, %v5128
      %v5223 = vadd.f32 %v4928, %v5133
      %v5224 = vadd.f32 %v4929, %v5136
      %v5225 = vadd.f32 %v4930, %v5141
      %v5226 = vadd.f32 %v4931, %v5144
      %v5227 = vadd.f32 %v4932, %v5149
      %v5228 = vadd.f32 %v4933, %v5152
      %v5229 = vadd.f32 %v4934, %v5157
      %v5230 = vadd.f32 %v4935, %v5160
      %v5231 = vadd.f32 %v4936, %v5165
      %v5232 = vadd.f32 %v4937, %v5168
      %v5233 = vadd.f32 %v4938, %v5173
      %v5234 = vadd.f32 %v4939, %v5176
      %v5235 = vadd.f32 %v4940, %v5181
      %v5236 = vadd.f32 %v4941, %v5184
      %v5237 = vadd.f32 %v4942, %v5189
      %v5238 = vadd.f32 %v4943, %v5192
      %v5239 = vadd.f32 %v4944, %v5197
      %v5240 = vadd.f32 %v4945, %v5200
      %v5241 = vadd.f32 %v4946, %v5205
      %v5242 = vadd.f32 %v4947, %v5208
      %v5243 = vld [vmem:[%s4948 + $0x1] sm:$0xff]
      %v5244 = vld [vmem:[%s4948 + $0x9] sm:$0xff]
      %v5245 = vld [vmem:[%s4948 + $0x19] sm:$0xff]
      %v5246 = vld [vmem:[%s4948 + $0x21] sm:$0xff]
      %v5247 = vld [vmem:[%s4948 + $0x31] sm:$0xff]
      %v5248 = vld [vmem:[%s4948 + $0x39] sm:$0xff]
      %v5249 = vld [vmem:[%s4948 + $0x49] sm:$0xff]
      %v5250 = vld [vmem:[%s4948 + $0x51] sm:$0xff]
      %v5251 = vld [vmem:[%s4948 + $0x61] sm:$0xff]
      %v5252 = vld [vmem:[%s4948 + $0x69] sm:$0xff]
      %v5253 = vld [vmem:[%s4948 + $0x79] sm:$0xff]
      %v5254 = vld [vmem:[%s4948 + $0x81] sm:$0xff]
      %v5255 = vld [vmem:[%s4948 + $0x91] sm:$0xff]
      %v5256 = vld [vmem:[%s4948 + $0x99] sm:$0xff]
      %v5257 = vld [vmem:[%s4948 + $0xa9] sm:$0xff]
      %v5258 = vld [vmem:[%s4948 + $0xb1] sm:$0xff]
      %v5259 = vld [vmem:[%s4948 + $0xc1] sm:$0xff]
      %v5260 = vld [vmem:[%s4948 + $0xc9] sm:$0xff]
      %v5261 = vld [vmem:[%s4948 + $0xd9] sm:$0xff]
      %v5262 = vld [vmem:[%s4948 + $0xe1] sm:$0xff]
      %v5263 = vld [vmem:[%s4948 + $0xf1] sm:$0xff]
      %v5264 = vld [vmem:[%s4948 + $0xf9] sm:$0xff]
      %v5265 = vld [vmem:[%s4948 + $0x109] sm:$0xff]
      %v5266 = vld [vmem:[%s4948 + $0x111] sm:$0xff]
      %v5267 = vld [vmem:[%s4948 + $0x121] sm:$0xff]
      %v5268 = vld [vmem:[%s4948 + $0x129] sm:$0xff]
      %v5269 = vld [vmem:[%s4948 + $0x139] sm:$0xff]
      %v5270 = vld [vmem:[%s4948 + $0x141] sm:$0xff]
      %v5271 = vld [vmem:[%s4948 + $0x151] sm:$0xff]
      %v5272 = vld [vmem:[%s4948 + $0x159] sm:$0xff]
      %v5273 = vld [vmem:[%s4948 + $0x169] sm:$0xff]
      %v5274 = vld [vmem:[%s4948 + $0x171] sm:$0xff]
      %v5275 = vpack.c.bf16 %v5244, %v5243
      %v5276 = vpack.c.bf16 %v5246, %v5245
      %v5277 = vpack.c.bf16 %v5248, %v5247
      %v5278 = vpack.c.bf16 %v5250, %v5249
      %v5279 = vpack.c.bf16 %v5252, %v5251
      %v5280 = vpack.c.bf16 %v5254, %v5253
      %v5281 = vpack.c.bf16 %v5256, %v5255
      %v5282 = vpack.c.bf16 %v5258, %v5257
      %v5283 = vpack.c.bf16 %v5260, %v5259
      %v5284 = vpack.c.bf16 %v5262, %v5261
      %v5285 = vpack.c.bf16 %v5264, %v5263
      %v5286 = vpack.c.bf16 %v5266, %v5265
      %v5287 = vpack.c.bf16 %v5268, %v5267
      %v5288 = vpack.c.bf16 %v5270, %v5269
      %v5289 = vpack.c.bf16 %v5272, %v5271
      %v5290 = vpack.c.bf16 %v5274, %v5273
      %s5291 = scalar_lea.vmem %s4, 28
      %v5292 = vld [vmem:[%s5291] sm:$0xf]
      %v5294 = vsel %vm3159, %v5275, 0
      %v5297 = vsel %vm3159, %v5276, 0
      %v5300 = vsel %vm3159, %v5277, 0
      %v5303 = vsel %vm3159, %v5278, 0
      %v5306 = vsel %vm3159, %v5279, 0
      %v5309 = vsel %vm3159, %v5280, 0
      %v5312 = vsel %vm3159, %v5281, 0
      %v5315 = vsel %vm3159, %v5282, 0
      %v5318 = vsel %vm3159, %v5283, 0
      %v5321 = vsel %vm3159, %v5284, 0
      %v5324 = vsel %vm3159, %v5285, 0
      %v5327 = vsel %vm3159, %v5286, 0
      %v5330 = vsel %vm3159, %v5287, 0
      %v5333 = vsel %vm3159, %v5288, 0
      %v5336 = vsel %vm3159, %v5289, 0
      %v5339 = vsel %vm3159, %v5290, 0
      %v5342 = vsel %vm3395, %v5292, 0
      %5344 = vmatprep.subr.bf16.mxu0 0
      %5345 = vmatpush1.bf16.msra.mxu0 %v5342
      %5346 = vmatprep.subr.bf16.mxu0 0
      %5347 = vmatpush1.bf16.msra.mxu0 0
      %5348 = vmatprep.subr.bf16.mxu0 0
      %5349 = vmatpush1.bf16.msra.mxu0 0
      %5350 = vmatprep.subr.bf16.mxu0 0
      %5351 = vmatpush1.bf16.msra.mxu0 0
      %5352 = vmatprep.subr.bf16.mxu0 0
      %5353 = vmatpush1.bf16.msra.mxu0 0
      %5354 = vmatprep.subr.bf16.mxu0 0
      %5355 = vmatpush1.bf16.msra.mxu0 0
      %5356 = vmatprep.subr.bf16.mxu0 0
      %5357 = vmatpush1.bf16.msra.mxu0 0
      %5358 = vmatprep.subr.bf16.mxu0 0
      %5359 = vmatpush1.bf16.msra.mxu0 0
      %5360 = vmatprep.subr.bf16.mxu0 0
      %5361 = vmatpush1.bf16.msra.mxu0 0
      %5362 = vmatprep.subr.bf16.mxu0 0
      %5363 = vmatpush1.bf16.msra.mxu0 0
      %5364 = vmatprep.subr.bf16.mxu0 0
      %5365 = vmatpush1.bf16.msra.mxu0 0
      %5366 = vmatprep.subr.bf16.mxu0 0
      %5367 = vmatpush1.bf16.msra.mxu0 0
      %5368 = vmatprep.subr.bf16.mxu0 0
      %5369 = vmatpush1.bf16.msra.mxu0 0
      %5370 = vmatprep.subr.bf16.mxu0 0
      %5371 = vmatpush1.bf16.msra.mxu0 0
      %5372 = vmatprep.subr.bf16.mxu0 0
      %5373 = vmatpush1.bf16.msra.mxu0 0
      %5374 = vmatprep.subr.bf16.mxu0 0
      %5375 = vmatpush1.bf16.msra.mxu0 0
      %5376 = vmatprep.mubr.bf16.mxu0 0
      %5377 = vmatmul.mubr.bf16.gmra.mrb[0].mxu0 %v5294
      %v5378 = vpop.f32.mrb[0].mxu0
      %v5379 = vadd.f32 0.0, %v5378
      %v5380 = vpop.f32.mrb[0].mxu0
      %v5381 = vpop.f32.mrb[0].mxu0
      %v5382 = vadd.f32 0.0, %v5381
      %v5383 = vpop.f32.mrb[0].mxu0
      %5384 = vmatprep.mubr.bf16.mxu0 0
      %5385 = vmatmul.mubr.bf16.gmra.mrb[0].mxu0 %v5297
      %v5386 = vpop.f32.mrb[0].mxu0
      %v5387 = vadd.f32 0.0, %v5386
      %v5388 = vpop.f32.mrb[0].mxu0
      %v5389 = vpop.f32.mrb[0].mxu0
      %v5390 = vadd.f32 0.0, %v5389
      %v5391 = vpop.f32.mrb[0].mxu0
      %5392 = vmatprep.mubr.bf16.mxu0 0
      %5393 = vmatmul.mubr.bf16.gmra.mrb[0].mxu0 %v5300
      %v5394 = vpop.f32.mrb[0].mxu0
      %v5395 = vadd.f32 0.0, %v5394
      %v5396 = vpop.f32.mrb[0].mxu0
      %v5397 = vpop.f32.mrb[0].mxu0
      %v5398 = vadd.f32 0.0, %v5397
      %v5399 = vpop.f32.mrb[0].mxu0
      %5400 = vmatprep.mubr.bf16.mxu0 0
      %5401 = vmatmul.mubr.bf16.gmra.mrb[0].mxu0 %v5303
      %v5402 = vpop.f32.mrb[0].mxu0
      %v5403 = vadd.f32 0.0, %v5402
      %v5404 = vpop.f32.mrb[0].mxu0
      %v5405 = vpop.f32.mrb[0].mxu0
      %v5406 = vadd.f32 0.0, %v5405
      %v5407 = vpop.f32.mrb[0].mxu0
      %5408 = vmatprep.mubr.bf16.mxu0 0
      %5409 = vmatmul.mubr.bf16.gmra.mrb[0].mxu0 %v5306
      %v5410 = vpop.f32.mrb[0].mxu0
      %v5411 = vadd.f32 0.0, %v5410
      %v5412 = vpop.f32.mrb[0].mxu0
      %v5413 = vpop.f32.mrb[0].mxu0
      %v5414 = vadd.f32 0.0, %v5413
      %v5415 = vpop.f32.mrb[0].mxu0
      %5416 = vmatprep.mubr.bf16.mxu0 0
      %5417 = vmatmul.mubr.bf16.gmra.mrb[0].mxu0 %v5309
      %v5418 = vpop.f32.mrb[0].mxu0
      %v5419 = vadd.f32 0.0, %v5418
      %v5420 = vpop.f32.mrb[0].mxu0
      %v5421 = vpop.f32.mrb[0].mxu0
      %v5422 = vadd.f32 0.0, %v5421
      %v5423 = vpop.f32.mrb[0].mxu0
      %5424 = vmatprep.mubr.bf16.mxu0 0
      %5425 = vmatmul.mubr.bf16.gmra.mrb[0].mxu0 %v5312
      %v5426 = vpop.f32.mrb[0].mxu0
      %v5427 = vadd.f32 0.0, %v5426
      %v5428 = vpop.f32.mrb[0].mxu0
      %v5429 = vpop.f32.mrb[0].mxu0
      %v5430 = vadd.f32 0.0, %v5429
      %v5431 = vpop.f32.mrb[0].mxu0
      %5432 = vmatprep.mubr.bf16.mxu0 0
      %5433 = vmatmul.mubr.bf16.gmra.mrb[0].mxu0 %v5315
      %v5434 = vpop.f32.mrb[0].mxu0
      %v5435 = vadd.f32 0.0, %v5434
      %v5436 = vpop.f32.mrb[0].mxu0
      %v5437 = vpop.f32.mrb[0].mxu0
      %v5438 = vadd.f32 0.0, %v5437
      %v5439 = vpop.f32.mrb[0].mxu0
      %5440 = vmatprep.mubr.bf16.mxu0 0
      %5441 = vmatmul.mubr.bf16.gmra.mrb[0].mxu0 %v5318
      %v5442 = vpop.f32.mrb[0].mxu0
      %v5443 = vadd.f32 0.0, %v5442
      %v5444 = vpop.f32.mrb[0].mxu0
      %v5445 = vpop.f32.mrb[0].mxu0
      %v5446 = vadd.f32 0.0, %v5445
      %v5447 = vpop.f32.mrb[0].mxu0
      %5448 = vmatprep.mubr.bf16.mxu0 0
      %5449 = vmatmul.mubr.bf16.gmra.mrb[0].mxu0 %v5321
      %v5450 = vpop.f32.mrb[0].mxu0
      %v5451 = vadd.f32 0.0, %v5450
      %v5452 = vpop.f32.mrb[0].mxu0
      %v5453 = vpop.f32.mrb[0].mxu0
      %v5454 = vadd.f32 0.0, %v5453
      %v5455 = vpop.f32.mrb[0].mxu0
      %5456 = vmatprep.mubr.bf16.mxu0 0
      %5457 = vmatmul.mubr.bf16.gmra.mrb[0].mxu0 %v5324
      %v5458 = vpop.f32.mrb[0].mxu0
      %v5459 = vadd.f32 0.0, %v5458
      %v5460 = vpop.f32.mrb[0].mxu0
      %v5461 = vpop.f32.mrb[0].mxu0
      %v5462 = vadd.f32 0.0, %v5461
      %v5463 = vpop.f32.mrb[0].mxu0
      %5464 = vmatprep.mubr.bf16.mxu0 0
      %5465 = vmatmul.mubr.bf16.gmra.mrb[0].mxu0 %v5327
      %v5466 = vpop.f32.mrb[0].mxu0
      %v5467 = vadd.f32 0.0, %v5466
      %v5468 = vpop.f32.mrb[0].mxu0
      %v5469 = vpop.f32.mrb[0].mxu0
      %v5470 = vadd.f32 0.0, %v5469
      %v5471 = vpop.f32.mrb[0].mxu0
      %5472 = vmatprep.mubr.bf16.mxu0 0
      %5473 = vmatmul.mubr.bf16.gmra.mrb[0].mxu0 %v5330
      %v5474 = vpop.f32.mrb[0].mxu0
      %v5475 = vadd.f32 0.0, %v5474
      %v5476 = vpop.f32.mrb[0].mxu0
      %v5477 = vpop.f32.mrb[0].mxu0
      %v5478 = vadd.f32 0.0, %v5477
      %v5479 = vpop.f32.mrb[0].mxu0
      %5480 = vmatprep.mubr.bf16.mxu0 0
      %5481 = vmatmul.mubr.bf16.gmra.mrb[0].mxu0 %v5333
      %v5482 = vpop.f32.mrb[0].mxu0
      %v5483 = vadd.f32 0.0, %v5482
      %v5484 = vpop.f32.mrb[0].mxu0
      %v5485 = vpop.f32.mrb[0].mxu0
      %v5486 = vadd.f32 0.0, %v5485
      %v5487 = vpop.f32.mrb[0].mxu0
      %5488 = vmatprep.mubr.bf16.mxu0 0
      %5489 = vmatmul.mubr.bf16.gmra.mrb[0].mxu0 %v5336
      %v5490 = vpop.f32.mrb[0].mxu0
      %v5491 = vadd.f32 0.0, %v5490
      %v5492 = vpop.f32.mrb[0].mxu0
      %v5493 = vpop.f32.mrb[0].mxu0
      %v5494 = vadd.f32 0.0, %v5493
      %v5495 = vpop.f32.mrb[0].mxu0
      %5496 = vmatprep.mubr.bf16.mxu0 0
      %5497 = vmatmul.mubr.bf16.gmra.mrb[0].mxu0 %v5339
      %v5498 = vpop.f32.mrb[0].mxu0
      %v5499 = vadd.f32 0.0, %v5498
      %v5500 = vpop.f32.mrb[0].mxu0
      %v5501 = vpop.f32.mrb[0].mxu0
      %v5502 = vadd.f32 0.0, %v5501
      %v5503 = vpop.f32.mrb[0].mxu0
      %5504 = vdwg.mxu0
      %v5505 = vadd.f32 %v5211, %v5379
      %v5506 = vadd.f32 %v5212, %v5382
      %v5507 = vadd.f32 %v5213, %v5387
      %v5508 = vadd.f32 %v5214, %v5390
      %v5509 = vadd.f32 %v5215, %v5395
      %v5510 = vadd.f32 %v5216, %v5398
      %v5511 = vadd.f32 %v5217, %v5403
      %v5512 = vadd.f32 %v5218, %v5406
      %v5513 = vadd.f32 %v5219, %v5411
      %v5514 = vadd.f32 %v5220, %v5414
      %v5515 = vadd.f32 %v5221, %v5419
      %v5516 = vadd.f32 %v5222, %v5422
      %v5517 = vadd.f32 %v5223, %v5427
      %v5518 = vadd.f32 %v5224, %v5430
      %v5519 = vadd.f32 %v5225, %v5435
      %v5520 = vadd.f32 %v5226, %v5438
      %v5521 = vadd.f32 %v5227, %v5443
      %v5522 = vadd.f32 %v5228, %v5446
      %v5523 = vadd.f32 %v5229, %v5451
      %v5524 = vadd.f32 %v5230, %v5454
      %v5525 = vadd.f32 %v5231, %v5459
      %v5526 = vadd.f32 %v5232, %v5462
      %v5527 = vadd.f32 %v5233, %v5467
      %v5528 = vadd.f32 %v5234, %v5470
      %v5529 = vadd.f32 %v5235, %v5475
      %v5530 = vadd.f32 %v5236, %v5478
      %v5531 = vadd.f32 %v5237, %v5483
      %v5532 = vadd.f32 %v5238, %v5486
      %v5533 = vadd.f32 %v5239, %v5491
      %v5534 = vadd.f32 %v5240, %v5494
      %v5535 = vadd.f32 %v5241, %v5499
      %v5536 = vadd.f32 %v5242, %v5502
      %v5537 = vld [vmem:[%s4948 + $0x2] sm:$0xff]
      %v5538 = vld [vmem:[%s4948 + $0xa] sm:$0xff]
      %v5539 = vld [vmem:[%s4948 + $0x1a] sm:$0xff]
      %v5540 = vld [vmem:[%s4948 + $0x22] sm:$0xff]
      %v5541 = vld [vmem:[%s4948 + $0x32] sm:$0xff]
      %v5542 = vld [vmem:[%s4948 + $0x3a] sm:$0xff]
      %v5543 = vld [vmem:[%s4948 + $0x4a] sm:$0xff]
      %v5544 = vld [vmem:[%s4948 + $0x52] sm:$0xff]
      %v5545 = vld [vmem:[%s4948 + $0x62] sm:$0xff]
      %v5546 = vld [vmem:[%s4948 + $0x6a] sm:$0xff]
      %v5547 = vld [vmem:[%s4948 + $0x7a] sm:$0xff]
      %v5548 = vld [vmem:[%s4948 + $0x82] sm:$0xff]
      %v5549 = vld [vmem:[%s4948 + $0x92] sm:$0xff]
      %v5550 = vld [vmem:[%s4948 + $0x9a] sm:$0xff]
      %v5551 = vld [vmem:[%s4948 + $0xaa] sm:$0xff]
      %v5552 = vld [vmem:[%s4948 + $0xb2] sm:$0xff]
      %v5553 = vld [vmem:[%s4948 + $0xc2] sm:$0xff]
      %v5554 = vld [vmem:[%s4948 + $0xca] sm:$0xff]
      %v5555 = vld [vmem:[%s4948 + $0xda] sm:$0xff]
      %v5556 = vld [vmem:[%s4948 + $0xe2] sm:$0xff]
      %v5557 = vld [vmem:[%s4948 + $0xf2] sm:$0xff]
      %v5558 = vld [vmem:[%s4948 + $0xfa] sm:$0xff]
      %v5559 = vld [vmem:[%s4948 + $0x10a] sm:$0xff]
      %v5560 = vld [vmem:[%s4948 + $0x112] sm:$0xff]
      %v5561 = vld [vmem:[%s4948 + $0x122] sm:$0xff]
      %v5562 = vld [vmem:[%s4948 + $0x12a] sm:$0xff]
      %v5563 = vld [vmem:[%s4948 + $0x13a] sm:$0xff]
      %v5564 = vld [vmem:[%s4948 + $0x142] sm:$0xff]
      %v5565 = vld [vmem:[%s4948 + $0x152] sm:$0xff]
      %v5566 = vld [vmem:[%s4948 + $0x15a] sm:$0xff]
      %v5567 = vld [vmem:[%s4948 + $0x16a] sm:$0xff]
      %v5568 = vld [vmem:[%s4948 + $0x172] sm:$0xff]
      %v5569 = vpack.c.bf16 %v5538, %v5537
      %v5570 = vpack.c.bf16 %v5540, %v5539
      %v5571 = vpack.c.bf16 %v5542, %v5541
      %v5572 = vpack.c.bf16 %v5544, %v5543
      %v5573 = vpack.c.bf16 %v5546, %v5545
      %v5574 = vpack.c.bf16 %v5548, %v5547
      %v5575 = vpack.c.bf16 %v5550, %v5549
      %v5576 = vpack.c.bf16 %v5552, %v5551
      %v5577 = vpack.c.bf16 %v5554, %v5553
      %v5578 = vpack.c.bf16 %v5556, %v5555
      %v5579 = vpack.c.bf16 %v5558, %v5557
      %v5580 = vpack.c.bf16 %v5560, %v5559
      %v5581 = vpack.c.bf16 %v5562, %v5561
      %v5582 = vpack.c.bf16 %v5564, %v5563
      %v5583 = vpack.c.bf16 %v5566, %v5565
      %v5584 = vpack.c.bf16 %v5568, %v5567
      %s5585 = scalar_lea.vmem %s4, 32
      %v5586 = vld [vmem:[%s5585] sm:$0xf]
      %v5588 = vsel %vm3159, %v5569, 0
      %v5591 = vsel %vm3159, %v5570, 0
      %v5594 = vsel %vm3159, %v5571, 0
      %v5597 = vsel %vm3159, %v5572, 0
      %v5600 = vsel %vm3159, %v5573, 0
      %v5603 = vsel %vm3159, %v5574, 0
      %v5606 = vsel %vm3159, %v5575, 0
      %v5609 = vsel %vm3159, %v5576, 0
      %v5612 = vsel %vm3159, %v5577, 0
      %v5615 = vsel %vm3159, %v5578, 0
      %v5618 = vsel %vm3159, %v5579, 0
      %v5621 = vsel %vm3159, %v5580, 0
      %v5624 = vsel %vm3159, %v5581, 0
      %v5627 = vsel %vm3159, %v5582, 0
      %v5630 = vsel %vm3159, %v5583, 0
      %v5633 = vsel %vm3159, %v5584, 0
      %v5636 = vsel %vm3395, %v5586, 0
      %5638 = vmatprep.subr.bf16.mxu0 0
      %5639 = vmatpush1.bf16.msra.mxu0 %v5636
      %5640 = vmatprep.subr.bf16.mxu0 0
      %5641 = vmatpush1.bf16.msra.mxu0 0
      %5642 = vmatprep.subr.bf16.mxu0 0
      %5643 = vmatpush1.bf16.msra.mxu0 0
      %5644 = vmatprep.subr.bf16.mxu0 0
      %5645 = vmatpush1.bf16.msra.mxu0 0
      %5646 = vmatprep.subr.bf16.mxu0 0
      %5647 = vmatpush1.bf16.msra.mxu0 0
      %5648 = vmatprep.subr.bf16.mxu0 0
      %5649 = vmatpush1.bf16.msra.mxu0 0
      %5650 = vmatprep.subr.bf16.mxu0 0
      %5651 = vmatpush1.bf16.msra.mxu0 0
      %5652 = vmatprep.subr.bf16.mxu0 0
      %5653 = vmatpush1.bf16.msra.mxu0 0
      %5654 = vmatprep.subr.bf16.mxu0 0
      %5655 = vmatpush1.bf16.msra.mxu0 0
      %5656 = vmatprep.subr.bf16.mxu0 0
      %5657 = vmatpush1.bf16.msra.mxu0 0
      %5658 = vmatprep.subr.bf16.mxu0 0
      %5659 = vmatpush1.bf16.msra.mxu0 0
      %5660 = vmatprep.subr.bf16.mxu0 0
      %5661 = vmatpush1.bf16.msra.mxu0 0
      %5662 = vmatprep.subr.bf16.mxu0 0
      %5663 = vmatpush1.bf16.msra.mxu0 0
      %5664 = vmatprep.subr.bf16.mxu0 0
      %5665 = vmatpush1.bf16.msra.mxu0 0
      %5666 = vmatprep.subr.bf16.mxu0 0
      %5667 = vmatpush1.bf16.msra.mxu0 0
      %5668 = vmatprep.subr.bf16.mxu0 0
      %5669 = vmatpush1.bf16.msra.mxu0 0
      %5670 = vmatprep.mubr.bf16.mxu0 0
      %5671 = vmatmul.mubr.bf16.gmra.mrb[0].mxu0 %v5588
      %v5672 = vpop.f32.mrb[0].mxu0
      %v5673 = vadd.f32 0.0, %v5672
      %v5674 = vpop.f32.mrb[0].mxu0
      %v5675 = vpop.f32.mrb[0].mxu0
      %v5676 = vadd.f32 0.0, %v5675
      %v5677 = vpop.f32.mrb[0].mxu0
      %5678 = vmatprep.mubr.bf16.mxu0 0
      %5679 = vmatmul.mubr.bf16.gmra.mrb[0].mxu0 %v5591
      %v5680 = vpop.f32.mrb[0].mxu0
      %v5681 = vadd.f32 0.0, %v5680
      %v5682 = vpop.f32.mrb[0].mxu0
      %v5683 = vpop.f32.mrb[0].mxu0
      %v5684 = vadd.f32 0.0, %v5683
      %v5685 = vpop.f32.mrb[0].mxu0
      %5686 = vmatprep.mubr.bf16.mxu0 0
      %5687 = vmatmul.mubr.bf16.gmra.mrb[0].mxu0 %v5594
      %v5688 = vpop.f32.mrb[0].mxu0
      %v5689 = vadd.f32 0.0, %v5688
      %v5690 = vpop.f32.mrb[0].mxu0
      %v5691 = vpop.f32.mrb[0].mxu0
      %v5692 = vadd.f32 0.0, %v5691
      %v5693 = vpop.f32.mrb[0].mxu0
      %5694 = vmatprep.mubr.bf16.mxu0 0
      %5695 = vmatmul.mubr.bf16.gmra.mrb[0].mxu0 %v5597
      %v5696 = vpop.f32.mrb[0].mxu0
      %v5697 = vadd.f32 0.0, %v5696
      %v5698 = vpop.f32.mrb[0].mxu0
      %v5699 = vpop.f32.mrb[0].mxu0
      %v5700 = vadd.f32 0.0, %v5699
      %v5701 = vpop.f32.mrb[0].mxu0
      %5702 = vmatprep.mubr.bf16.mxu0 0
      %5703 = vmatmul.mubr.bf16.gmra.mrb[0].mxu0 %v5600
      %v5704 = vpop.f32.mrb[0].mxu0
      %v5705 = vadd.f32 0.0, %v5704
      %v5706 = vpop.f32.mrb[0].mxu0
      %v5707 = vpop.f32.mrb[0].mxu0
      %v5708 = vadd.f32 0.0, %v5707
      %v5709 = vpop.f32.mrb[0].mxu0
      %5710 = vmatprep.mubr.bf16.mxu0 0
      %5711 = vmatmul.mubr.bf16.gmra.mrb[0].mxu0 %v5603
      %v5712 = vpop.f32.mrb[0].mxu0
      %v5713 = vadd.f32 0.0, %v5712
      %v5714 = vpop.f32.mrb[0].mxu0
      %v5715 = vpop.f32.mrb[0].mxu0
      %v5716 = vadd.f32 0.0, %v5715
      %v5717 = vpop.f32.mrb[0].mxu0
      %5718 = vmatprep.mubr.bf16.mxu0 0
      %5719 = vmatmul.mubr.bf16.gmra.mrb[0].mxu0 %v5606
      %v5720 = vpop.f32.mrb[0].mxu0
      %v5721 = vadd.f32 0.0, %v5720
      %v5722 = vpop.f32.mrb[0].mxu0
      %v5723 = vpop.f32.mrb[0].mxu0
      %v5724 = vadd.f32 0.0, %v5723
      %v5725 = vpop.f32.mrb[0].mxu0
      %5726 = vmatprep.mubr.bf16.mxu0 0
      %5727 = vmatmul.mubr.bf16.gmra.mrb[0].mxu0 %v5609
      %v5728 = vpop.f32.mrb[0].mxu0
      %v5729 = vadd.f32 0.0, %v5728
      %v5730 = vpop.f32.mrb[0].mxu0
      %v5731 = vpop.f32.mrb[0].mxu0
      %v5732 = vadd.f32 0.0, %v5731
      %v5733 = vpop.f32.mrb[0].mxu0
      %5734 = vmatprep.mubr.bf16.mxu0 0
      %5735 = vmatmul.mubr.bf16.gmra.mrb[0].mxu0 %v5612
      %v5736 = vpop.f32.mrb[0].mxu0
      %v5737 = vadd.f32 0.0, %v5736
      %v5738 = vpop.f32.mrb[0].mxu0
      %v5739 = vpop.f32.mrb[0].mxu0
      %v5740 = vadd.f32 0.0, %v5739
      %v5741 = vpop.f32.mrb[0].mxu0
      %5742 = vmatprep.mubr.bf16.mxu0 0
      %5743 = vmatmul.mubr.bf16.gmra.mrb[0].mxu0 %v5615
      %v5744 = vpop.f32.mrb[0].mxu0
      %v5745 = vadd.f32 0.0, %v5744
      %v5746 = vpop.f32.mrb[0].mxu0
      %v5747 = vpop.f32.mrb[0].mxu0
      %v5748 = vadd.f32 0.0, %v5747
      %v5749 = vpop.f32.mrb[0].mxu0
      %5750 = vmatprep.mubr.bf16.mxu0 0
      %5751 = vmatmul.mubr.bf16.gmra.mrb[0].mxu0 %v5618
      %v5752 = vpop.f32.mrb[0].mxu0
      %v5753 = vadd.f32 0.0, %v5752
      %v5754 = vpop.f32.mrb[0].mxu0
      %v5755 = vpop.f32.mrb[0].mxu0
      %v5756 = vadd.f32 0.0, %v5755
      %v5757 = vpop.f32.mrb[0].mxu0
      %5758 = vmatprep.mubr.bf16.mxu0 0
      %5759 = vmatmul.mubr.bf16.gmra.mrb[0].mxu0 %v5621
      %v5760 = vpop.f32.mrb[0].mxu0
      %v5761 = vadd.f32 0.0, %v5760
      %v5762 = vpop.f32.mrb[0].mxu0
      %v5763 = vpop.f32.mrb[0].mxu0
      %v5764 = vadd.f32 0.0, %v5763
      %v5765 = vpop.f32.mrb[0].mxu0
      %5766 = vmatprep.mubr.bf16.mxu0 0
      %5767 = vmatmul.mubr.bf16.gmra.mrb[0].mxu0 %v5624
      %v5768 = vpop.f32.mrb[0].mxu0
      %v5769 = vadd.f32 0.0, %v5768
      %v5770 = vpop.f32.mrb[0].mxu0
      %v5771 = vpop.f32.mrb[0].mxu0
      %v5772 = vadd.f32 0.0, %v5771
      %v5773 = vpop.f32.mrb[0].mxu0
      %5774 = vmatprep.mubr.bf16.mxu0 0
      %5775 = vmatmul.mubr.bf16.gmra.mrb[0].mxu0 %v5627
      %v5776 = vpop.f32.mrb[0].mxu0
      %v5777 = vadd.f32 0.0, %v5776
      %v5778 = vpop.f32.mrb[0].mxu0
      %v5779 = vpop.f32.mrb[0].mxu0
      %v5780 = vadd.f32 0.0, %v5779
      %v5781 = vpop.f32.mrb[0].mxu0
      %5782 = vmatprep.mubr.bf16.mxu0 0
      %5783 = vmatmul.mubr.bf16.gmra.mrb[0].mxu0 %v5630
      %v5784 = vpop.f32.mrb[0].mxu0
      %v5785 = vadd.f32 0.0, %v5784
      %v5786 = vpop.f32.mrb[0].mxu0
      %v5787 = vpop.f32.mrb[0].mxu0
      %v5788 = vadd.f32 0.0, %v5787
      %v5789 = vpop.f32.mrb[0].mxu0
      %5790 = vmatprep.mubr.bf16.mxu0 0
      %5791 = vmatmul.mubr.bf16.gmra.mrb[0].mxu0 %v5633
      %v5792 = vpop.f32.mrb[0].mxu0
      %v5793 = vadd.f32 0.0, %v5792
      %v5794 = vpop.f32.mrb[0].mxu0
      %v5795 = vpop.f32.mrb[0].mxu0
      %v5796 = vadd.f32 0.0, %v5795
      %v5797 = vpop.f32.mrb[0].mxu0
      %5798 = vdwg.mxu0
      %v5799 = vadd.f32 %v5505, %v5673
      %v5800 = vadd.f32 %v5506, %v5676
      %v5801 = vadd.f32 %v5507, %v5681
      %v5802 = vadd.f32 %v5508, %v5684
      %v5803 = vadd.f32 %v5509, %v5689
      %v5804 = vadd.f32 %v5510, %v5692
      %v5805 = vadd.f32 %v5511, %v5697
      %v5806 = vadd.f32 %v5512, %v5700
      %v5807 = vadd.f32 %v5513, %v5705
      %v5808 = vadd.f32 %v5514, %v5708
      %v5809 = vadd.f32 %v5515, %v5713
      %v5810 = vadd.f32 %v5516, %v5716
      %v5811 = vadd.f32 %v5517, %v5721
      %v5812 = vadd.f32 %v5518, %v5724
      %v5813 = vadd.f32 %v5519, %v5729
      %v5814 = vadd.f32 %v5520, %v5732
      %v5815 = vadd.f32 %v5521, %v5737
      %v5816 = vadd.f32 %v5522, %v5740
      %v5817 = vadd.f32 %v5523, %v5745
      %v5818 = vadd.f32 %v5524, %v5748
      %v5819 = vadd.f32 %v5525, %v5753
      %v5820 = vadd.f32 %v5526, %v5756
      %v5821 = vadd.f32 %v5527, %v5761
      %v5822 = vadd.f32 %v5528, %v5764
      %v5823 = vadd.f32 %v5529, %v5769
      %v5824 = vadd.f32 %v5530, %v5772
      %v5825 = vadd.f32 %v5531, %v5777
      %v5826 = vadd.f32 %v5532, %v5780
      %v5827 = vadd.f32 %v5533, %v5785
      %v5828 = vadd.f32 %v5534, %v5788
      %v5829 = vadd.f32 %v5535, %v5793
      %v5830 = vadd.f32 %v5536, %v5796
      %v5831 = vld [vmem:[%s5] sm:$0x1]
      %v5833 = vlaneseq
      %v5834 = vshrl.u32 %v5833, 7
      %v5835 = vsub.s32 0, %v5834
      %v5836 = vrot.slane %v5831, %v5835
      %v5838 = vmul.f32 %v5799, %v5836
      %v5839 = vmul.f32 %v5800, %v5836
      %v5840 = vmul.f32 %v5801, %v5836
      %v5841 = vmul.f32 %v5802, %v5836
      %v5842 = vmul.f32 %v5803, %v5836
      %v5843 = vmul.f32 %v5804, %v5836
      %v5844 = vmul.f32 %v5805, %v5836
      %v5845 = vmul.f32 %v5806, %v5836
      %v5846 = vmul.f32 %v5807, %v5836
      %v5847 = vmul.f32 %v5808, %v5836
      %v5848 = vmul.f32 %v5809, %v5836
      %v5849 = vmul.f32 %v5810, %v5836
      %v5850 = vmul.f32 %v5811, %v5836
      %v5851 = vmul.f32 %v5812, %v5836
      %v5852 = vmul.f32 %v5813, %v5836
      %v5853 = vmul.f32 %v5814, %v5836
      %v5854 = vmul.f32 %v5815, %v5836
      %v5855 = vmul.f32 %v5816, %v5836
      %v5856 = vmul.f32 %v5817, %v5836
      %v5857 = vmul.f32 %v5818, %v5836
      %v5858 = vmul.f32 %v5819, %v5836
      %v5859 = vmul.f32 %v5820, %v5836
      %v5860 = vmul.f32 %v5821, %v5836
      %v5861 = vmul.f32 %v5822, %v5836
      %v5862 = vmul.f32 %v5823, %v5836
      %v5863 = vmul.f32 %v5824, %v5836
      %v5864 = vmul.f32 %v5825, %v5836
      %v5865 = vmul.f32 %v5826, %v5836
      %v5866 = vmul.f32 %v5827, %v5836
      %v5867 = vmul.f32 %v5828, %v5836
      %v5868 = vmul.f32 %v5829, %v5836
      %v5869 = vmul.f32 %v5830, %v5836
      %v5870 = vld [vmem:[%s6] sm:$0x1]
      %v5872 = vlaneseq
      %v5873 = vshrl.u32 %v5872, 7
      %v5874 = vsub.s32 0, %v5873
      %v5875 = vrot.slane %v5870, %v5874
      %v5877 = vadd.f32 %v5838, %v5875
      %v5878 = vadd.f32 %v5839, %v5875
      %v5879 = vadd.f32 %v5840, %v5875
      %v5880 = vadd.f32 %v5841, %v5875
      %v5881 = vadd.f32 %v5842, %v5875
      %v5882 = vadd.f32 %v5843, %v5875
      %v5883 = vadd.f32 %v5844, %v5875
      %v5884 = vadd.f32 %v5845, %v5875
      %v5885 = vadd.f32 %v5846, %v5875
      %v5886 = vadd.f32 %v5847, %v5875
      %v5887 = vadd.f32 %v5848, %v5875
      %v5888 = vadd.f32 %v5849, %v5875
      %v5889 = vadd.f32 %v5850, %v5875
      %v5890 = vadd.f32 %v5851, %v5875
      %v5891 = vadd.f32 %v5852, %v5875
      %v5892 = vadd.f32 %v5853, %v5875
      %v5893 = vadd.f32 %v5854, %v5875
      %v5894 = vadd.f32 %v5855, %v5875
      %v5895 = vadd.f32 %v5856, %v5875
      %v5896 = vadd.f32 %v5857, %v5875
      %v5897 = vadd.f32 %v5858, %v5875
      %v5898 = vadd.f32 %v5859, %v5875
      %v5899 = vadd.f32 %v5860, %v5875
      %v5900 = vadd.f32 %v5861, %v5875
      %v5901 = vadd.f32 %v5862, %v5875
      %v5902 = vadd.f32 %v5863, %v5875
      %v5903 = vadd.f32 %v5864, %v5875
      %v5904 = vadd.f32 %v5865, %v5875
      %v5905 = vadd.f32 %v5866, %v5875
      %v5906 = vadd.f32 %v5867, %v5875
      %v5907 = vadd.f32 %v5868, %v5875
      %v5908 = vadd.f32 %v5869, %v5875
      %v5909 = vld [vmem:[%s7] sm:$0x3]
      %v5910 = vld [vmem:[%s8] sm:$0x1]
      %v5912 = vlaneseq
      %v5913 = vshrl.u32 %v5912, 7
      %v5914 = vsub.s32 0, %v5913
      %v5915 = vrot.slane %v5910, %v5914
      %v5918 = vsel %vm875, %v5909, 0
      %5920 = vmatprep.subr.bf16.mxu0 0
      %5921 = vmatpush1.bf16.msra.mxu0 %v5918
      %5922 = vmatprep.subr.bf16.mxu0 0
      %5923 = vmatpush1.bf16.msra.mxu0 0
      %5924 = vmatprep.subr.bf16.mxu0 0
      %5925 = vmatpush1.bf16.msra.mxu0 0
      %5926 = vmatprep.subr.bf16.mxu0 0
      %5927 = vmatpush1.bf16.msra.mxu0 0
      %5928 = vmatprep.subr.bf16.mxu0 0
      %5929 = vmatpush1.bf16.msra.mxu0 0
      %5930 = vmatprep.subr.bf16.mxu0 0
      %5931 = vmatpush1.bf16.msra.mxu0 0
      %5932 = vmatprep.subr.bf16.mxu0 0
      %5933 = vmatpush1.bf16.msra.mxu0 0
      %5934 = vmatprep.subr.bf16.mxu0 0
      %5935 = vmatpush1.bf16.msra.mxu0 0
      %5936 = vmatprep.subr.bf16.mxu0 0
      %5937 = vmatpush1.bf16.msra.mxu0 0
      %5938 = vmatprep.subr.bf16.mxu0 0
      %5939 = vmatpush1.bf16.msra.mxu0 0
      %5940 = vmatprep.subr.bf16.mxu0 0
      %5941 = vmatpush1.bf16.msra.mxu0 0
      %5942 = vmatprep.subr.bf16.mxu0 0
      %5943 = vmatpush1.bf16.msra.mxu0 0
      %5944 = vmatprep.subr.bf16.mxu0 0
      %5945 = vmatpush1.bf16.msra.mxu0 0
      %5946 = vmatprep.subr.bf16.mxu0 0
      %5947 = vmatpush1.bf16.msra.mxu0 0
      %5948 = vmatprep.subr.bf16.mxu0 0
      %5949 = vmatpush1.bf16.msra.mxu0 0
      %5950 = vmatprep.subr.bf16.mxu0 0
      %5951 = vmatpush1.bf16.msra.mxu0 0
      %5952 = vmatprep.mubr.bf16.mxu0 0
      %5953 = vmatmul.mubr.bf16.gmra.mrb[0].mxu0 %v831
      %v5954 = vpop.f32.mrb[0].mxu0
      %v5955 = vadd.f32 %v5915, %v5954
      %v5956 = vpop.f32.mrb[0].mxu0
      %v5957 = vpop.f32.mrb[0].mxu0
      %v5958 = vadd.f32 %v5915, %v5957
      %v5959 = vpop.f32.mrb[0].mxu0
      %5960 = vmatprep.mubr.bf16.mxu0 0
      %5961 = vmatmul.mubr.bf16.gmra.mrb[0].mxu0 %v834
      %v5962 = vpop.f32.mrb[0].mxu0
      %v5963 = vadd.f32 %v5915, %v5962
      %v5964 = vpop.f32.mrb[0].mxu0
      %v5965 = vpop.f32.mrb[0].mxu0
      %v5966 = vadd.f32 %v5915, %v5965
      %v5967 = vpop.f32.mrb[0].mxu0
      %5968 = vmatprep.mubr.bf16.mxu0 0
      %5969 = vmatmul.mubr.bf16.gmra.mrb[0].mxu0 %v837
      %v5970 = vpop.f32.mrb[0].mxu0
      %v5971 = vadd.f32 %v5915, %v5970
      %v5972 = vpop.f32.mrb[0].mxu0
      %v5973 = vpop.f32.mrb[0].mxu0
      %v5974 = vadd.f32 %v5915, %v5973
      %v5975 = vpop.f32.mrb[0].mxu0
      %5976 = vmatprep.mubr.bf16.mxu0 0
      %5977 = vmatmul.mubr.bf16.gmra.mrb[0].mxu0 %v840
      %v5978 = vpop.f32.mrb[0].mxu0
      %v5979 = vadd.f32 %v5915, %v5978
      %v5980 = vpop.f32.mrb[0].mxu0
      %v5981 = vpop.f32.mrb[0].mxu0
      %v5982 = vadd.f32 %v5915, %v5981
      %v5983 = vpop.f32.mrb[0].mxu0
      %5984 = vmatprep.mubr.bf16.mxu0 0
      %5985 = vmatmul.mubr.bf16.gmra.mrb[0].mxu0 %v843
      %v5986 = vpop.f32.mrb[0].mxu0
      %v5987 = vadd.f32 %v5915, %v5986
      %v5988 = vpop.f32.mrb[0].mxu0
      %v5989 = vpop.f32.mrb[0].mxu0
      %v5990 = vadd.f32 %v5915, %v5989
      %v5991 = vpop.f32.mrb[0].mxu0
      %5992 = vmatprep.mubr.bf16.mxu0 0
      %5993 = vmatmul.mubr.bf16.gmra.mrb[0].mxu0 %v846
      %v5994 = vpop.f32.mrb[0].mxu0
      %v5995 = vadd.f32 %v5915, %v5994
      %v5996 = vpop.f32.mrb[0].mxu0
      %v5997 = vpop.f32.mrb[0].mxu0
      %v5998 = vadd.f32 %v5915, %v5997
      %v5999 = vpop.f32.mrb[0].mxu0
      %6000 = vmatprep.mubr.bf16.mxu0 0
      %6001 = vmatmul.mubr.bf16.gmra.mrb[0].mxu0 %v849
      %v6002 = vpop.f32.mrb[0].mxu0
      %v6003 = vadd.f32 %v5915, %v6002
      %v6004 = vpop.f32.mrb[0].mxu0
      %v6005 = vpop.f32.mrb[0].mxu0
      %v6006 = vadd.f32 %v5915, %v6005
      %v6007 = vpop.f32.mrb[0].mxu0
      %6008 = vmatprep.mubr.bf16.mxu0 0
      %6009 = vmatmul.mubr.bf16.gmra.mrb[0].mxu0 %v852
      %v6010 = vpop.f32.mrb[0].mxu0
      %v6011 = vadd.f32 %v5915, %v6010
      %v6012 = vpop.f32.mrb[0].mxu0
      %v6013 = vpop.f32.mrb[0].mxu0
      %v6014 = vadd.f32 %v5915, %v6013
      %v6015 = vpop.f32.mrb[0].mxu0
      %6016 = vmatprep.mubr.bf16.mxu0 0
      %6017 = vmatmul.mubr.bf16.gmra.mrb[0].mxu0 %v855
      %v6018 = vpop.f32.mrb[0].mxu0
      %v6019 = vadd.f32 %v5915, %v6018
      %v6020 = vpop.f32.mrb[0].mxu0
      %v6021 = vpop.f32.mrb[0].mxu0
      %v6022 = vadd.f32 %v5915, %v6021
      %v6023 = vpop.f32.mrb[0].mxu0
      %6024 = vmatprep.mubr.bf16.mxu0 0
      %6025 = vmatmul.mubr.bf16.gmra.mrb[0].mxu0 %v858
      %v6026 = vpop.f32.mrb[0].mxu0
      %v6027 = vadd.f32 %v5915, %v6026
      %v6028 = vpop.f32.mrb[0].mxu0
      %v6029 = vpop.f32.mrb[0].mxu0
      %v6030 = vadd.f32 %v5915, %v6029
      %v6031 = vpop.f32.mrb[0].mxu0
      %6032 = vmatprep.mubr.bf16.mxu0 0
      %6033 = vmatmul.mubr.bf16.gmra.mrb[0].mxu0 %v861
      %v6034 = vpop.f32.mrb[0].mxu0
      %v6035 = vadd.f32 %v5915, %v6034
      %v6036 = vpop.f32.mrb[0].mxu0
      %v6037 = vpop.f32.mrb[0].mxu0
      %v6038 = vadd.f32 %v5915, %v6037
      %v6039 = vpop.f32.mrb[0].mxu0
      %6040 = vmatprep.mubr.bf16.mxu0 0
      %6041 = vmatmul.mubr.bf16.gmra.mrb[0].mxu0 %v864
      %v6042 = vpop.f32.mrb[0].mxu0
      %v6043 = vadd.f32 %v5915, %v6042
      %v6044 = vpop.f32.mrb[0].mxu0
      %v6045 = vpop.f32.mrb[0].mxu0
      %v6046 = vadd.f32 %v5915, %v6045
      %v6047 = vpop.f32.mrb[0].mxu0
      %6048 = vmatprep.mubr.bf16.mxu0 0
      %6049 = vmatmul.mubr.bf16.gmra.mrb[0].mxu0 %v867
      %v6050 = vpop.f32.mrb[0].mxu0
      %v6051 = vadd.f32 %v5915, %v6050
      %v6052 = vpop.f32.mrb[0].mxu0
      %v6053 = vpop.f32.mrb[0].mxu0
      %v6054 = vadd.f32 %v5915, %v6053
      %v6055 = vpop.f32.mrb[0].mxu0
      %6056 = vmatprep.mubr.bf16.mxu0 0
      %6057 = vmatmul.mubr.bf16.gmra.mrb[0].mxu0 %v870
      %v6058 = vpop.f32.mrb[0].mxu0
      %v6059 = vadd.f32 %v5915, %v6058
      %v6060 = vpop.f32.mrb[0].mxu0
      %v6061 = vpop.f32.mrb[0].mxu0
      %v6062 = vadd.f32 %v5915, %v6061
      %v6063 = vpop.f32.mrb[0].mxu0
      %6064 = vmatprep.mubr.bf16.mxu0 0
      %6065 = vmatmul.mubr.bf16.gmra.mrb[0].mxu0 %v873
      %v6066 = vpop.f32.mrb[0].mxu0
      %v6067 = vadd.f32 %v5915, %v6066
      %v6068 = vpop.f32.mrb[0].mxu0
      %v6069 = vpop.f32.mrb[0].mxu0
      %v6070 = vadd.f32 %v5915, %v6069
      %v6071 = vpop.f32.mrb[0].mxu0
      %6072 = vmatprep.mubr.bf16.mxu0 0
      %6073 = vmatmul.mubr.bf16.gmra.mrb[0].mxu0 %v1993
      %v6074 = vpop.f32.mrb[0].mxu0
      %v6075 = vadd.f32 %v5915, %v6074
      %v6076 = vpop.f32.mrb[0].mxu0
      %v6077 = vpop.f32.mrb[0].mxu0
      %v6078 = vadd.f32 %v5915, %v6077
      %v6079 = vpop.f32.mrb[0].mxu0
      %6080 = vdwg.mxu0
      %v6081 = vadd.f32 %v5877, %v5955
      %v6082 = vadd.f32 %v5878, %v5958
      %v6083 = vadd.f32 %v5879, %v5963
      %v6084 = vadd.f32 %v5880, %v5966
      %v6085 = vadd.f32 %v5881, %v5971
      %v6086 = vadd.f32 %v5882, %v5974
      %v6087 = vadd.f32 %v5883, %v5979
      %v6088 = vadd.f32 %v5884, %v5982
      %v6089 = vadd.f32 %v5885, %v5987
      %v6090 = vadd.f32 %v5886, %v5990
      %v6091 = vadd.f32 %v5887, %v5995
      %v6092 = vadd.f32 %v5888, %v5998
      %v6093 = vadd.f32 %v5889, %v6003
      %v6094 = vadd.f32 %v5890, %v6006
      %v6095 = vadd.f32 %v5891, %v6011
      %v6096 = vadd.f32 %v5892, %v6014
      %v6097 = vadd.f32 %v5893, %v6019
      %v6098 = vadd.f32 %v5894, %v6022
      %v6099 = vadd.f32 %v5895, %v6027
      %v6100 = vadd.f32 %v5896, %v6030
      %v6101 = vadd.f32 %v5897, %v6035
      %v6102 = vadd.f32 %v5898, %v6038
      %v6103 = vadd.f32 %v5899, %v6043
      %v6104 = vadd.f32 %v5900, %v6046
      %v6105 = vadd.f32 %v5901, %v6051
      %v6106 = vadd.f32 %v5902, %v6054
      %v6107 = vadd.f32 %v5903, %v6059
      %v6108 = vadd.f32 %v5904, %v6062
      %v6109 = vadd.f32 %v5905, %v6067
      %v6110 = vadd.f32 %v5906, %v6070
      %v6111 = vadd.f32 %v5907, %v6075
      %v6112 = vadd.f32 %v5908, %v6078
      %v6113 = vmax.f32 %v6081, 0.0
      %v6114 = vmax.f32 %v6082, 0.0
      %v6115 = vmax.f32 %v6083, 0.0
      %v6116 = vmax.f32 %v6084, 0.0
      %v6117 = vmax.f32 %v6085, 0.0
      %v6118 = vmax.f32 %v6086, 0.0
      %v6119 = vmax.f32 %v6087, 0.0
      %v6120 = vmax.f32 %v6088, 0.0
      %v6121 = vmax.f32 %v6089, 0.0
      %v6122 = vmax.f32 %v6090, 0.0
      %v6123 = vmax.f32 %v6091, 0.0
      %v6124 = vmax.f32 %v6092, 0.0
      %v6125 = vmax.f32 %v6093, 0.0
      %v6126 = vmax.f32 %v6094, 0.0
      %v6127 = vmax.f32 %v6095, 0.0
      %v6128 = vmax.f32 %v6096, 0.0
      %v6129 = vmax.f32 %v6097, 0.0
      %v6130 = vmax.f32 %v6098, 0.0
      %v6131 = vmax.f32 %v6099, 0.0
      %v6132 = vmax.f32 %v6100, 0.0
      %v6133 = vmax.f32 %v6101, 0.0
      %v6134 = vmax.f32 %v6102, 0.0
      %v6135 = vmax.f32 %v6103, 0.0
      %v6136 = vmax.f32 %v6104, 0.0
      %v6137 = vmax.f32 %v6105, 0.0
      %v6138 = vmax.f32 %v6106, 0.0
      %v6139 = vmax.f32 %v6107, 0.0
      %v6140 = vmax.f32 %v6108, 0.0
      %v6141 = vmax.f32 %v6109, 0.0
      %v6142 = vmax.f32 %v6110, 0.0
      %v6143 = vmax.f32 %v6111, 0.0
      %v6144 = vmax.f32 %v6112, 0.0
      %6145 = vst.msk [vmem:[%s332] sm:$0xff] %vm3159, %v6113
      %6146 = vst.msk [vmem:[%s332 + $0x8] sm:$0xff] %vm3159, %v6114
      %6147 = vst.msk [vmem:[%s332 + $0x10] sm:$0xff] %vm3159, %v6115
      %6148 = vst.msk [vmem:[%s332 + $0x18] sm:$0xff] %vm3159, %v6116
      %6149 = vst.msk [vmem:[%s332 + $0x20] sm:$0xff] %vm3159, %v6117
      %6150 = vst.msk [vmem:[%s332 + $0x28] sm:$0xff] %vm3159, %v6118
      %6151 = vst.msk [vmem:[%s332 + $0x30] sm:$0xff] %vm3159, %v6119
      %6152 = vst.msk [vmem:[%s332 + $0x38] sm:$0xff] %vm3159, %v6120
      %6153 = vst.msk [vmem:[%s332 + $0x40] sm:$0xff] %vm3159, %v6121
      %6154 = vst.msk [vmem:[%s332 + $0x48] sm:$0xff] %vm3159, %v6122
      %6155 = vst.msk [vmem:[%s332 + $0x50] sm:$0xff] %vm3159, %v6123
      %6156 = vst.msk [vmem:[%s332 + $0x58] sm:$0xff] %vm3159, %v6124
      %6157 = vst.msk [vmem:[%s332 + $0x60] sm:$0xff] %vm3159, %v6125
      %6158 = vst.msk [vmem:[%s332 + $0x68] sm:$0xff] %vm3159, %v6126
      %6159 = vst.msk [vmem:[%s332 + $0x70] sm:$0xff] %vm3159, %v6127
      %6160 = vst.msk [vmem:[%s332 + $0x78] sm:$0xff] %vm3159, %v6128
      %6161 = vst.msk [vmem:[%s332 + $0x80] sm:$0xff] %vm3159, %v6129
      %6162 = vst.msk [vmem:[%s332 + $0x88] sm:$0xff] %vm3159, %v6130
      %6163 = vst.msk [vmem:[%s332 + $0x90] sm:$0xff] %vm3159, %v6131
      %6164 = vst.msk [vmem:[%s332 + $0x98] sm:$0xff] %vm3159, %v6132
      %6165 = vst.msk [vmem:[%s332 + $0xa0] sm:$0xff] %vm3159, %v6133
      %6166 = vst.msk [vmem:[%s332 + $0xa8] sm:$0xff] %vm3159, %v6134
      %6167 = vst.msk [vmem:[%s332 + $0xb0] sm:$0xff] %vm3159, %v6135
      %6168 = vst.msk [vmem:[%s332 + $0xb8] sm:$0xff] %vm3159, %v6136
      %6169 = vst.msk [vmem:[%s332 + $0xc0] sm:$0xff] %vm3159, %v6137
      %6170 = vst.msk [vmem:[%s332 + $0xc8] sm:$0xff] %vm3159, %v6138
      %6171 = vst.msk [vmem:[%s332 + $0xd0] sm:$0xff] %vm3159, %v6139
      %6172 = vst.msk [vmem:[%s332 + $0xd8] sm:$0xff] %vm3159, %v6140
      %6173 = vst.msk [vmem:[%s332 + $0xe0] sm:$0xff] %vm3159, %v6141
      %6174 = vst.msk [vmem:[%s332 + $0xe8] sm:$0xff] %vm3159, %v6142
      %6175 = vst.msk [vmem:[%s332 + $0xf0] sm:$0xff] %vm3159, %v6143
      %6176 = vst.msk [vmem:[%s332 + $0xf8] sm:$0xff] %vm3159, %v6144
      %p6177 = scmp.lt.s32.totalorder %s20, 1
      %s6178 = scalar_select %p6177, %s20, 1
      %s6179 = smul.addr %s6178, 32
      %s6180 = smul.addr %s6179, 8
      %s6181 = scalar_lea.vmem %s9, %s6180
      // Predicated region
      $region57: #{residual_block_2d.1} parent=55 // pred_check
        %p6182 = pneg %p232
      $region58: #{residual_block_2d.1} parent=55 // pred_check_branch
        %6184 = sbr.rel (%p6182) target = $region60
      $region59: #{residual_block_2d.1} parent=55 // pred_region
        _
      $region60: #{residual_block_2d.1} parent=55 // pred_fallthru
        _
    $region56: #{residual_block_2d.1} parent=5 // pred_fallthru
      _
    %p6185 = scmp.le.s32.totalorder 2, %s15
    // Predicated region
    $region61: #{residual_block_2d.1} parent=5 // pred_check
      %p6186 = pneg %p6185
    $region62: #{residual_block_2d.1} parent=5 // pred_check_branch
      %6188 = sbr.rel (%p6186) target = $region64
    $region63: #{residual_block_2d.1} parent=5 // pred_region
      %s6189 = ssub.s32 %s15, 2
      // Predicated region
      $region65: #{residual_block_2d.1} parent=63 // pred_check
        %p6190 = pneg %p238
      $region66: #{residual_block_2d.1} parent=63 // pred_check_branch
        %6192 = sbr.rel (%p6190) target = $region68
      $region67: #{residual_block_2d.1} parent=63 // pred_region
        %p6193 = scmp.lt.s32.totalorder %s21, 1
        %s6194 = scalar_select %p6193, %s21, 1
        %s6195 = smul.addr %s6194, 32
        %s6196 = smul.addr %s6195, 8
        %s6197 = scalar_lea.vmem %s9, %s6196
      $region68: #{residual_block_2d.1} parent=63 // pred_fallthru
        _
    $region64: #{residual_block_2d.1} parent=5 // pred_fallthru
      _
  $region6: #{residual_block_2d.1} parent=0 // loop_footer
    %s19 = sadd.s32 1, %s15
  $region7: #{residual_block_2d.1} parent=0 // loop_footer_branch
    %14 = sbr.rel target = $region3
  $region8: #{residual_block_2d.1} parent=0 // loop_exit
    _

</llo_original>
